<compile_context>
chip_gen: v5e
topology: v5e:2x2
jax: 0.10.0
libtpu: 0.0.40
codegen_flags: <defaults>
</compile_context>

<pallas_src>
import functools

import jax
import jax.numpy as jnp
import numpy as np
from jax import lax
from jax.experimental import pallas as pl
from jax.experimental.pallas import tpu as pltpu


def word_attention_kernel(
        x_ref, mask_ref,
        wih_ref, bih_ref,
        whh_f_ref, bhhn_f_ref,
        whh_b_ref, bhhn_b_ref,
        watt_ref, batt_ref, wctx_ref,
        sent_ref, alphas_ref,
        gxf_ref, gxb_ref, hf_ref, hb_ref,
        *, attn, unroll):
    T, B, E = x_ref.shape
    R = whh_f_ref.shape[0]                      # whh refs are (R, 3R)
    G = 3 * R

    whh_f = whh_f_ref[...]
    whh_b = whh_b_ref[...]
    bhhn_f = bhhn_f_ref[...]                    # (1, R), n-gate b_hh
    bhhn_b = bhhn_b_ref[...]

    # ---- ONE hoisted input projection for both directions (N = 6R) ---------
    # bih already folds b_ih + [b_hh_r, b_hh_z, 0] per direction (exact GRU).
    x2 = x_ref[...].reshape(T * B, E)
    gx_all = (jnp.dot(x2, wih_ref[...], preferred_element_type=jnp.float32)
              + bih_ref[...])                   # (T*B, 6R)
    gxf_ref[...] = gx_all[:, :G].reshape(T, B, G)
    gxb_ref[...] = gx_all[:, G:].reshape(T, B, G)

    h0 = jnp.zeros((B, R), jnp.float32)

    def gru_step(gx, h, whh, bhhn):
        gh = jnp.dot(h.astype(whh.dtype), whh,
                     preferred_element_type=jnp.float32)        # (B, 3R)
        r = jax.nn.sigmoid(gx[:, :R] + gh[:, :R])
        z = jax.nn.sigmoid(gx[:, R:2 * R] + gh[:, R:2 * R])
        n = jnp.tanh(gx[:, 2 * R:] + r * (gh[:, 2 * R:] + bhhn))
        return (1.0 - z) * n + z * h

    # ---- fused fwd + bwd recurrence (two independent chains per iter) ------
    def body(t, carry):
        hf, hb = carry
        tb = T - 1 - t
        m_f = mask_ref[t]                       # (B, 1) in {0, 1}
        m_b = mask_ref[tb]
        hf_new = gru_step(gxf_ref[t], hf, whh_f, bhhn_f)
        hb_new = gru_step(gxb_ref[tb], hb, whh_b, bhhn_b)
        hf = hf + m_f * (hf_new - hf)           # freeze state at padded steps
        hb = hb + m_b * (hb_new - hb)           # stays 0 until last valid word
        hf_ref[t] = hf * m_f                    # pad_packed_sequence zeros
        hb_ref[tb] = hb * m_b
        return hf, hb

    lax.fori_loop(0, T, body, (h0, h0), unroll=unroll)

    # ---- attention: one batched matmul over all (t, b) ----------------------
    hfb = jnp.concatenate([hf_ref[...], hb_ref[...]], axis=-1)  # (T, B, 2R)
    a = jnp.tanh(
        jnp.dot(hfb.reshape(T * B, 2 * R).astype(watt_ref.dtype), watt_ref[...],
                preferred_element_type=jnp.float32)
        + batt_ref[...])                        # (T*B, A)
    # context vector contraction: VPU multiply + lane reduce (no N=1 matmul)
    scores = jnp.sum(a * wctx_ref[...], axis=-1,
                     keepdims=True).reshape(T, B, 1)

    mask = mask_ref[...]                        # (T, B, 1)
    neg = jnp.float32(-1e30)
    # per-sentence max: identical result to the packed global max (it cancels)
    mmax = jnp.max(jnp.where(mask > 0.0, scores, neg), axis=0, keepdims=True)
    exp_s = jnp.exp(scores - mmax) * mask
    denom = jnp.sum(exp_s, axis=0, keepdims=True)
    inv = pl.reciprocal(jnp.maximum(denom, jnp.float32(1e-30)), approx=True)
    alphas = exp_s * inv                        # (T, B, 1)

    weighted = alphas * hfb if attn else hfb
    sent_ref[...] = jnp.sum(weighted, axis=0)   # single lane-dense (bt, 2R) store
    alphas_ref[...] = alphas


def word_attention_forward(sentences, words_per_sentence, params, attn=True,
                           use_bf16=False):
    """sentences: (B, T) int32 token ids, words_per_sentence: (B,) int32.

    Precondition: every sentence has at least one valid word.
    Set use_bf16=True on v6e/v7x to feed bf16 operands to the MXU
    (accumulation stays f32).
    """
    # Embedding lookup is glue in plain JAX.
    # TODO(synk): nn.Dropout / GRU dropout are identity here (inference only).
    emb = jnp.take(params["embedding"], sentences, axis=0)      # (B, T, E)
    x = jnp.transpose(emb, (1, 0, 2)).astype(jnp.float32)       # (T, B, E)
    T, B, E = x.shape
    R = params["w_hh_f"].shape[1]
    A = params["w_att"].shape[0]
    G = 3 * R
    mask = (jnp.arange(T)[:, None] < words_per_sentence[None, :]
            ).astype(jnp.float32)[:, :, None]                   # (T, B, 1)

    mdt = jnp.bfloat16 if use_bf16 else jnp.float32             # MXU operand dtype

    def fold_bias(b_ih, b_hh):
        # r/z slices of b_hh fold into the precomputed GX; n-gate stays inside.
        fused = b_ih + jnp.concatenate(
            [b_hh[:2 * R], jnp.zeros((R,), b_hh.dtype)])
        return (fused.astype(jnp.float32),
                b_hh[2 * R:].reshape(1, R).astype(jnp.float32))

    bf_f, bhhn_f = fold_bias(params["b_ih_f"], params["b_hh_f"])
    bf_b, bhhn_b = fold_bias(params["b_ih_b"], params["b_hh_b"])

    # Fused input-projection weight / bias for both directions: (E, 6R), (1, 6R)
    wih_all = jnp.concatenate(
        [params["w_ih_f"].T, params["w_ih_b"].T], axis=1).astype(mdt)
    bih_all = jnp.concatenate([bf_f, bf_b]).reshape(1, 2 * G)

    args = (
        x.astype(mdt), mask,
        wih_all, bih_all,
        params["w_hh_f"].T.astype(mdt), bhhn_f,
        params["w_hh_b"].T.astype(mdt), bhhn_b,
        params["w_att"].T.astype(mdt),                          # (2R, A)
        params["b_att"].reshape(1, A).astype(jnp.float32),
        params["w_ctx"].reshape(1, A).astype(jnp.float32),
    )

    # Batch tile: independent sentences -> "parallel" grid axis (megacore /
    # second TC on v7x).  Small B runs as a single full-array block.
    if B >= 256 and B % 256 == 0:
        bt = 256
    elif B >= 128 and B % 128 == 0:
        bt = 128
    else:
        bt = B
    nb = B // bt

    def full_spec(shape):
        return pl.BlockSpec(shape, lambda i: (0,) * len(shape))

    in_specs = [
        pl.BlockSpec((T, bt, E), lambda i: (0, i, 0)),          # x
        pl.BlockSpec((T, bt, 1), lambda i: (0, i, 0)),          # mask
        full_spec((E, 2 * G)), full_spec((1, 2 * G)),           # fused W_ih / bias
        full_spec((R, G)), full_spec((1, R)),                   # fwd W_hh / b_hh_n
        full_spec((R, G)), full_spec((1, R)),                   # bwd W_hh / b_hh_n
        full_spec((2 * R, A)), full_spec((1, A)), full_spec((1, A)),
    ]
    out_specs = (
        pl.BlockSpec((bt, 2 * R), lambda i: (i, 0)),            # sent
        pl.BlockSpec((T, bt, 1), lambda i: (0, i, 0)),          # alphas
    )
    scratch_shapes = [
        pltpu.VMEM((T, bt, G), jnp.float32),                    # GX fwd
        pltpu.VMEM((T, bt, G), jnp.float32),                    # GX bwd
        pltpu.VMEM((T, bt, R), jnp.float32),                    # hf outputs
        pltpu.VMEM((T, bt, R), jnp.float32),                    # hb outputs
    ]

    unroll = True if T <= 32 else 8
    kernel = functools.partial(word_attention_kernel, attn=attn, unroll=unroll)
    sent, alphas_tb1 = pl.pallas_call(
        kernel,
        out_shape=(jax.ShapeDtypeStruct((B, 2 * R), jnp.float32),
                   jax.ShapeDtypeStruct((T, B, 1), jnp.float32)),
        grid=(nb,),
        in_specs=in_specs,
        out_specs=out_specs,
        scratch_shapes=scratch_shapes,
        compiler_params=pltpu.CompilerParams(
            dimension_semantics=("parallel",),
            vmem_limit_bytes=48 * 1024 * 1024,   # headroom inside v7x 64 MiB/TC
        ),
    )(*args)

    alphas = jnp.transpose(alphas_tb1[:, :, 0], (1, 0))         # (B, T)
    return sent, alphas


def init_params(key, vocab_size, emb_size, R, A):
    ks = jax.random.split(key, 12)
    s = 0.1
    rn = lambda k, shape: (jax.random.normal(k, shape, jnp.float32) * s)
    return {
        "embedding": rn(ks[0], (vocab_size, emb_size)),
        "w_ih_f": rn(ks[1], (3 * R, emb_size)),
        "w_hh_f": rn(ks[2], (3 * R, R)),
        "b_ih_f": rn(ks[3], (3 * R,)),
        "b_hh_f": rn(ks[4], (3 * R,)),
        "w_ih_b": rn(ks[5], (3 * R, emb_size)),
        "w_hh_b": rn(ks[6], (3 * R, R)),
        "b_ih_b": rn(ks[7], (3 * R,)),
        "b_hh_b": rn(ks[8], (3 * R,)),
        "w_att": rn(ks[9], (A, 2 * R)),
        "b_att": rn(ks[10], (A,)),
        "w_ctx": rn(ks[11], (1, A)),
    }


def reference_forward(sentences, lengths, params, attn=True):
    """Pure numpy reference mirroring the PyTorch packed-sequence semantics."""
    p = {k: np.asarray(v, dtype=np.float32) for k, v in params.items()}
    emb = p["embedding"][sentences]                             # (B, T, E)
    B, T, _ = emb.shape
    R = p["w_hh_f"].shape[1]

    def sigmoid(v):
        return 1.0 / (1.0 + np.exp(-v))

    def cell(x, h, w_ih, w_hh, b_ih, b_hh):
        gx = w_ih @ x + b_ih
        gh = w_hh @ h + b_hh
        r = sigmoid(gx[:R] + gh[:R])
        z = sigmoid(gx[R:2 * R] + gh[R:2 * R])
        n = np.tanh(gx[2 * R:] + r * gh[2 * R:])
        return (1.0 - z) * n + z * h

    words = np.zeros((B, T, 2 * R), np.float32)
    scores = np.zeros((B, T), np.float32)
    valid = np.zeros((B, T), bool)
    for b in range(B):
        L = int(lengths[b])
        h = np.zeros(R, np.float32)
        for t in range(L):
            h = cell(emb[b, t], h, p["w_ih_f"], p["w_hh_f"], p["b_ih_f"], p["b_hh_f"])
            words[b, t, :R] = h
        h = np.zeros(R, np.float32)
        for t in reversed(range(L)):
            h = cell(emb[b, t], h, p["w_ih_b"], p["w_hh_b"], p["b_ih_b"], p["b_hh_b"])
            words[b, t, R:] = h
        for t in range(L):
            u = np.tanh(p["w_att"] @ words[b, t] + p["b_att"])
            scores[b, t] = (p["w_ctx"] @ u).item()
            valid[b, t] = True

    max_val = scores[valid].max()
    e = np.where(valid, np.exp(scores - max_val), 0.0)
    alphas = e / e.sum(axis=1, keepdims=True)
    out = words * alphas[:, :, None] if attn else words
    return out.sum(axis=1), alphas.astype(np.float32)


if __name__ == "__main__":
    vocab_size, emb_size, word_rnn_size, word_att_size = 50, 32, 32, 32
    B, T = 2, 8

    key = jax.random.PRNGKey(0)
    k_param, k_tok = jax.random.split(key)
    params = init_params(k_param, vocab_size, emb_size, word_rnn_size, word_att_size)

    sentences = jax.random.randint(k_tok, (B, T), 0, vocab_size, dtype=jnp.int32)
    words_per_sentence = jnp.array([8, 5], dtype=jnp.int32)     # max length == T

    sent, alphas = word_attention_forward(sentences, words_per_sentence, params, attn=True)
    sent = jax.block_until_ready(sent)
    alphas = jax.block_until_ready(alphas)

    sent_ref, alphas_ref = reference_forward(
        np.asarray(sentences), np.asarray(words_per_sentence), params, attn=True)

    assert sent.shape == (B, 2 * word_rnn_size) and alphas.shape == (B, T)
    assert np.allclose(np.asarray(sent), sent_ref, atol=2e-3), \
        np.abs(np.asarray(sent) - sent_ref).max()
    assert np.allclose(np.asarray(alphas), alphas_ref, atol=2e-3), \
        np.abs(np.asarray(alphas) - alphas_ref).max()

    print("KERNEL_OK")
</pallas_src>

<mosaic_0001>
module attributes {stable_mosaic.version = 11 : i64} {
  func.func @word_attention_kernel(%arg0: i32, %arg1: memref<8x2x32xf32, #tpu.memory_space<vmem>>, %arg2: memref<8x2x1xf32, #tpu.memory_space<vmem>>, %arg3: memref<32x192xf32, #tpu.memory_space<vmem>>, %arg4: memref<1x192xf32, #tpu.memory_space<vmem>>, %arg5: memref<32x96xf32, #tpu.memory_space<vmem>>, %arg6: memref<1x32xf32, #tpu.memory_space<vmem>>, %arg7: memref<32x96xf32, #tpu.memory_space<vmem>>, %arg8: memref<1x32xf32, #tpu.memory_space<vmem>>, %arg9: memref<64x32xf32, #tpu.memory_space<vmem>>, %arg10: memref<1x32xf32, #tpu.memory_space<vmem>>, %arg11: memref<1x32xf32, #tpu.memory_space<vmem>>, %arg12: memref<2x64xf32, #tpu.memory_space<vmem>>, %arg13: memref<8x2x1xf32, #tpu.memory_space<vmem>>, %arg14: memref<8x2x96xf32, #tpu.memory_space<vmem>>, %arg15: memref<8x2x96xf32, #tpu.memory_space<vmem>>, %arg16: memref<8x2x32xf32, #tpu.memory_space<vmem>>, %arg17: memref<8x2x32xf32, #tpu.memory_space<vmem>>) attributes {dimension_semantics = [#tpu.dimension_semantics<parallel>], iteration_bounds = array<i64: 1>, scalar_prefetch = 0 : i64, scratch_operands = 4 : i64, tpu.core_type = #tpu.core_type<tc>, window_params = [{transform_indices = @transform_0, window_bounds = array<i64: 8, 2, 32>}, {transform_indices = @transform_1, window_bounds = array<i64: 8, 2, 1>}, {pipeline_mode = #tpu.pipeline_mode<synchronous>, transform_indices = @transform_2, window_bounds = array<i64: 32, 192>}, {pipeline_mode = #tpu.pipeline_mode<synchronous>, transform_indices = @transform_3, window_bounds = array<i64: 1, 192>}, {pipeline_mode = #tpu.pipeline_mode<synchronous>, transform_indices = @transform_4, window_bounds = array<i64: 32, 96>}, {pipeline_mode = #tpu.pipeline_mode<synchronous>, transform_indices = @transform_5, window_bounds = array<i64: 1, 32>}, {pipeline_mode = #tpu.pipeline_mode<synchronous>, transform_indices = @transform_6, window_bounds = array<i64: 32, 96>}, {pipeline_mode = #tpu.pipeline_mode<synchronous>, transform_indices = @transform_7, window_bounds = array<i64: 1, 32>}, {pipeline_mode = #tpu.pipeline_mode<synchronous>, transform_indices = @transform_8, window_bounds = array<i64: 64, 32>}, {pipeline_mode = #tpu.pipeline_mode<synchronous>, transform_indices = @transform_9, window_bounds = array<i64: 1, 32>}, {pipeline_mode = #tpu.pipeline_mode<synchronous>, transform_indices = @transform_10, window_bounds = array<i64: 1, 32>}, {transform_indices = @transform_11, window_bounds = array<i64: 2, 64>}, {transform_indices = @transform_12, window_bounds = array<i64: 8, 2, 1>}]} {
    %c0 = arith.constant 0 : index
    %c0_0 = arith.constant 0 : index
    %0 = vector.load %arg5[%c0, %c0_0] : memref<32x96xf32, #tpu.memory_space<vmem>>, vector<32x96xf32>
    %c0_1 = arith.constant 0 : index
    %c0_2 = arith.constant 0 : index
    %1 = vector.load %arg7[%c0_1, %c0_2] : memref<32x96xf32, #tpu.memory_space<vmem>>, vector<32x96xf32>
    %c0_3 = arith.constant 0 : index
    %c0_4 = arith.constant 0 : index
    %2 = vector.load %arg6[%c0_3, %c0_4] : memref<1x32xf32, #tpu.memory_space<vmem>>, vector<1x32xf32>
    %c0_5 = arith.constant 0 : index
    %c0_6 = arith.constant 0 : index
    %3 = vector.load %arg8[%c0_5, %c0_6] : memref<1x32xf32, #tpu.memory_space<vmem>>, vector<1x32xf32>
    %c0_7 = arith.constant 0 : index
    %c0_8 = arith.constant 0 : index
    %c0_9 = arith.constant 0 : index
    %4 = vector.load %arg1[%c0_7, %c0_8, %c0_9] : memref<8x2x32xf32, #tpu.memory_space<vmem>>, vector<8x2x32xf32>
    %5 = vector.shape_cast %4 : vector<8x2x32xf32> to vector<16x32xf32>
    %c0_10 = arith.constant 0 : index
    %c0_11 = arith.constant 0 : index
    %6 = vector.load %arg3[%c0_10, %c0_11] : memref<32x192xf32, #tpu.memory_space<vmem>>, vector<32x192xf32>
    %cst = arith.constant dense<0.000000e+00> : vector<16x192xf32>
    %7 = tpu.matmul %5, %6, %cst {dimension_numbers = #tpu.dot_dimension_numbers<[1], [0], [0], [1], [0, 0, 1, 1], [], []>} : vector<16x32xf32>, vector<32x192xf32>, vector<16x192xf32> -> vector<16x192xf32>
    %c0_12 = arith.constant 0 : index
    %c0_13 = arith.constant 0 : index
    %8 = vector.load %arg4[%c0_12, %c0_13] : memref<1x192xf32, #tpu.memory_space<vmem>>, vector<1x192xf32>
    %9 = vector.broadcast %8 : vector<1x192xf32> to vector<16x192xf32>
    %10 = arith.addf %7, %9 : vector<16x192xf32>
    %11 = vector.extract_strided_slice %10 {offsets = [0, 0], sizes = [16, 96], strides = [1, 1]} : vector<16x192xf32> to vector<16x96xf32>
    %12 = vector.shape_cast %11 : vector<16x96xf32> to vector<8x2x96xf32>
    %c0_14 = arith.constant 0 : index
    %c0_15 = arith.constant 0 : index
    %c0_16 = arith.constant 0 : index
    %13 = vector.load %arg14[%c0_14, %c0_15, %c0_16] : memref<8x2x96xf32, #tpu.memory_space<vmem>>, vector<8x2x96xf32>
    tpu.vector_store %arg14[%c0_14, %c0_15, %c0_16], %12 {strides = array<i32>} : memref<8x2x96xf32, #tpu.memory_space<vmem>>, vector<8x2x96xf32>,
    %14 = vector.extract_strided_slice %10 {offsets = [0, 96], sizes = [16, 96], strides = [1, 1]} : vector<16x192xf32> to vector<16x96xf32>
    %15 = vector.shape_cast %14 : vector<16x96xf32> to vector<8x2x96xf32>
    %c0_17 = arith.constant 0 : index
    %c0_18 = arith.constant 0 : index
    %c0_19 = arith.constant 0 : index
    %16 = vector.load %arg15[%c0_17, %c0_18, %c0_19] : memref<8x2x96xf32, #tpu.memory_space<vmem>>, vector<8x2x96xf32>
    tpu.vector_store %arg15[%c0_17, %c0_18, %c0_19], %15 {strides = array<i32>} : memref<8x2x96xf32, #tpu.memory_space<vmem>>, vector<8x2x96xf32>,
    %cst_20 = arith.constant 0.000000e+00 : f32
    %17 = vector.broadcast %cst_20 : f32 to vector<2x32xf32>
    %c0_i32 = arith.constant 0 : i32
    %c7_i32 = arith.constant 7 : i32
    %18 = arith.subi %c7_i32, %c0_i32 : i32
    %19 = arith.index_cast %c0_i32 : i32 to index
    %c0_21 = arith.constant 0 : index
    %c0_22 = arith.constant 0 : index
    %20 = vector.load %arg2[%19, %c0_21, %c0_22] : memref<8x2x1xf32, #tpu.memory_space<vmem>>, vector<1x2x1xf32>
    %21 = vector.shape_cast %20 : vector<1x2x1xf32> to vector<2x1xf32>
    %22 = arith.index_cast %18 : i32 to index
    %c0_23 = arith.constant 0 : index
    %c0_24 = arith.constant 0 : index
    %23 = vector.load %arg2[%22, %c0_23, %c0_24] : memref<8x2x1xf32, #tpu.memory_space<vmem>>, vector<1x2x1xf32>
    %24 = vector.shape_cast %23 : vector<1x2x1xf32> to vector<2x1xf32>
    %25 = arith.index_cast %c0_i32 : i32 to index
    %c0_25 = arith.constant 0 : index
    %c0_26 = arith.constant 0 : index
    %26 = vector.load %arg14[%25, %c0_25, %c0_26] : memref<8x2x96xf32, #tpu.memory_space<vmem>>, vector<1x2x96xf32>
    %27 = vector.shape_cast %26 : vector<1x2x96xf32> to vector<2x96xf32>
    %cst_27 = arith.constant dense<0.000000e+00> : vector<2x96xf32>
    %28 = tpu.matmul %17, %0, %cst_27 {dimension_numbers = #tpu.dot_dimension_numbers<[1], [0], [0], [1], [0, 0, 1, 1], [], []>} : vector<2x32xf32>, vector<32x96xf32>, vector<2x96xf32> -> vector<2x96xf32>
    %29 = vector.extract_strided_slice %27 {offsets = [0, 0], sizes = [2, 32], strides = [1, 1]} : vector<2x96xf32> to vector<2x32xf32>
    %30 = vector.extract_strided_slice %28 {offsets = [0, 0], sizes = [2, 32], strides = [1, 1]} : vector<2x96xf32> to vector<2x32xf32>
    %31 = arith.addf %29, %30 : vector<2x32xf32>
    %32 = arith.negf %31 : vector<2x32xf32>
    %33 = math.exp %32 : vector<2x32xf32>
    %cst_28 = arith.constant 1.000000e+00 : f32
    %34 = vector.broadcast %cst_28 : f32 to vector<2x32xf32>
    %35 = arith.addf %34, %33 : vector<2x32xf32>
    %36 = arith.divf %34, %35 : vector<2x32xf32>
    %37 = vector.extract_strided_slice %27 {offsets = [0, 32], sizes = [2, 32], strides = [1, 1]} : vector<2x96xf32> to vector<2x32xf32>
    %38 = vector.extract_strided_slice %28 {offsets = [0, 32], sizes = [2, 32], strides = [1, 1]} : vector<2x96xf32> to vector<2x32xf32>
    %39 = arith.addf %37, %38 : vector<2x32xf32>
    %40 = arith.negf %39 : vector<2x32xf32>
    %41 = math.exp %40 : vector<2x32xf32>
    %cst_29 = arith.constant 1.000000e+00 : f32
    %42 = vector.broadcast %cst_29 : f32 to vector<2x32xf32>
    %43 = arith.addf %42, %41 : vector<2x32xf32>
    %44 = arith.divf %42, %43 : vector<2x32xf32>
    %45 = vector.extract_strided_slice %27 {offsets = [0, 64], sizes = [2, 32], strides = [1, 1]} : vector<2x96xf32> to vector<2x32xf32>
    %46 = vector.extract_strided_slice %28 {offsets = [0, 64], sizes = [2, 32], strides = [1, 1]} : vector<2x96xf32> to vector<2x32xf32>
    %47 = vector.broadcast %2 : vector<1x32xf32> to vector<2x32xf32>
    %48 = arith.addf %46, %47 : vector<2x32xf32>
    %49 = arith.mulf %36, %48 : vector<2x32xf32>
    %50 = arith.addf %45, %49 : vector<2x32xf32>
    %51 = math.tanh %50 : vector<2x32xf32>
    %cst_30 = arith.constant 1.000000e+00 : f32
    %52 = vector.broadcast %cst_30 : f32 to vector<2x32xf32>
    %53 = arith.subf %52, %44 : vector<2x32xf32>
    %54 = arith.mulf %53, %51 : vector<2x32xf32>
    %55 = arith.mulf %44, %17 : vector<2x32xf32>
    %56 = arith.addf %54, %55 : vector<2x32xf32>
    %57 = arith.index_cast %18 : i32 to index
    %c0_31 = arith.constant 0 : index
    %c0_32 = arith.constant 0 : index
    %58 = vector.load %arg15[%57, %c0_31, %c0_32] : memref<8x2x96xf32, #tpu.memory_space<vmem>>, vector<1x2x96xf32>
    %59 = vector.shape_cast %58 : vector<1x2x96xf32> to vector<2x96xf32>
    %cst_33 = arith.constant dense<0.000000e+00> : vector<2x96xf32>
    %60 = tpu.matmul %17, %1, %cst_33 {dimension_numbers = #tpu.dot_dimension_numbers<[1], [0], [0], [1], [0, 0, 1, 1], [], []>} : vector<2x32xf32>, vector<32x96xf32>, vector<2x96xf32> -> vector<2x96xf32>
    %61 = vector.extract_strided_slice %59 {offsets = [0, 0], sizes = [2, 32], strides = [1, 1]} : vector<2x96xf32> to vector<2x32xf32>
    %62 = vector.extract_strided_slice %60 {offsets = [0, 0], sizes = [2, 32], strides = [1, 1]} : vector<2x96xf32> to vector<2x32xf32>
    %63 = arith.addf %61, %62 : vector<2x32xf32>
    %64 = arith.negf %63 : vector<2x32xf32>
    %65 = math.exp %64 : vector<2x32xf32>
    %cst_34 = arith.constant 1.000000e+00 : f32
    %66 = vector.broadcast %cst_34 : f32 to vector<2x32xf32>
    %67 = arith.addf %66, %65 : vector<2x32xf32>
    %68 = arith.divf %66, %67 : vector<2x32xf32>
    %69 = vector.extract_strided_slice %59 {offsets = [0, 32], sizes = [2, 32], strides = [1, 1]} : vector<2x96xf32> to vector<2x32xf32>
    %70 = vector.extract_strided_slice %60 {offsets = [0, 32], sizes = [2, 32], strides = [1, 1]} : vector<2x96xf32> to vector<2x32xf32>
    %71 = arith.addf %69, %70 : vector<2x32xf32>
    %72 = arith.negf %71 : vector<2x32xf32>
    %73 = math.exp %72 : vector<2x32xf32>
    %cst_35 = arith.constant 1.000000e+00 : f32
    %74 = vector.broadcast %cst_35 : f32 to vector<2x32xf32>
    %75 = arith.addf %74, %73 : vector<2x32xf32>
    %76 = arith.divf %74, %75 : vector<2x32xf32>
    %77 = vector.extract_strided_slice %59 {offsets = [0, 64], sizes = [2, 32], strides = [1, 1]} : vector<2x96xf32> to vector<2x32xf32>
    %78 = vector.extract_strided_slice %60 {offsets = [0, 64], sizes = [2, 32], strides = [1, 1]} : vector<2x96xf32> to vector<2x32xf32>
    %79 = vector.broadcast %3 : vector<1x32xf32> to vector<2x32xf32>
    %80 = arith.addf %78, %79 : vector<2x32xf32>
    %81 = arith.mulf %68, %80 : vector<2x32xf32>
    %82 = arith.addf %77, %81 : vector<2x32xf32>
    %83 = math.tanh %82 : vector<2x32xf32>
    %cst_36 = arith.constant 1.000000e+00 : f32
    %84 = vector.broadcast %cst_36 : f32 to vector<2x32xf32>
    %85 = arith.subf %84, %76 : vector<2x32xf32>
    %86 = arith.mulf %85, %83 : vector<2x32xf32>
    %87 = arith.mulf %76, %17 : vector<2x32xf32>
    %88 = arith.addf %86, %87 : vector<2x32xf32>
    %89 = arith.subf %56, %17 : vector<2x32xf32>
    %90 = vector.broadcast %21 : vector<2x1xf32> to vector<2x32xf32>
    %91 = arith.mulf %90, %89 : vector<2x32xf32>
    %92 = arith.addf %17, %91 : vector<2x32xf32>
    %93 = arith.subf %88, %17 : vector<2x32xf32>
    %94 = vector.broadcast %24 : vector<2x1xf32> to vector<2x32xf32>
    %95 = arith.mulf %94, %93 : vector<2x32xf32>
    %96 = arith.addf %17, %95 : vector<2x32xf32>
    %97 = vector.broadcast %21 : vector<2x1xf32> to vector<2x32xf32>
    %98 = arith.mulf %92, %97 : vector<2x32xf32>
    %99 = arith.index_cast %c0_i32 : i32 to index
    %c0_37 = arith.constant 0 : index
    %c0_38 = arith.constant 0 : index
    %100 = vector.load %arg16[%99, %c0_37, %c0_38] : memref<8x2x32xf32, #tpu.memory_space<vmem>>, vector<1x2x32xf32>
    %101 = vector.shape_cast %100 : vector<1x2x32xf32> to vector<2x32xf32>
    %102 = vector.shape_cast %98 : vector<2x32xf32> to vector<1x2x32xf32>
    tpu.vector_store %arg16[%99, %c0_37, %c0_38], %102 {strides = array<i32>} : memref<8x2x32xf32, #tpu.memory_space<vmem>>, vector<1x2x32xf32>,
    %103 = vector.broadcast %24 : vector<2x1xf32> to vector<2x32xf32>
    %104 = arith.mulf %96, %103 : vector<2x32xf32>
    %105 = arith.index_cast %18 : i32 to index
    %c0_39 = arith.constant 0 : index
    %c0_40 = arith.constant 0 : index
    %106 = vector.load %arg17[%105, %c0_39, %c0_40] : memref<8x2x32xf32, #tpu.memory_space<vmem>>, vector<1x2x32xf32>
    %107 = vector.shape_cast %106 : vector<1x2x32xf32> to vector<2x32xf32>
    %108 = vector.shape_cast %104 : vector<2x32xf32> to vector<1x2x32xf32>
    tpu.vector_store %arg17[%105, %c0_39, %c0_40], %108 {strides = array<i32>} : memref<8x2x32xf32, #tpu.memory_space<vmem>>, vector<1x2x32xf32>,
    %c1_i32 = arith.constant 1 : i32
    %c7_i32_41 = arith.constant 7 : i32
    %109 = arith.subi %c7_i32_41, %c1_i32 : i32
    %110 = arith.index_cast %c1_i32 : i32 to index
    %c0_42 = arith.constant 0 : index
    %c0_43 = arith.constant 0 : index
    %111 = vector.load %arg2[%110, %c0_42, %c0_43] : memref<8x2x1xf32, #tpu.memory_space<vmem>>, vector<1x2x1xf32>
    %112 = vector.shape_cast %111 : vector<1x2x1xf32> to vector<2x1xf32>
    %113 = arith.index_cast %109 : i32 to index
    %c0_44 = arith.constant 0 : index
    %c0_45 = arith.constant 0 : index
    %114 = vector.load %arg2[%113, %c0_44, %c0_45] : memref<8x2x1xf32, #tpu.memory_space<vmem>>, vector<1x2x1xf32>
    %115 = vector.shape_cast %114 : vector<1x2x1xf32> to vector<2x1xf32>
    %116 = arith.index_cast %c1_i32 : i32 to index
    %c0_46 = arith.constant 0 : index
    %c0_47 = arith.constant 0 : index
    %117 = vector.load %arg14[%116, %c0_46, %c0_47] : memref<8x2x96xf32, #tpu.memory_space<vmem>>, vector<1x2x96xf32>
    %118 = vector.shape_cast %117 : vector<1x2x96xf32> to vector<2x96xf32>
    %cst_48 = arith.constant dense<0.000000e+00> : vector<2x96xf32>
    %119 = tpu.matmul %92, %0, %cst_48 {dimension_numbers = #tpu.dot_dimension_numbers<[1], [0], [0], [1], [0, 0, 1, 1], [], []>} : vector<2x32xf32>, vector<32x96xf32>, vector<2x96xf32> -> vector<2x96xf32>
    %120 = vector.extract_strided_slice %118 {offsets = [0, 0], sizes = [2, 32], strides = [1, 1]} : vector<2x96xf32> to vector<2x32xf32>
    %121 = vector.extract_strided_slice %119 {offsets = [0, 0], sizes = [2, 32], strides = [1, 1]} : vector<2x96xf32> to vector<2x32xf32>
    %122 = arith.addf %120, %121 : vector<2x32xf32>
    %123 = arith.negf %122 : vector<2x32xf32>
    %124 = math.exp %123 : vector<2x32xf32>
    %cst_49 = arith.constant 1.000000e+00 : f32
    %125 = vector.broadcast %cst_49 : f32 to vector<2x32xf32>
    %126 = arith.addf %125, %124 : vector<2x32xf32>
    %127 = arith.divf %125, %126 : vector<2x32xf32>
    %128 = vector.extract_strided_slice %118 {offsets = [0, 32], sizes = [2, 32], strides = [1, 1]} : vector<2x96xf32> to vector<2x32xf32>
    %129 = vector.extract_strided_slice %119 {offsets = [0, 32], sizes = [2, 32], strides = [1, 1]} : vector<2x96xf32> to vector<2x32xf32>
    %130 = arith.addf %128, %129 : vector<2x32xf32>
    %131 = arith.negf %130 : vector<2x32xf32>
    %132 = math.exp %131 : vector<2x32xf32>
    %cst_50 = arith.constant 1.000000e+00 : f32
    %133 = vector.broadcast %cst_50 : f32 to vector<2x32xf32>
    %134 = arith.addf %133, %132 : vector<2x32xf32>
    %135 = arith.divf %133, %134 : vector<2x32xf32>
    %136 = vector.extract_strided_slice %118 {offsets = [0, 64], sizes = [2, 32], strides = [1, 1]} : vector<2x96xf32> to vector<2x32xf32>
    %137 = vector.extract_strided_slice %119 {offsets = [0, 64], sizes = [2, 32], strides = [1, 1]} : vector<2x96xf32> to vector<2x32xf32>
    %138 = vector.broadcast %2 : vector<1x32xf32> to vector<2x32xf32>
    %139 = arith.addf %137, %138 : vector<2x32xf32>
    %140 = arith.mulf %127, %139 : vector<2x32xf32>
    %141 = arith.addf %136, %140 : vector<2x32xf32>
    %142 = math.tanh %141 : vector<2x32xf32>
    %cst_51 = arith.constant 1.000000e+00 : f32
    %143 = vector.broadcast %cst_51 : f32 to vector<2x32xf32>
    %144 = arith.subf %143, %135 : vector<2x32xf32>
    %145 = arith.mulf %144, %142 : vector<2x32xf32>
    %146 = arith.mulf %135, %92 : vector<2x32xf32>
    %147 = arith.addf %145, %146 : vector<2x32xf32>
    %148 = arith.index_cast %109 : i32 to index
    %c0_52 = arith.constant 0 : index
    %c0_53 = arith.constant 0 : index
    %149 = vector.load %arg15[%148, %c0_52, %c0_53] : memref<8x2x96xf32, #tpu.memory_space<vmem>>, vector<1x2x96xf32>
    %150 = vector.shape_cast %149 : vector<1x2x96xf32> to vector<2x96xf32>
    %cst_54 = arith.constant dense<0.000000e+00> : vector<2x96xf32>
    %151 = tpu.matmul %96, %1, %cst_54 {dimension_numbers = #tpu.dot_dimension_numbers<[1], [0], [0], [1], [0, 0, 1, 1], [], []>} : vector<2x32xf32>, vector<32x96xf32>, vector<2x96xf32> -> vector<2x96xf32>
    %152 = vector.extract_strided_slice %150 {offsets = [0, 0], sizes = [2, 32], strides = [1, 1]} : vector<2x96xf32> to vector<2x32xf32>
    %153 = vector.extract_strided_slice %151 {offsets = [0, 0], sizes = [2, 32], strides = [1, 1]} : vector<2x96xf32> to vector<2x32xf32>
    %154 = arith.addf %152, %153 : vector<2x32xf32>
    %155 = arith.negf %154 : vector<2x32xf32>
    %156 = math.exp %155 : vector<2x32xf32>
    %cst_55 = arith.constant 1.000000e+00 : f32
    %157 = vector.broadcast %cst_55 : f32 to vector<2x32xf32>
    %158 = arith.addf %157, %156 : vector<2x32xf32>
    %159 = arith.divf %157, %158 : vector<2x32xf32>
    %160 = vector.extract_strided_slice %150 {offsets = [0, 32], sizes = [2, 32], strides = [1, 1]} : vector<2x96xf32> to vector<2x32xf32>
    %161 = vector.extract_strided_slice %151 {offsets = [0, 32], sizes = [2, 32], strides = [1, 1]} : vector<2x96xf32> to vector<2x32xf32>
    %162 = arith.addf %160, %161 : vector<2x32xf32>
    %163 = arith.negf %162 : vector<2x32xf32>
    %164 = math.exp %163 : vector<2x32xf32>
    %cst_56 = arith.constant 1.000000e+00 : f32
    %165 = vector.broadcast %cst_56 : f32 to vector<2x32xf32>
    %166 = arith.addf %165, %164 : vector<2x32xf32>
    %167 = arith.divf %165, %166 : vector<2x32xf32>
    %168 = vector.extract_strided_slice %150 {offsets = [0, 64], sizes = [2, 32], strides = [1, 1]} : vector<2x96xf32> to vector<2x32xf32>
    %169 = vector.extract_strided_slice %151 {offsets = [0, 64], sizes = [2, 32], strides = [1, 1]} : vector<2x96xf32> to vector<2x32xf32>
    %170 = vector.broadcast %3 : vector<1x32xf32> to vector<2x32xf32>
    %171 = arith.addf %169, %170 : vector<2x32xf32>
    %172 = arith.mulf %159, %171 : vector<2x32xf32>
    %173 = arith.addf %168, %172 : vector<2x32xf32>
    %174 = math.tanh %173 : vector<2x32xf32>
    %cst_57 = arith.constant 1.000000e+00 : f32
    %175 = vector.broadcast %cst_57 : f32 to vector<2x32xf32>
    %176 = arith.subf %175, %167 : vector<2x32xf32>
    %177 = arith.mulf %176, %174 : vector<2x32xf32>
    %178 = arith.mulf %167, %96 : vector<2x32xf32>
    %179 = arith.addf %177, %178 : vector<2x32xf32>
    %180 = arith.subf %147, %92 : vector<2x32xf32>
    %181 = vector.broadcast %112 : vector<2x1xf32> to vector<2x32xf32>
    %182 = arith.mulf %181, %180 : vector<2x32xf32>
    %183 = arith.addf %92, %182 : vector<2x32xf32>
    %184 = arith.subf %179, %96 : vector<2x32xf32>
    %185 = vector.broadcast %115 : vector<2x1xf32> to vector<2x32xf32>
    %186 = arith.mulf %185, %184 : vector<2x32xf32>
    %187 = arith.addf %96, %186 : vector<2x32xf32>
    %188 = vector.broadcast %112 : vector<2x1xf32> to vector<2x32xf32>
    %189 = arith.mulf %183, %188 : vector<2x32xf32>
    %190 = arith.index_cast %c1_i32 : i32 to index
    %c0_58 = arith.constant 0 : index
    %c0_59 = arith.constant 0 : index
    %191 = vector.load %arg16[%190, %c0_58, %c0_59] : memref<8x2x32xf32, #tpu.memory_space<vmem>>, vector<1x2x32xf32>
    %192 = vector.shape_cast %191 : vector<1x2x32xf32> to vector<2x32xf32>
    %193 = vector.shape_cast %189 : vector<2x32xf32> to vector<1x2x32xf32>
    tpu.vector_store %arg16[%190, %c0_58, %c0_59], %193 {strides = array<i32>} : memref<8x2x32xf32, #tpu.memory_space<vmem>>, vector<1x2x32xf32>,
    %194 = vector.broadcast %115 : vector<2x1xf32> to vector<2x32xf32>
    %195 = arith.mulf %187, %194 : vector<2x32xf32>
    %196 = arith.index_cast %109 : i32 to index
    %c0_60 = arith.constant 0 : index
    %c0_61 = arith.constant 0 : index
    %197 = vector.load %arg17[%196, %c0_60, %c0_61] : memref<8x2x32xf32, #tpu.memory_space<vmem>>, vector<1x2x32xf32>
    %198 = vector.shape_cast %197 : vector<1x2x32xf32> to vector<2x32xf32>
    %199 = vector.shape_cast %195 : vector<2x32xf32> to vector<1x2x32xf32>
    tpu.vector_store %arg17[%196, %c0_60, %c0_61], %199 {strides = array<i32>} : memref<8x2x32xf32, #tpu.memory_space<vmem>>, vector<1x2x32xf32>,
    %c2_i32 = arith.constant 2 : i32
    %c7_i32_62 = arith.constant 7 : i32
    %200 = arith.subi %c7_i32_62, %c2_i32 : i32
    %201 = arith.index_cast %c2_i32 : i32 to index
    %c0_63 = arith.constant 0 : index
    %c0_64 = arith.constant 0 : index
    %202 = vector.load %arg2[%201, %c0_63, %c0_64] : memref<8x2x1xf32, #tpu.memory_space<vmem>>, vector<1x2x1xf32>
    %203 = vector.shape_cast %202 : vector<1x2x1xf32> to vector<2x1xf32>
    %204 = arith.index_cast %200 : i32 to index
    %c0_65 = arith.constant 0 : index
    %c0_66 = arith.constant 0 : index
    %205 = vector.load %arg2[%204, %c0_65, %c0_66] : memref<8x2x1xf32, #tpu.memory_space<vmem>>, vector<1x2x1xf32>
    %206 = vector.shape_cast %205 : vector<1x2x1xf32> to vector<2x1xf32>
    %207 = arith.index_cast %c2_i32 : i32 to index
    %c0_67 = arith.constant 0 : index
    %c0_68 = arith.constant 0 : index
    %208 = vector.load %arg14[%207, %c0_67, %c0_68] : memref<8x2x96xf32, #tpu.memory_space<vmem>>, vector<1x2x96xf32>
    %209 = vector.shape_cast %208 : vector<1x2x96xf32> to vector<2x96xf32>
    %cst_69 = arith.constant dense<0.000000e+00> : vector<2x96xf32>
    %210 = tpu.matmul %183, %0, %cst_69 {dimension_numbers = #tpu.dot_dimension_numbers<[1], [0], [0], [1], [0, 0, 1, 1], [], []>} : vector<2x32xf32>, vector<32x96xf32>, vector<2x96xf32> -> vector<2x96xf32>
    %211 = vector.extract_strided_slice %209 {offsets = [0, 0], sizes = [2, 32], strides = [1, 1]} : vector<2x96xf32> to vector<2x32xf32>
    %212 = vector.extract_strided_slice %210 {offsets = [0, 0], sizes = [2, 32], strides = [1, 1]} : vector<2x96xf32> to vector<2x32xf32>
    %213 = arith.addf %211, %212 : vector<2x32xf32>
    %214 = arith.negf %213 : vector<2x32xf32>
    %215 = math.exp %214 : vector<2x32xf32>
    %cst_70 = arith.constant 1.000000e+00 : f32
    %216 = vector.broadcast %cst_70 : f32 to vector<2x32xf32>
    %217 = arith.addf %216, %215 : vector<2x32xf32>
    %218 = arith.divf %216, %217 : vector<2x32xf32>
    %219 = vector.extract_strided_slice %209 {offsets = [0, 32], sizes = [2, 32], strides = [1, 1]} : vector<2x96xf32> to vector<2x32xf32>
    %220 = vector.extract_strided_slice %210 {offsets = [0, 32], sizes = [2, 32], strides = [1, 1]} : vector<2x96xf32> to vector<2x32xf32>
    %221 = arith.addf %219, %220 : vector<2x32xf32>
    %222 = arith.negf %221 : vector<2x32xf32>
    %223 = math.exp %222 : vector<2x32xf32>
    %cst_71 = arith.constant 1.000000e+00 : f32
    %224 = vector.broadcast %cst_71 : f32 to vector<2x32xf32>
    %225 = arith.addf %224, %223 : vector<2x32xf32>
    %226 = arith.divf %224, %225 : vector<2x32xf32>
    %227 = vector.extract_strided_slice %209 {offsets = [0, 64], sizes = [2, 32], strides = [1, 1]} : vector<2x96xf32> to vector<2x32xf32>
    %228 = vector.extract_strided_slice %210 {offsets = [0, 64], sizes = [2, 32], strides = [1, 1]} : vector<2x96xf32> to vector<2x32xf32>
    %229 = vector.broadcast %2 : vector<1x32xf32> to vector<2x32xf32>
    %230 = arith.addf %228, %229 : vector<2x32xf32>
    %231 = arith.mulf %218, %230 : vector<2x32xf32>
    %232 = arith.addf %227, %231 : vector<2x32xf32>
    %233 = math.tanh %232 : vector<2x32xf32>
    %cst_72 = arith.constant 1.000000e+00 : f32
    %234 = vector.broadcast %cst_72 : f32 to vector<2x32xf32>
    %235 = arith.subf %234, %226 : vector<2x32xf32>
    %236 = arith.mulf %235, %233 : vector<2x32xf32>
    %237 = arith.mulf %226, %183 : vector<2x32xf32>
    %238 = arith.addf %236, %237 : vector<2x32xf32>
    %239 = arith.index_cast %200 : i32 to index
    %c0_73 = arith.constant 0 : index
    %c0_74 = arith.constant 0 : index
    %240 = vector.load %arg15[%239, %c0_73, %c0_74] : memref<8x2x96xf32, #tpu.memory_space<vmem>>, vector<1x2x96xf32>
    %241 = vector.shape_cast %240 : vector<1x2x96xf32> to vector<2x96xf32>
    %cst_75 = arith.constant dense<0.000000e+00> : vector<2x96xf32>
    %242 = tpu.matmul %187, %1, %cst_75 {dimension_numbers = #tpu.dot_dimension_numbers<[1], [0], [0], [1], [0, 0, 1, 1], [], []>} : vector<2x32xf32>, vector<32x96xf32>, vector<2x96xf32> -> vector<2x96xf32>
    %243 = vector.extract_strided_slice %241 {offsets = [0, 0], sizes = [2, 32], strides = [1, 1]} : vector<2x96xf32> to vector<2x32xf32>
    %244 = vector.extract_strided_slice %242 {offsets = [0, 0], sizes = [2, 32], strides = [1, 1]} : vector<2x96xf32> to vector<2x32xf32>
    %245 = arith.addf %243, %244 : vector<2x32xf32>
    %246 = arith.negf %245 : vector<2x32xf32>
    %247 = math.exp %246 : vector<2x32xf32>
    %cst_76 = arith.constant 1.000000e+00 : f32
    %248 = vector.broadcast %cst_76 : f32 to vector<2x32xf32>
    %249 = arith.addf %248, %247 : vector<2x32xf32>
    %250 = arith.divf %248, %249 : vector<2x32xf32>
    %251 = vector.extract_strided_slice %241 {offsets = [0, 32], sizes = [2, 32], strides = [1, 1]} : vector<2x96xf32> to vector<2x32xf32>
    %252 = vector.extract_strided_slice %242 {offsets = [0, 32], sizes = [2, 32], strides = [1, 1]} : vector<2x96xf32> to vector<2x32xf32>
    %253 = arith.addf %251, %252 : vector<2x32xf32>
    %254 = arith.negf %253 : vector<2x32xf32>
    %255 = math.exp %254 : vector<2x32xf32>
    %cst_77 = arith.constant 1.000000e+00 : f32
    %256 = vector.broadcast %cst_77 : f32 to vector<2x32xf32>
    %257 = arith.addf %256, %255 : vector<2x32xf32>
    %258 = arith.divf %256, %257 : vector<2x32xf32>
    %259 = vector.extract_strided_slice %241 {offsets = [0, 64], sizes = [2, 32], strides = [1, 1]} : vector<2x96xf32> to vector<2x32xf32>
    %260 = vector.extract_strided_slice %242 {offsets = [0, 64], sizes = [2, 32], strides = [1, 1]} : vector<2x96xf32> to vector<2x32xf32>
    %261 = vector.broadcast %3 : vector<1x32xf32> to vector<2x32xf32>
    %262 = arith.addf %260, %261 : vector<2x32xf32>
    %263 = arith.mulf %250, %262 : vector<2x32xf32>
    %264 = arith.addf %259, %263 : vector<2x32xf32>
    %265 = math.tanh %264 : vector<2x32xf32>
    %cst_78 = arith.constant 1.000000e+00 : f32
    %266 = vector.broadcast %cst_78 : f32 to vector<2x32xf32>
    %267 = arith.subf %266, %258 : vector<2x32xf32>
    %268 = arith.mulf %267, %265 : vector<2x32xf32>
    %269 = arith.mulf %258, %187 : vector<2x32xf32>
    %270 = arith.addf %268, %269 : vector<2x32xf32>
    %271 = arith.subf %238, %183 : vector<2x32xf32>
    %272 = vector.broadcast %203 : vector<2x1xf32> to vector<2x32xf32>
    %273 = arith.mulf %272, %271 : vector<2x32xf32>
    %274 = arith.addf %183, %273 : vector<2x32xf32>
    %275 = arith.subf %270, %187 : vector<2x32xf32>
    %276 = vector.broadcast %206 : vector<2x1xf32> to vector<2x32xf32>
    %277 = arith.mulf %276, %275 : vector<2x32xf32>
    %278 = arith.addf %187, %277 : vector<2x32xf32>
    %279 = vector.broadcast %203 : vector<2x1xf32> to vector<2x32xf32>
    %280 = arith.mulf %274, %279 : vector<2x32xf32>
    %281 = arith.index_cast %c2_i32 : i32 to index
    %c0_79 = arith.constant 0 : index
    %c0_80 = arith.constant 0 : index
    %282 = vector.load %arg16[%281, %c0_79, %c0_80] : memref<8x2x32xf32, #tpu.memory_space<vmem>>, vector<1x2x32xf32>
    %283 = vector.shape_cast %282 : vector<1x2x32xf32> to vector<2x32xf32>
    %284 = vector.shape_cast %280 : vector<2x32xf32> to vector<1x2x32xf32>
    tpu.vector_store %arg16[%281, %c0_79, %c0_80], %284 {strides = array<i32>} : memref<8x2x32xf32, #tpu.memory_space<vmem>>, vector<1x2x32xf32>,
    %285 = vector.broadcast %206 : vector<2x1xf32> to vector<2x32xf32>
    %286 = arith.mulf %278, %285 : vector<2x32xf32>
    %287 = arith.index_cast %200 : i32 to index
    %c0_81 = arith.constant 0 : index
    %c0_82 = arith.constant 0 : index
    %288 = vector.load %arg17[%287, %c0_81, %c0_82] : memref<8x2x32xf32, #tpu.memory_space<vmem>>, vector<1x2x32xf32>
    %289 = vector.shape_cast %288 : vector<1x2x32xf32> to vector<2x32xf32>
    %290 = vector.shape_cast %286 : vector<2x32xf32> to vector<1x2x32xf32>
    tpu.vector_store %arg17[%287, %c0_81, %c0_82], %290 {strides = array<i32>} : memref<8x2x32xf32, #tpu.memory_space<vmem>>, vector<1x2x32xf32>,
    %c3_i32 = arith.constant 3 : i32
    %c7_i32_83 = arith.constant 7 : i32
    %291 = arith.subi %c7_i32_83, %c3_i32 : i32
    %292 = arith.index_cast %c3_i32 : i32 to index
    %c0_84 = arith.constant 0 : index
    %c0_85 = arith.constant 0 : index
    %293 = vector.load %arg2[%292, %c0_84, %c0_85] : memref<8x2x1xf32, #tpu.memory_space<vmem>>, vector<1x2x1xf32>
    %294 = vector.shape_cast %293 : vector<1x2x1xf32> to vector<2x1xf32>
    %295 = arith.index_cast %291 : i32 to index
    %c0_86 = arith.constant 0 : index
    %c0_87 = arith.constant 0 : index
    %296 = vector.load %arg2[%295, %c0_86, %c0_87] : memref<8x2x1xf32, #tpu.memory_space<vmem>>, vector<1x2x1xf32>
    %297 = vector.shape_cast %296 : vector<1x2x1xf32> to vector<2x1xf32>
    %298 = arith.index_cast %c3_i32 : i32 to index
    %c0_88 = arith.constant 0 : index
    %c0_89 = arith.constant 0 : index
    %299 = vector.load %arg14[%298, %c0_88, %c0_89] : memref<8x2x96xf32, #tpu.memory_space<vmem>>, vector<1x2x96xf32>
    %300 = vector.shape_cast %299 : vector<1x2x96xf32> to vector<2x96xf32>
    %cst_90 = arith.constant dense<0.000000e+00> : vector<2x96xf32>
    %301 = tpu.matmul %274, %0, %cst_90 {dimension_numbers = #tpu.dot_dimension_numbers<[1], [0], [0], [1], [0, 0, 1, 1], [], []>} : vector<2x32xf32>, vector<32x96xf32>, vector<2x96xf32> -> vector<2x96xf32>
    %302 = vector.extract_strided_slice %300 {offsets = [0, 0], sizes = [2, 32], strides = [1, 1]} : vector<2x96xf32> to vector<2x32xf32>
    %303 = vector.extract_strided_slice %301 {offsets = [0, 0], sizes = [2, 32], strides = [1, 1]} : vector<2x96xf32> to vector<2x32xf32>
    %304 = arith.addf %302, %303 : vector<2x32xf32>
    %305 = arith.negf %304 : vector<2x32xf32>
    %306 = math.exp %305 : vector<2x32xf32>
    %cst_91 = arith.constant 1.000000e+00 : f32
    %307 = vector.broadcast %cst_91 : f32 to vector<2x32xf32>
    %308 = arith.addf %307, %306 : vector<2x32xf32>
    %309 = arith.divf %307, %308 : vector<2x32xf32>
    %310 = vector.extract_strided_slice %300 {offsets = [0, 32], sizes = [2, 32], strides = [1, 1]} : vector<2x96xf32> to vector<2x32xf32>
    %311 = vector.extract_strided_slice %301 {offsets = [0, 32], sizes = [2, 32], strides = [1, 1]} : vector<2x96xf32> to vector<2x32xf32>
    %312 = arith.addf %310, %311 : vector<2x32xf32>
    %313 = arith.negf %312 : vector<2x32xf32>
    %314 = math.exp %313 : vector<2x32xf32>
    %cst_92 = arith.constant 1.000000e+00 : f32
    %315 = vector.broadcast %cst_92 : f32 to vector<2x32xf32>
    %316 = arith.addf %315, %314 : vector<2x32xf32>
    %317 = arith.divf %315, %316 : vector<2x32xf32>
    %318 = vector.extract_strided_slice %300 {offsets = [0, 64], sizes = [2, 32], strides = [1, 1]} : vector<2x96xf32> to vector<2x32xf32>
    %319 = vector.extract_strided_slice %301 {offsets = [0, 64], sizes = [2, 32], strides = [1, 1]} : vector<2x96xf32> to vector<2x32xf32>
    %320 = vector.broadcast %2 : vector<1x32xf32> to vector<2x32xf32>
    %321 = arith.addf %319, %320 : vector<2x32xf32>
    %322 = arith.mulf %309, %321 : vector<2x32xf32>
    %323 = arith.addf %318, %322 : vector<2x32xf32>
    %324 = math.tanh %323 : vector<2x32xf32>
    %cst_93 = arith.constant 1.000000e+00 : f32
    %325 = vector.broadcast %cst_93 : f32 to vector<2x32xf32>
    %326 = arith.subf %325, %317 : vector<2x32xf32>
    %327 = arith.mulf %326, %324 : vector<2x32xf32>
    %328 = arith.mulf %317, %274 : vector<2x32xf32>
    %329 = arith.addf %327, %328 : vector<2x32xf32>
    %330 = arith.index_cast %291 : i32 to index
    %c0_94 = arith.constant 0 : index
    %c0_95 = arith.constant 0 : index
    %331 = vector.load %arg15[%330, %c0_94, %c0_95] : memref<8x2x96xf32, #tpu.memory_space<vmem>>, vector<1x2x96xf32>
    %332 = vector.shape_cast %331 : vector<1x2x96xf32> to vector<2x96xf32>
    %cst_96 = arith.constant dense<0.000000e+00> : vector<2x96xf32>
    %333 = tpu.matmul %278, %1, %cst_96 {dimension_numbers = #tpu.dot_dimension_numbers<[1], [0], [0], [1], [0, 0, 1, 1], [], []>} : vector<2x32xf32>, vector<32x96xf32>, vector<2x96xf32> -> vector<2x96xf32>
    %334 = vector.extract_strided_slice %332 {offsets = [0, 0], sizes = [2, 32], strides = [1, 1]} : vector<2x96xf32> to vector<2x32xf32>
    %335 = vector.extract_strided_slice %333 {offsets = [0, 0], sizes = [2, 32], strides = [1, 1]} : vector<2x96xf32> to vector<2x32xf32>
    %336 = arith.addf %334, %335 : vector<2x32xf32>
    %337 = arith.negf %336 : vector<2x32xf32>
    %338 = math.exp %337 : vector<2x32xf32>
    %cst_97 = arith.constant 1.000000e+00 : f32
    %339 = vector.broadcast %cst_97 : f32 to vector<2x32xf32>
    %340 = arith.addf %339, %338 : vector<2x32xf32>
    %341 = arith.divf %339, %340 : vector<2x32xf32>
    %342 = vector.extract_strided_slice %332 {offsets = [0, 32], sizes = [2, 32], strides = [1, 1]} : vector<2x96xf32> to vector<2x32xf32>
    %343 = vector.extract_strided_slice %333 {offsets = [0, 32], sizes = [2, 32], strides = [1, 1]} : vector<2x96xf32> to vector<2x32xf32>
    %344 = arith.addf %342, %343 : vector<2x32xf32>
    %345 = arith.negf %344 : vector<2x32xf32>
    %346 = math.exp %345 : vector<2x32xf32>
    %cst_98 = arith.constant 1.000000e+00 : f32
    %347 = vector.broadcast %cst_98 : f32 to vector<2x32xf32>
    %348 = arith.addf %347, %346 : vector<2x32xf32>
    %349 = arith.divf %347, %348 : vector<2x32xf32>
    %350 = vector.extract_strided_slice %332 {offsets = [0, 64], sizes = [2, 32], strides = [1, 1]} : vector<2x96xf32> to vector<2x32xf32>
    %351 = vector.extract_strided_slice %333 {offsets = [0, 64], sizes = [2, 32], strides = [1, 1]} : vector<2x96xf32> to vector<2x32xf32>
    %352 = vector.broadcast %3 : vector<1x32xf32> to vector<2x32xf32>
    %353 = arith.addf %351, %352 : vector<2x32xf32>
    %354 = arith.mulf %341, %353 : vector<2x32xf32>
    %355 = arith.addf %350, %354 : vector<2x32xf32>
    %356 = math.tanh %355 : vector<2x32xf32>
    %cst_99 = arith.constant 1.000000e+00 : f32
    %357 = vector.broadcast %cst_99 : f32 to vector<2x32xf32>
    %358 = arith.subf %357, %349 : vector<2x32xf32>
    %359 = arith.mulf %358, %356 : vector<2x32xf32>
    %360 = arith.mulf %349, %278 : vector<2x32xf32>
    %361 = arith.addf %359, %360 : vector<2x32xf32>
    %362 = arith.subf %329, %274 : vector<2x32xf32>
    %363 = vector.broadcast %294 : vector<2x1xf32> to vector<2x32xf32>
    %364 = arith.mulf %363, %362 : vector<2x32xf32>
    %365 = arith.addf %274, %364 : vector<2x32xf32>
    %366 = arith.subf %361, %278 : vector<2x32xf32>
    %367 = vector.broadcast %297 : vector<2x1xf32> to vector<2x32xf32>
    %368 = arith.mulf %367, %366 : vector<2x32xf32>
    %369 = arith.addf %278, %368 : vector<2x32xf32>
    %370 = vector.broadcast %294 : vector<2x1xf32> to vector<2x32xf32>
    %371 = arith.mulf %365, %370 : vector<2x32xf32>
    %372 = arith.index_cast %c3_i32 : i32 to index
    %c0_100 = arith.constant 0 : index
    %c0_101 = arith.constant 0 : index
    %373 = vector.load %arg16[%372, %c0_100, %c0_101] : memref<8x2x32xf32, #tpu.memory_space<vmem>>, vector<1x2x32xf32>
    %374 = vector.shape_cast %373 : vector<1x2x32xf32> to vector<2x32xf32>
    %375 = vector.shape_cast %371 : vector<2x32xf32> to vector<1x2x32xf32>
    tpu.vector_store %arg16[%372, %c0_100, %c0_101], %375 {strides = array<i32>} : memref<8x2x32xf32, #tpu.memory_space<vmem>>, vector<1x2x32xf32>,
    %376 = vector.broadcast %297 : vector<2x1xf32> to vector<2x32xf32>
    %377 = arith.mulf %369, %376 : vector<2x32xf32>
    %378 = arith.index_cast %291 : i32 to index
    %c0_102 = arith.constant 0 : index
    %c0_103 = arith.constant 0 : index
    %379 = vector.load %arg17[%378, %c0_102, %c0_103] : memref<8x2x32xf32, #tpu.memory_space<vmem>>, vector<1x2x32xf32>
    %380 = vector.shape_cast %379 : vector<1x2x32xf32> to vector<2x32xf32>
    %381 = vector.shape_cast %377 : vector<2x32xf32> to vector<1x2x32xf32>
    tpu.vector_store %arg17[%378, %c0_102, %c0_103], %381 {strides = array<i32>} : memref<8x2x32xf32, #tpu.memory_space<vmem>>, vector<1x2x32xf32>,
    %c4_i32 = arith.constant 4 : i32
    %c7_i32_104 = arith.constant 7 : i32
    %382 = arith.subi %c7_i32_104, %c4_i32 : i32
    %383 = arith.index_cast %c4_i32 : i32 to index
    %c0_105 = arith.constant 0 : index
    %c0_106 = arith.constant 0 : index
    %384 = vector.load %arg2[%383, %c0_105, %c0_106] : memref<8x2x1xf32, #tpu.memory_space<vmem>>, vector<1x2x1xf32>
    %385 = vector.shape_cast %384 : vector<1x2x1xf32> to vector<2x1xf32>
    %386 = arith.index_cast %382 : i32 to index
    %c0_107 = arith.constant 0 : index
    %c0_108 = arith.constant 0 : index
    %387 = vector.load %arg2[%386, %c0_107, %c0_108] : memref<8x2x1xf32, #tpu.memory_space<vmem>>, vector<1x2x1xf32>
    %388 = vector.shape_cast %387 : vector<1x2x1xf32> to vector<2x1xf32>
    %389 = arith.index_cast %c4_i32 : i32 to index
    %c0_109 = arith.constant 0 : index
    %c0_110 = arith.constant 0 : index
    %390 = vector.load %arg14[%389, %c0_109, %c0_110] : memref<8x2x96xf32, #tpu.memory_space<vmem>>, vector<1x2x96xf32>
    %391 = vector.shape_cast %390 : vector<1x2x96xf32> to vector<2x96xf32>
    %cst_111 = arith.constant dense<0.000000e+00> : vector<2x96xf32>
    %392 = tpu.matmul %365, %0, %cst_111 {dimension_numbers = #tpu.dot_dimension_numbers<[1], [0], [0], [1], [0, 0, 1, 1], [], []>} : vector<2x32xf32>, vector<32x96xf32>, vector<2x96xf32> -> vector<2x96xf32>
    %393 = vector.extract_strided_slice %391 {offsets = [0, 0], sizes = [2, 32], strides = [1, 1]} : vector<2x96xf32> to vector<2x32xf32>
    %394 = vector.extract_strided_slice %392 {offsets = [0, 0], sizes = [2, 32], strides = [1, 1]} : vector<2x96xf32> to vector<2x32xf32>
    %395 = arith.addf %393, %394 : vector<2x32xf32>
    %396 = arith.negf %395 : vector<2x32xf32>
    %397 = math.exp %396 : vector<2x32xf32>
    %cst_112 = arith.constant 1.000000e+00 : f32
    %398 = vector.broadcast %cst_112 : f32 to vector<2x32xf32>
    %399 = arith.addf %398, %397 : vector<2x32xf32>
    %400 = arith.divf %398, %399 : vector<2x32xf32>
    %401 = vector.extract_strided_slice %391 {offsets = [0, 32], sizes = [2, 32], strides = [1, 1]} : vector<2x96xf32> to vector<2x32xf32>
    %402 = vector.extract_strided_slice %392 {offsets = [0, 32], sizes = [2, 32], strides = [1, 1]} : vector<2x96xf32> to vector<2x32xf32>
    %403 = arith.addf %401, %402 : vector<2x32xf32>
    %404 = arith.negf %403 : vector<2x32xf32>
    %405 = math.exp %404 : vector<2x32xf32>
    %cst_113 = arith.constant 1.000000e+00 : f32
    %406 = vector.broadcast %cst_113 : f32 to vector<2x32xf32>
    %407 = arith.addf %406, %405 : vector<2x32xf32>
    %408 = arith.divf %406, %407 : vector<2x32xf32>
    %409 = vector.extract_strided_slice %391 {offsets = [0, 64], sizes = [2, 32], strides = [1, 1]} : vector<2x96xf32> to vector<2x32xf32>
    %410 = vector.extract_strided_slice %392 {offsets = [0, 64], sizes = [2, 32], strides = [1, 1]} : vector<2x96xf32> to vector<2x32xf32>
    %411 = vector.broadcast %2 : vector<1x32xf32> to vector<2x32xf32>
    %412 = arith.addf %410, %411 : vector<2x32xf32>
    %413 = arith.mulf %400, %412 : vector<2x32xf32>
    %414 = arith.addf %409, %413 : vector<2x32xf32>
    %415 = math.tanh %414 : vector<2x32xf32>
    %cst_114 = arith.constant 1.000000e+00 : f32
    %416 = vector.broadcast %cst_114 : f32 to vector<2x32xf32>
    %417 = arith.subf %416, %408 : vector<2x32xf32>
    %418 = arith.mulf %417, %415 : vector<2x32xf32>
    %419 = arith.mulf %408, %365 : vector<2x32xf32>
    %420 = arith.addf %418, %419 : vector<2x32xf32>
    %421 = arith.index_cast %382 : i32 to index
    %c0_115 = arith.constant 0 : index
    %c0_116 = arith.constant 0 : index
    %422 = vector.load %arg15[%421, %c0_115, %c0_116] : memref<8x2x96xf32, #tpu.memory_space<vmem>>, vector<1x2x96xf32>
    %423 = vector.shape_cast %422 : vector<1x2x96xf32> to vector<2x96xf32>
    %cst_117 = arith.constant dense<0.000000e+00> : vector<2x96xf32>
    %424 = tpu.matmul %369, %1, %cst_117 {dimension_numbers = #tpu.dot_dimension_numbers<[1], [0], [0], [1], [0, 0, 1, 1], [], []>} : vector<2x32xf32>, vector<32x96xf32>, vector<2x96xf32> -> vector<2x96xf32>
    %425 = vector.extract_strided_slice %423 {offsets = [0, 0], sizes = [2, 32], strides = [1, 1]} : vector<2x96xf32> to vector<2x32xf32>
    %426 = vector.extract_strided_slice %424 {offsets = [0, 0], sizes = [2, 32], strides = [1, 1]} : vector<2x96xf32> to vector<2x32xf32>
    %427 = arith.addf %425, %426 : vector<2x32xf32>
    %428 = arith.negf %427 : vector<2x32xf32>
    %429 = math.exp %428 : vector<2x32xf32>
    %cst_118 = arith.constant 1.000000e+00 : f32
    %430 = vector.broadcast %cst_118 : f32 to vector<2x32xf32>
    %431 = arith.addf %430, %429 : vector<2x32xf32>
    %432 = arith.divf %430, %431 : vector<2x32xf32>
    %433 = vector.extract_strided_slice %423 {offsets = [0, 32], sizes = [2, 32], strides = [1, 1]} : vector<2x96xf32> to vector<2x32xf32>
    %434 = vector.extract_strided_slice %424 {offsets = [0, 32], sizes = [2, 32], strides = [1, 1]} : vector<2x96xf32> to vector<2x32xf32>
    %435 = arith.addf %433, %434 : vector<2x32xf32>
    %436 = arith.negf %435 : vector<2x32xf32>
    %437 = math.exp %436 : vector<2x32xf32>
    %cst_119 = arith.constant 1.000000e+00 : f32
    %438 = vector.broadcast %cst_119 : f32 to vector<2x32xf32>
    %439 = arith.addf %438, %437 : vector<2x32xf32>
    %440 = arith.divf %438, %439 : vector<2x32xf32>
    %441 = vector.extract_strided_slice %423 {offsets = [0, 64], sizes = [2, 32], strides = [1, 1]} : vector<2x96xf32> to vector<2x32xf32>
    %442 = vector.extract_strided_slice %424 {offsets = [0, 64], sizes = [2, 32], strides = [1, 1]} : vector<2x96xf32> to vector<2x32xf32>
    %443 = vector.broadcast %3 : vector<1x32xf32> to vector<2x32xf32>
    %444 = arith.addf %442, %443 : vector<2x32xf32>
    %445 = arith.mulf %432, %444 : vector<2x32xf32>
    %446 = arith.addf %441, %445 : vector<2x32xf32>
    %447 = math.tanh %446 : vector<2x32xf32>
    %cst_120 = arith.constant 1.000000e+00 : f32
    %448 = vector.broadcast %cst_120 : f32 to vector<2x32xf32>
    %449 = arith.subf %448, %440 : vector<2x32xf32>
    %450 = arith.mulf %449, %447 : vector<2x32xf32>
    %451 = arith.mulf %440, %369 : vector<2x32xf32>
    %452 = arith.addf %450, %451 : vector<2x32xf32>
    %453 = arith.subf %420, %365 : vector<2x32xf32>
    %454 = vector.broadcast %385 : vector<2x1xf32> to vector<2x32xf32>
    %455 = arith.mulf %454, %453 : vector<2x32xf32>
    %456 = arith.addf %365, %455 : vector<2x32xf32>
    %457 = arith.subf %452, %369 : vector<2x32xf32>
    %458 = vector.broadcast %388 : vector<2x1xf32> to vector<2x32xf32>
    %459 = arith.mulf %458, %457 : vector<2x32xf32>
    %460 = arith.addf %369, %459 : vector<2x32xf32>
    %461 = vector.broadcast %385 : vector<2x1xf32> to vector<2x32xf32>
    %462 = arith.mulf %456, %461 : vector<2x32xf32>
    %463 = arith.index_cast %c4_i32 : i32 to index
    %c0_121 = arith.constant 0 : index
    %c0_122 = arith.constant 0 : index
    %464 = vector.load %arg16[%463, %c0_121, %c0_122] : memref<8x2x32xf32, #tpu.memory_space<vmem>>, vector<1x2x32xf32>
    %465 = vector.shape_cast %464 : vector<1x2x32xf32> to vector<2x32xf32>
    %466 = vector.shape_cast %462 : vector<2x32xf32> to vector<1x2x32xf32>
    tpu.vector_store %arg16[%463, %c0_121, %c0_122], %466 {strides = array<i32>} : memref<8x2x32xf32, #tpu.memory_space<vmem>>, vector<1x2x32xf32>,
    %467 = vector.broadcast %388 : vector<2x1xf32> to vector<2x32xf32>
    %468 = arith.mulf %460, %467 : vector<2x32xf32>
    %469 = arith.index_cast %382 : i32 to index
    %c0_123 = arith.constant 0 : index
    %c0_124 = arith.constant 0 : index
    %470 = vector.load %arg17[%469, %c0_123, %c0_124] : memref<8x2x32xf32, #tpu.memory_space<vmem>>, vector<1x2x32xf32>
    %471 = vector.shape_cast %470 : vector<1x2x32xf32> to vector<2x32xf32>
    %472 = vector.shape_cast %468 : vector<2x32xf32> to vector<1x2x32xf32>
    tpu.vector_store %arg17[%469, %c0_123, %c0_124], %472 {strides = array<i32>} : memref<8x2x32xf32, #tpu.memory_space<vmem>>, vector<1x2x32xf32>,
    %c5_i32 = arith.constant 5 : i32
    %c7_i32_125 = arith.constant 7 : i32
    %473 = arith.subi %c7_i32_125, %c5_i32 : i32
    %474 = arith.index_cast %c5_i32 : i32 to index
    %c0_126 = arith.constant 0 : index
    %c0_127 = arith.constant 0 : index
    %475 = vector.load %arg2[%474, %c0_126, %c0_127] : memref<8x2x1xf32, #tpu.memory_space<vmem>>, vector<1x2x1xf32>
    %476 = vector.shape_cast %475 : vector<1x2x1xf32> to vector<2x1xf32>
    %477 = arith.index_cast %473 : i32 to index
    %c0_128 = arith.constant 0 : index
    %c0_129 = arith.constant 0 : index
    %478 = vector.load %arg2[%477, %c0_128, %c0_129] : memref<8x2x1xf32, #tpu.memory_space<vmem>>, vector<1x2x1xf32>
    %479 = vector.shape_cast %478 : vector<1x2x1xf32> to vector<2x1xf32>
    %480 = arith.index_cast %c5_i32 : i32 to index
    %c0_130 = arith.constant 0 : index
    %c0_131 = arith.constant 0 : index
    %481 = vector.load %arg14[%480, %c0_130, %c0_131] : memref<8x2x96xf32, #tpu.memory_space<vmem>>, vector<1x2x96xf32>
    %482 = vector.shape_cast %481 : vector<1x2x96xf32> to vector<2x96xf32>
    %cst_132 = arith.constant dense<0.000000e+00> : vector<2x96xf32>
    %483 = tpu.matmul %456, %0, %cst_132 {dimension_numbers = #tpu.dot_dimension_numbers<[1], [0], [0], [1], [0, 0, 1, 1], [], []>} : vector<2x32xf32>, vector<32x96xf32>, vector<2x96xf32> -> vector<2x96xf32>
    %484 = vector.extract_strided_slice %482 {offsets = [0, 0], sizes = [2, 32], strides = [1, 1]} : vector<2x96xf32> to vector<2x32xf32>
    %485 = vector.extract_strided_slice %483 {offsets = [0, 0], sizes = [2, 32], strides = [1, 1]} : vector<2x96xf32> to vector<2x32xf32>
    %486 = arith.addf %484, %485 : vector<2x32xf32>
    %487 = arith.negf %486 : vector<2x32xf32>
    %488 = math.exp %487 : vector<2x32xf32>
    %cst_133 = arith.constant 1.000000e+00 : f32
    %489 = vector.broadcast %cst_133 : f32 to vector<2x32xf32>
    %490 = arith.addf %489, %488 : vector<2x32xf32>
    %491 = arith.divf %489, %490 : vector<2x32xf32>
    %492 = vector.extract_strided_slice %482 {offsets = [0, 32], sizes = [2, 32], strides = [1, 1]} : vector<2x96xf32> to vector<2x32xf32>
    %493 = vector.extract_strided_slice %483 {offsets = [0, 32], sizes = [2, 32], strides = [1, 1]} : vector<2x96xf32> to vector<2x32xf32>
    %494 = arith.addf %492, %493 : vector<2x32xf32>
    %495 = arith.negf %494 : vector<2x32xf32>
    %496 = math.exp %495 : vector<2x32xf32>
    %cst_134 = arith.constant 1.000000e+00 : f32
    %497 = vector.broadcast %cst_134 : f32 to vector<2x32xf32>
    %498 = arith.addf %497, %496 : vector<2x32xf32>
    %499 = arith.divf %497, %498 : vector<2x32xf32>
    %500 = vector.extract_strided_slice %482 {offsets = [0, 64], sizes = [2, 32], strides = [1, 1]} : vector<2x96xf32> to vector<2x32xf32>
    %501 = vector.extract_strided_slice %483 {offsets = [0, 64], sizes = [2, 32], strides = [1, 1]} : vector<2x96xf32> to vector<2x32xf32>
    %502 = vector.broadcast %2 : vector<1x32xf32> to vector<2x32xf32>
    %503 = arith.addf %501, %502 : vector<2x32xf32>
    %504 = arith.mulf %491, %503 : vector<2x32xf32>
    %505 = arith.addf %500, %504 : vector<2x32xf32>
    %506 = math.tanh %505 : vector<2x32xf32>
    %cst_135 = arith.constant 1.000000e+00 : f32
    %507 = vector.broadcast %cst_135 : f32 to vector<2x32xf32>
    %508 = arith.subf %507, %499 : vector<2x32xf32>
    %509 = arith.mulf %508, %506 : vector<2x32xf32>
    %510 = arith.mulf %499, %456 : vector<2x32xf32>
    %511 = arith.addf %509, %510 : vector<2x32xf32>
    %512 = arith.index_cast %473 : i32 to index
    %c0_136 = arith.constant 0 : index
    %c0_137 = arith.constant 0 : index
    %513 = vector.load %arg15[%512, %c0_136, %c0_137] : memref<8x2x96xf32, #tpu.memory_space<vmem>>, vector<1x2x96xf32>
    %514 = vector.shape_cast %513 : vector<1x2x96xf32> to vector<2x96xf32>
    %cst_138 = arith.constant dense<0.000000e+00> : vector<2x96xf32>
    %515 = tpu.matmul %460, %1, %cst_138 {dimension_numbers = #tpu.dot_dimension_numbers<[1], [0], [0], [1], [0, 0, 1, 1], [], []>} : vector<2x32xf32>, vector<32x96xf32>, vector<2x96xf32> -> vector<2x96xf32>
    %516 = vector.extract_strided_slice %514 {offsets = [0, 0], sizes = [2, 32], strides = [1, 1]} : vector<2x96xf32> to vector<2x32xf32>
    %517 = vector.extract_strided_slice %515 {offsets = [0, 0], sizes = [2, 32], strides = [1, 1]} : vector<2x96xf32> to vector<2x32xf32>
    %518 = arith.addf %516, %517 : vector<2x32xf32>
    %519 = arith.negf %518 : vector<2x32xf32>
    %520 = math.exp %519 : vector<2x32xf32>
    %cst_139 = arith.constant 1.000000e+00 : f32
    %521 = vector.broadcast %cst_139 : f32 to vector<2x32xf32>
    %522 = arith.addf %521, %520 : vector<2x32xf32>
    %523 = arith.divf %521, %522 : vector<2x32xf32>
    %524 = vector.extract_strided_slice %514 {offsets = [0, 32], sizes = [2, 32], strides = [1, 1]} : vector<2x96xf32> to vector<2x32xf32>
    %525 = vector.extract_strided_slice %515 {offsets = [0, 32], sizes = [2, 32], strides = [1, 1]} : vector<2x96xf32> to vector<2x32xf32>
    %526 = arith.addf %524, %525 : vector<2x32xf32>
    %527 = arith.negf %526 : vector<2x32xf32>
    %528 = math.exp %527 : vector<2x32xf32>
    %cst_140 = arith.constant 1.000000e+00 : f32
    %529 = vector.broadcast %cst_140 : f32 to vector<2x32xf32>
    %530 = arith.addf %529, %528 : vector<2x32xf32>
    %531 = arith.divf %529, %530 : vector<2x32xf32>
    %532 = vector.extract_strided_slice %514 {offsets = [0, 64], sizes = [2, 32], strides = [1, 1]} : vector<2x96xf32> to vector<2x32xf32>
    %533 = vector.extract_strided_slice %515 {offsets = [0, 64], sizes = [2, 32], strides = [1, 1]} : vector<2x96xf32> to vector<2x32xf32>
    %534 = vector.broadcast %3 : vector<1x32xf32> to vector<2x32xf32>
    %535 = arith.addf %533, %534 : vector<2x32xf32>
    %536 = arith.mulf %523, %535 : vector<2x32xf32>
    %537 = arith.addf %532, %536 : vector<2x32xf32>
    %538 = math.tanh %537 : vector<2x32xf32>
    %cst_141 = arith.constant 1.000000e+00 : f32
    %539 = vector.broadcast %cst_141 : f32 to vector<2x32xf32>
    %540 = arith.subf %539, %531 : vector<2x32xf32>
    %541 = arith.mulf %540, %538 : vector<2x32xf32>
    %542 = arith.mulf %531, %460 : vector<2x32xf32>
    %543 = arith.addf %541, %542 : vector<2x32xf32>
    %544 = arith.subf %511, %456 : vector<2x32xf32>
    %545 = vector.broadcast %476 : vector<2x1xf32> to vector<2x32xf32>
    %546 = arith.mulf %545, %544 : vector<2x32xf32>
    %547 = arith.addf %456, %546 : vector<2x32xf32>
    %548 = arith.subf %543, %460 : vector<2x32xf32>
    %549 = vector.broadcast %479 : vector<2x1xf32> to vector<2x32xf32>
    %550 = arith.mulf %549, %548 : vector<2x32xf32>
    %551 = arith.addf %460, %550 : vector<2x32xf32>
    %552 = vector.broadcast %476 : vector<2x1xf32> to vector<2x32xf32>
    %553 = arith.mulf %547, %552 : vector<2x32xf32>
    %554 = arith.index_cast %c5_i32 : i32 to index
    %c0_142 = arith.constant 0 : index
    %c0_143 = arith.constant 0 : index
    %555 = vector.load %arg16[%554, %c0_142, %c0_143] : memref<8x2x32xf32, #tpu.memory_space<vmem>>, vector<1x2x32xf32>
    %556 = vector.shape_cast %555 : vector<1x2x32xf32> to vector<2x32xf32>
    %557 = vector.shape_cast %553 : vector<2x32xf32> to vector<1x2x32xf32>
    tpu.vector_store %arg16[%554, %c0_142, %c0_143], %557 {strides = array<i32>} : memref<8x2x32xf32, #tpu.memory_space<vmem>>, vector<1x2x32xf32>,
    %558 = vector.broadcast %479 : vector<2x1xf32> to vector<2x32xf32>
    %559 = arith.mulf %551, %558 : vector<2x32xf32>
    %560 = arith.index_cast %473 : i32 to index
    %c0_144 = arith.constant 0 : index
    %c0_145 = arith.constant 0 : index
    %561 = vector.load %arg17[%560, %c0_144, %c0_145] : memref<8x2x32xf32, #tpu.memory_space<vmem>>, vector<1x2x32xf32>
    %562 = vector.shape_cast %561 : vector<1x2x32xf32> to vector<2x32xf32>
    %563 = vector.shape_cast %559 : vector<2x32xf32> to vector<1x2x32xf32>
    tpu.vector_store %arg17[%560, %c0_144, %c0_145], %563 {strides = array<i32>} : memref<8x2x32xf32, #tpu.memory_space<vmem>>, vector<1x2x32xf32>,
    %c6_i32 = arith.constant 6 : i32
    %c7_i32_146 = arith.constant 7 : i32
    %564 = arith.subi %c7_i32_146, %c6_i32 : i32
    %565 = arith.index_cast %c6_i32 : i32 to index
    %c0_147 = arith.constant 0 : index
    %c0_148 = arith.constant 0 : index
    %566 = vector.load %arg2[%565, %c0_147, %c0_148] : memref<8x2x1xf32, #tpu.memory_space<vmem>>, vector<1x2x1xf32>
    %567 = vector.shape_cast %566 : vector<1x2x1xf32> to vector<2x1xf32>
    %568 = arith.index_cast %564 : i32 to index
    %c0_149 = arith.constant 0 : index
    %c0_150 = arith.constant 0 : index
    %569 = vector.load %arg2[%568, %c0_149, %c0_150] : memref<8x2x1xf32, #tpu.memory_space<vmem>>, vector<1x2x1xf32>
    %570 = vector.shape_cast %569 : vector<1x2x1xf32> to vector<2x1xf32>
    %571 = arith.index_cast %c6_i32 : i32 to index
    %c0_151 = arith.constant 0 : index
    %c0_152 = arith.constant 0 : index
    %572 = vector.load %arg14[%571, %c0_151, %c0_152] : memref<8x2x96xf32, #tpu.memory_space<vmem>>, vector<1x2x96xf32>
    %573 = vector.shape_cast %572 : vector<1x2x96xf32> to vector<2x96xf32>
    %cst_153 = arith.constant dense<0.000000e+00> : vector<2x96xf32>
    %574 = tpu.matmul %547, %0, %cst_153 {dimension_numbers = #tpu.dot_dimension_numbers<[1], [0], [0], [1], [0, 0, 1, 1], [], []>} : vector<2x32xf32>, vector<32x96xf32>, vector<2x96xf32> -> vector<2x96xf32>
    %575 = vector.extract_strided_slice %573 {offsets = [0, 0], sizes = [2, 32], strides = [1, 1]} : vector<2x96xf32> to vector<2x32xf32>
    %576 = vector.extract_strided_slice %574 {offsets = [0, 0], sizes = [2, 32], strides = [1, 1]} : vector<2x96xf32> to vector<2x32xf32>
    %577 = arith.addf %575, %576 : vector<2x32xf32>
    %578 = arith.negf %577 : vector<2x32xf32>
    %579 = math.exp %578 : vector<2x32xf32>
    %cst_154 = arith.constant 1.000000e+00 : f32
    %580 = vector.broadcast %cst_154 : f32 to vector<2x32xf32>
    %581 = arith.addf %580, %579 : vector<2x32xf32>
    %582 = arith.divf %580, %581 : vector<2x32xf32>
    %583 = vector.extract_strided_slice %573 {offsets = [0, 32], sizes = [2, 32], strides = [1, 1]} : vector<2x96xf32> to vector<2x32xf32>
    %584 = vector.extract_strided_slice %574 {offsets = [0, 32], sizes = [2, 32], strides = [1, 1]} : vector<2x96xf32> to vector<2x32xf32>
    %585 = arith.addf %583, %584 : vector<2x32xf32>
    %586 = arith.negf %585 : vector<2x32xf32>
    %587 = math.exp %586 : vector<2x32xf32>
    %cst_155 = arith.constant 1.000000e+00 : f32
    %588 = vector.broadcast %cst_155 : f32 to vector<2x32xf32>
    %589 = arith.addf %588, %587 : vector<2x32xf32>
    %590 = arith.divf %588, %589 : vector<2x32xf32>
    %591 = vector.extract_strided_slice %573 {offsets = [0, 64], sizes = [2, 32], strides = [1, 1]} : vector<2x96xf32> to vector<2x32xf32>
    %592 = vector.extract_strided_slice %574 {offsets = [0, 64], sizes = [2, 32], strides = [1, 1]} : vector<2x96xf32> to vector<2x32xf32>
    %593 = vector.broadcast %2 : vector<1x32xf32> to vector<2x32xf32>
    %594 = arith.addf %592, %593 : vector<2x32xf32>
    %595 = arith.mulf %582, %594 : vector<2x32xf32>
    %596 = arith.addf %591, %595 : vector<2x32xf32>
    %597 = math.tanh %596 : vector<2x32xf32>
    %cst_156 = arith.constant 1.000000e+00 : f32
    %598 = vector.broadcast %cst_156 : f32 to vector<2x32xf32>
    %599 = arith.subf %598, %590 : vector<2x32xf32>
    %600 = arith.mulf %599, %597 : vector<2x32xf32>
    %601 = arith.mulf %590, %547 : vector<2x32xf32>
    %602 = arith.addf %600, %601 : vector<2x32xf32>
    %603 = arith.index_cast %564 : i32 to index
    %c0_157 = arith.constant 0 : index
    %c0_158 = arith.constant 0 : index
    %604 = vector.load %arg15[%603, %c0_157, %c0_158] : memref<8x2x96xf32, #tpu.memory_space<vmem>>, vector<1x2x96xf32>
    %605 = vector.shape_cast %604 : vector<1x2x96xf32> to vector<2x96xf32>
    %cst_159 = arith.constant dense<0.000000e+00> : vector<2x96xf32>
    %606 = tpu.matmul %551, %1, %cst_159 {dimension_numbers = #tpu.dot_dimension_numbers<[1], [0], [0], [1], [0, 0, 1, 1], [], []>} : vector<2x32xf32>, vector<32x96xf32>, vector<2x96xf32> -> vector<2x96xf32>
    %607 = vector.extract_strided_slice %605 {offsets = [0, 0], sizes = [2, 32], strides = [1, 1]} : vector<2x96xf32> to vector<2x32xf32>
    %608 = vector.extract_strided_slice %606 {offsets = [0, 0], sizes = [2, 32], strides = [1, 1]} : vector<2x96xf32> to vector<2x32xf32>
    %609 = arith.addf %607, %608 : vector<2x32xf32>
    %610 = arith.negf %609 : vector<2x32xf32>
    %611 = math.exp %610 : vector<2x32xf32>
    %cst_160 = arith.constant 1.000000e+00 : f32
    %612 = vector.broadcast %cst_160 : f32 to vector<2x32xf32>
    %613 = arith.addf %612, %611 : vector<2x32xf32>
    %614 = arith.divf %612, %613 : vector<2x32xf32>
    %615 = vector.extract_strided_slice %605 {offsets = [0, 32], sizes = [2, 32], strides = [1, 1]} : vector<2x96xf32> to vector<2x32xf32>
    %616 = vector.extract_strided_slice %606 {offsets = [0, 32], sizes = [2, 32], strides = [1, 1]} : vector<2x96xf32> to vector<2x32xf32>
    %617 = arith.addf %615, %616 : vector<2x32xf32>
    %618 = arith.negf %617 : vector<2x32xf32>
    %619 = math.exp %618 : vector<2x32xf32>
    %cst_161 = arith.constant 1.000000e+00 : f32
    %620 = vector.broadcast %cst_161 : f32 to vector<2x32xf32>
    %621 = arith.addf %620, %619 : vector<2x32xf32>
    %622 = arith.divf %620, %621 : vector<2x32xf32>
    %623 = vector.extract_strided_slice %605 {offsets = [0, 64], sizes = [2, 32], strides = [1, 1]} : vector<2x96xf32> to vector<2x32xf32>
    %624 = vector.extract_strided_slice %606 {offsets = [0, 64], sizes = [2, 32], strides = [1, 1]} : vector<2x96xf32> to vector<2x32xf32>
    %625 = vector.broadcast %3 : vector<1x32xf32> to vector<2x32xf32>
    %626 = arith.addf %624, %625 : vector<2x32xf32>
    %627 = arith.mulf %614, %626 : vector<2x32xf32>
    %628 = arith.addf %623, %627 : vector<2x32xf32>
    %629 = math.tanh %628 : vector<2x32xf32>
    %cst_162 = arith.constant 1.000000e+00 : f32
    %630 = vector.broadcast %cst_162 : f32 to vector<2x32xf32>
    %631 = arith.subf %630, %622 : vector<2x32xf32>
    %632 = arith.mulf %631, %629 : vector<2x32xf32>
    %633 = arith.mulf %622, %551 : vector<2x32xf32>
    %634 = arith.addf %632, %633 : vector<2x32xf32>
    %635 = arith.subf %602, %547 : vector<2x32xf32>
    %636 = vector.broadcast %567 : vector<2x1xf32> to vector<2x32xf32>
    %637 = arith.mulf %636, %635 : vector<2x32xf32>
    %638 = arith.addf %547, %637 : vector<2x32xf32>
    %639 = arith.subf %634, %551 : vector<2x32xf32>
    %640 = vector.broadcast %570 : vector<2x1xf32> to vector<2x32xf32>
    %641 = arith.mulf %640, %639 : vector<2x32xf32>
    %642 = arith.addf %551, %641 : vector<2x32xf32>
    %643 = vector.broadcast %567 : vector<2x1xf32> to vector<2x32xf32>
    %644 = arith.mulf %638, %643 : vector<2x32xf32>
    %645 = arith.index_cast %c6_i32 : i32 to index
    %c0_163 = arith.constant 0 : index
    %c0_164 = arith.constant 0 : index
    %646 = vector.load %arg16[%645, %c0_163, %c0_164] : memref<8x2x32xf32, #tpu.memory_space<vmem>>, vector<1x2x32xf32>
    %647 = vector.shape_cast %646 : vector<1x2x32xf32> to vector<2x32xf32>
    %648 = vector.shape_cast %644 : vector<2x32xf32> to vector<1x2x32xf32>
    tpu.vector_store %arg16[%645, %c0_163, %c0_164], %648 {strides = array<i32>} : memref<8x2x32xf32, #tpu.memory_space<vmem>>, vector<1x2x32xf32>,
    %649 = vector.broadcast %570 : vector<2x1xf32> to vector<2x32xf32>
    %650 = arith.mulf %642, %649 : vector<2x32xf32>
    %651 = arith.index_cast %564 : i32 to index
    %c0_165 = arith.constant 0 : index
    %c0_166 = arith.constant 0 : index
    %652 = vector.load %arg17[%651, %c0_165, %c0_166] : memref<8x2x32xf32, #tpu.memory_space<vmem>>, vector<1x2x32xf32>
    %653 = vector.shape_cast %652 : vector<1x2x32xf32> to vector<2x32xf32>
    %654 = vector.shape_cast %650 : vector<2x32xf32> to vector<1x2x32xf32>
    tpu.vector_store %arg17[%651, %c0_165, %c0_166], %654 {strides = array<i32>} : memref<8x2x32xf32, #tpu.memory_space<vmem>>, vector<1x2x32xf32>,
    %c7_i32_167 = arith.constant 7 : i32
    %c7_i32_168 = arith.constant 7 : i32
    %655 = arith.subi %c7_i32_168, %c7_i32_167 : i32
    %656 = arith.index_cast %c7_i32_167 : i32 to index
    %c0_169 = arith.constant 0 : index
    %c0_170 = arith.constant 0 : index
    %657 = vector.load %arg2[%656, %c0_169, %c0_170] : memref<8x2x1xf32, #tpu.memory_space<vmem>>, vector<1x2x1xf32>
    %658 = vector.shape_cast %657 : vector<1x2x1xf32> to vector<2x1xf32>
    %659 = arith.index_cast %655 : i32 to index
    %c0_171 = arith.constant 0 : index
    %c0_172 = arith.constant 0 : index
    %660 = vector.load %arg2[%659, %c0_171, %c0_172] : memref<8x2x1xf32, #tpu.memory_space<vmem>>, vector<1x2x1xf32>
    %661 = vector.shape_cast %660 : vector<1x2x1xf32> to vector<2x1xf32>
    %662 = arith.index_cast %c7_i32_167 : i32 to index
    %c0_173 = arith.constant 0 : index
    %c0_174 = arith.constant 0 : index
    %663 = vector.load %arg14[%662, %c0_173, %c0_174] : memref<8x2x96xf32, #tpu.memory_space<vmem>>, vector<1x2x96xf32>
    %664 = vector.shape_cast %663 : vector<1x2x96xf32> to vector<2x96xf32>
    %cst_175 = arith.constant dense<0.000000e+00> : vector<2x96xf32>
    %665 = tpu.matmul %638, %0, %cst_175 {dimension_numbers = #tpu.dot_dimension_numbers<[1], [0], [0], [1], [0, 0, 1, 1], [], []>} : vector<2x32xf32>, vector<32x96xf32>, vector<2x96xf32> -> vector<2x96xf32>
    %666 = vector.extract_strided_slice %664 {offsets = [0, 0], sizes = [2, 32], strides = [1, 1]} : vector<2x96xf32> to vector<2x32xf32>
    %667 = vector.extract_strided_slice %665 {offsets = [0, 0], sizes = [2, 32], strides = [1, 1]} : vector<2x96xf32> to vector<2x32xf32>
    %668 = arith.addf %666, %667 : vector<2x32xf32>
    %669 = arith.negf %668 : vector<2x32xf32>
    %670 = math.exp %669 : vector<2x32xf32>
    %cst_176 = arith.constant 1.000000e+00 : f32
    %671 = vector.broadcast %cst_176 : f32 to vector<2x32xf32>
    %672 = arith.addf %671, %670 : vector<2x32xf32>
    %673 = arith.divf %671, %672 : vector<2x32xf32>
    %674 = vector.extract_strided_slice %664 {offsets = [0, 32], sizes = [2, 32], strides = [1, 1]} : vector<2x96xf32> to vector<2x32xf32>
    %675 = vector.extract_strided_slice %665 {offsets = [0, 32], sizes = [2, 32], strides = [1, 1]} : vector<2x96xf32> to vector<2x32xf32>
    %676 = arith.addf %674, %675 : vector<2x32xf32>
    %677 = arith.negf %676 : vector<2x32xf32>
    %678 = math.exp %677 : vector<2x32xf32>
    %cst_177 = arith.constant 1.000000e+00 : f32
    %679 = vector.broadcast %cst_177 : f32 to vector<2x32xf32>
    %680 = arith.addf %679, %678 : vector<2x32xf32>
    %681 = arith.divf %679, %680 : vector<2x32xf32>
    %682 = vector.extract_strided_slice %664 {offsets = [0, 64], sizes = [2, 32], strides = [1, 1]} : vector<2x96xf32> to vector<2x32xf32>
    %683 = vector.extract_strided_slice %665 {offsets = [0, 64], sizes = [2, 32], strides = [1, 1]} : vector<2x96xf32> to vector<2x32xf32>
    %684 = vector.broadcast %2 : vector<1x32xf32> to vector<2x32xf32>
    %685 = arith.addf %683, %684 : vector<2x32xf32>
    %686 = arith.mulf %673, %685 : vector<2x32xf32>
    %687 = arith.addf %682, %686 : vector<2x32xf32>
    %688 = math.tanh %687 : vector<2x32xf32>
    %cst_178 = arith.constant 1.000000e+00 : f32
    %689 = vector.broadcast %cst_178 : f32 to vector<2x32xf32>
    %690 = arith.subf %689, %681 : vector<2x32xf32>
    %691 = arith.mulf %690, %688 : vector<2x32xf32>
    %692 = arith.mulf %681, %638 : vector<2x32xf32>
    %693 = arith.addf %691, %692 : vector<2x32xf32>
    %694 = arith.index_cast %655 : i32 to index
    %c0_179 = arith.constant 0 : index
    %c0_180 = arith.constant 0 : index
    %695 = vector.load %arg15[%694, %c0_179, %c0_180] : memref<8x2x96xf32, #tpu.memory_space<vmem>>, vector<1x2x96xf32>
    %696 = vector.shape_cast %695 : vector<1x2x96xf32> to vector<2x96xf32>
    %cst_181 = arith.constant dense<0.000000e+00> : vector<2x96xf32>
    %697 = tpu.matmul %642, %1, %cst_181 {dimension_numbers = #tpu.dot_dimension_numbers<[1], [0], [0], [1], [0, 0, 1, 1], [], []>} : vector<2x32xf32>, vector<32x96xf32>, vector<2x96xf32> -> vector<2x96xf32>
    %698 = vector.extract_strided_slice %696 {offsets = [0, 0], sizes = [2, 32], strides = [1, 1]} : vector<2x96xf32> to vector<2x32xf32>
    %699 = vector.extract_strided_slice %697 {offsets = [0, 0], sizes = [2, 32], strides = [1, 1]} : vector<2x96xf32> to vector<2x32xf32>
    %700 = arith.addf %698, %699 : vector<2x32xf32>
    %701 = arith.negf %700 : vector<2x32xf32>
    %702 = math.exp %701 : vector<2x32xf32>
    %cst_182 = arith.constant 1.000000e+00 : f32
    %703 = vector.broadcast %cst_182 : f32 to vector<2x32xf32>
    %704 = arith.addf %703, %702 : vector<2x32xf32>
    %705 = arith.divf %703, %704 : vector<2x32xf32>
    %706 = vector.extract_strided_slice %696 {offsets = [0, 32], sizes = [2, 32], strides = [1, 1]} : vector<2x96xf32> to vector<2x32xf32>
    %707 = vector.extract_strided_slice %697 {offsets = [0, 32], sizes = [2, 32], strides = [1, 1]} : vector<2x96xf32> to vector<2x32xf32>
    %708 = arith.addf %706, %707 : vector<2x32xf32>
    %709 = arith.negf %708 : vector<2x32xf32>
    %710 = math.exp %709 : vector<2x32xf32>
    %cst_183 = arith.constant 1.000000e+00 : f32
    %711 = vector.broadcast %cst_183 : f32 to vector<2x32xf32>
    %712 = arith.addf %711, %710 : vector<2x32xf32>
    %713 = arith.divf %711, %712 : vector<2x32xf32>
    %714 = vector.extract_strided_slice %696 {offsets = [0, 64], sizes = [2, 32], strides = [1, 1]} : vector<2x96xf32> to vector<2x32xf32>
    %715 = vector.extract_strided_slice %697 {offsets = [0, 64], sizes = [2, 32], strides = [1, 1]} : vector<2x96xf32> to vector<2x32xf32>
    %716 = vector.broadcast %3 : vector<1x32xf32> to vector<2x32xf32>
    %717 = arith.addf %715, %716 : vector<2x32xf32>
    %718 = arith.mulf %705, %717 : vector<2x32xf32>
    %719 = arith.addf %714, %718 : vector<2x32xf32>
    %720 = math.tanh %719 : vector<2x32xf32>
    %cst_184 = arith.constant 1.000000e+00 : f32
    %721 = vector.broadcast %cst_184 : f32 to vector<2x32xf32>
    %722 = arith.subf %721, %713 : vector<2x32xf32>
    %723 = arith.mulf %722, %720 : vector<2x32xf32>
    %724 = arith.mulf %713, %642 : vector<2x32xf32>
    %725 = arith.addf %723, %724 : vector<2x32xf32>
    %726 = arith.subf %693, %638 : vector<2x32xf32>
    %727 = vector.broadcast %658 : vector<2x1xf32> to vector<2x32xf32>
    %728 = arith.mulf %727, %726 : vector<2x32xf32>
    %729 = arith.addf %638, %728 : vector<2x32xf32>
    %730 = arith.subf %725, %642 : vector<2x32xf32>
    %731 = vector.broadcast %661 : vector<2x1xf32> to vector<2x32xf32>
    %732 = arith.mulf %731, %730 : vector<2x32xf32>
    %733 = arith.addf %642, %732 : vector<2x32xf32>
    %734 = vector.broadcast %658 : vector<2x1xf32> to vector<2x32xf32>
    %735 = arith.mulf %729, %734 : vector<2x32xf32>
    %736 = arith.index_cast %c7_i32_167 : i32 to index
    %c0_185 = arith.constant 0 : index
    %c0_186 = arith.constant 0 : index
    %737 = vector.load %arg16[%736, %c0_185, %c0_186] : memref<8x2x32xf32, #tpu.memory_space<vmem>>, vector<1x2x32xf32>
    %738 = vector.shape_cast %737 : vector<1x2x32xf32> to vector<2x32xf32>
    %739 = vector.shape_cast %735 : vector<2x32xf32> to vector<1x2x32xf32>
    tpu.vector_store %arg16[%736, %c0_185, %c0_186], %739 {strides = array<i32>} : memref<8x2x32xf32, #tpu.memory_space<vmem>>, vector<1x2x32xf32>,
    %740 = vector.broadcast %661 : vector<2x1xf32> to vector<2x32xf32>
    %741 = arith.mulf %733, %740 : vector<2x32xf32>
    %742 = arith.index_cast %655 : i32 to index
    %c0_187 = arith.constant 0 : index
    %c0_188 = arith.constant 0 : index
    %743 = vector.load %arg17[%742, %c0_187, %c0_188] : memref<8x2x32xf32, #tpu.memory_space<vmem>>, vector<1x2x32xf32>
    %744 = vector.shape_cast %743 : vector<1x2x32xf32> to vector<2x32xf32>
    %745 = vector.shape_cast %741 : vector<2x32xf32> to vector<1x2x32xf32>
    tpu.vector_store %arg17[%742, %c0_187, %c0_188], %745 {strides = array<i32>} : memref<8x2x32xf32, #tpu.memory_space<vmem>>, vector<1x2x32xf32>,
    %c8_i32 = arith.constant 8 : i32
    %c0_189 = arith.constant 0 : index
    %c0_190 = arith.constant 0 : index
    %c0_191 = arith.constant 0 : index
    %746 = vector.load %arg16[%c0_189, %c0_190, %c0_191] : memref<8x2x32xf32, #tpu.memory_space<vmem>>, vector<8x2x32xf32>
    %c0_192 = arith.constant 0 : index
    %c0_193 = arith.constant 0 : index
    %c0_194 = arith.constant 0 : index
    %747 = vector.load %arg17[%c0_192, %c0_193, %c0_194] : memref<8x2x32xf32, #tpu.memory_space<vmem>>, vector<8x2x32xf32>
    %748 = tpu.concatenate %746, %747 in 2 : vector<8x2x32xf32>, vector<8x2x32xf32> -> vector<8x2x64xf32>
    %749 = vector.shape_cast %748 : vector<8x2x64xf32> to vector<16x64xf32>
    %c0_195 = arith.constant 0 : index
    %c0_196 = arith.constant 0 : index
    %750 = vector.load %arg9[%c0_195, %c0_196] : memref<64x32xf32, #tpu.memory_space<vmem>>, vector<64x32xf32>
    %cst_197 = arith.constant dense<0.000000e+00> : vector<16x32xf32>
    %751 = tpu.matmul %749, %750, %cst_197 {dimension_numbers = #tpu.dot_dimension_numbers<[1], [0], [0], [1], [0, 0, 1, 1], [], []>} : vector<16x64xf32>, vector<64x32xf32>, vector<16x32xf32> -> vector<16x32xf32>
    %c0_198 = arith.constant 0 : index
    %c0_199 = arith.constant 0 : index
    %752 = vector.load %arg10[%c0_198, %c0_199] : memref<1x32xf32, #tpu.memory_space<vmem>>, vector<1x32xf32>
    %753 = vector.broadcast %752 : vector<1x32xf32> to vector<16x32xf32>
    %754 = arith.addf %751, %753 : vector<16x32xf32>
    %755 = math.tanh %754 : vector<16x32xf32>
    %c0_200 = arith.constant 0 : index
    %c0_201 = arith.constant 0 : index
    %756 = vector.load %arg11[%c0_200, %c0_201] : memref<1x32xf32, #tpu.memory_space<vmem>>, vector<1x32xf32>
    %757 = vector.broadcast %756 : vector<1x32xf32> to vector<16x32xf32>
    %758 = arith.mulf %755, %757 : vector<16x32xf32>
    %cst_202 = arith.constant dense<0.000000e+00> : vector<16xf32>
    %759 = vector.multi_reduction <add>, %758, %cst_202 [1] : vector<16x32xf32> to vector<16xf32>
    %760 = vector.shape_cast %759 : vector<16xf32> to vector<16x1xf32>
    %761 = vector.shape_cast %760 : vector<16x1xf32> to vector<8x2x1xf32>
    %c0_203 = arith.constant 0 : index
    %c0_204 = arith.constant 0 : index
    %c0_205 = arith.constant 0 : index
    %762 = vector.load %arg2[%c0_203, %c0_204, %c0_205] : memref<8x2x1xf32, #tpu.memory_space<vmem>>, vector<8x2x1xf32>
    %cst_206 = arith.constant 0.000000e+00 : f32
    %763 = vector.broadcast %cst_206 : f32 to vector<8x2x1xf32>
    %764 = arith.cmpf ogt, %762, %763 : vector<8x2x1xf32>
    %cst_207 = arith.constant -1.000000e+30 : f32
    %765 = vector.broadcast %cst_207 : f32 to vector<8x2x1xf32>
    %766 = arith.select %764, %761, %765 : vector<8x2x1xi1>, vector<8x2x1xf32>
    %cst_208 = arith.constant dense<0xFF800000> : vector<2x1xf32>
    %767 = vector.multi_reduction <maximumf>, %766, %cst_208 [0] : vector<8x2x1xf32> to vector<2x1xf32>
    %768 = vector.shape_cast %767 : vector<2x1xf32> to vector<1x2x1xf32>
    %769 = vector.broadcast %768 : vector<1x2x1xf32> to vector<8x2x1xf32>
    %770 = arith.subf %761, %769 : vector<8x2x1xf32>
    %771 = math.exp %770 : vector<8x2x1xf32>
    %772 = arith.mulf %771, %762 : vector<8x2x1xf32>
    %cst_209 = arith.constant dense<0.000000e+00> : vector<2x1xf32>
    %773 = vector.multi_reduction <add>, %772, %cst_209 [0] : vector<8x2x1xf32> to vector<2x1xf32>
    %774 = vector.shape_cast %773 : vector<2x1xf32> to vector<1x2x1xf32>
    %cst_210 = arith.constant 1.000000e-30 : f32
    %775 = vector.broadcast %cst_210 : f32 to vector<1x2x1xf32>
    %776 = arith.maximumf %774, %775 : vector<1x2x1xf32>
    %777 = tpu.reciprocal %776 {approx = true} : vector<1x2x1xf32> -> vector<1x2x1xf32>
    %778 = vector.broadcast %777 : vector<1x2x1xf32> to vector<8x2x1xf32>
    %779 = arith.mulf %772, %778 : vector<8x2x1xf32>
    %780 = vector.broadcast %779 : vector<8x2x1xf32> to vector<8x2x64xf32>
    %781 = arith.mulf %780, %748 : vector<8x2x64xf32>
    %cst_211 = arith.constant dense<0.000000e+00> : vector<2x64xf32>
    %782 = vector.multi_reduction <add>, %781, %cst_211 [0] : vector<8x2x64xf32> to vector<2x64xf32>
    %c0_212 = arith.constant 0 : index
    %c0_213 = arith.constant 0 : index
    %783 = vector.load %arg12[%c0_212, %c0_213] : memref<2x64xf32, #tpu.memory_space<vmem>>, vector<2x64xf32>
    tpu.vector_store %arg12[%c0_212, %c0_213], %782 {strides = array<i32>} : memref<2x64xf32, #tpu.memory_space<vmem>>, vector<2x64xf32>,
    %c0_214 = arith.constant 0 : index
    %c0_215 = arith.constant 0 : index
    %c0_216 = arith.constant 0 : index
    %784 = vector.load %arg13[%c0_214, %c0_215, %c0_216] : memref<8x2x1xf32, #tpu.memory_space<vmem>>, vector<8x2x1xf32>
    tpu.vector_store %arg13[%c0_214, %c0_215, %c0_216], %779 {strides = array<i32>} : memref<8x2x1xf32, #tpu.memory_space<vmem>>, vector<8x2x1xf32>,
    return
  }
  func.func @transform_0(%arg0: i32) -> (i32, i32, i32) {
    %c0_i32 = arith.constant 0 : i32
    %c0_i32_0 = arith.constant 0 : i32
    %c0_i32_1 = arith.constant 0 : i32
    return %c0_i32, %arg0, %c0_i32_0 : i32, i32, i32
  }
  func.func @transform_1(%arg0: i32) -> (i32, i32, i32) {
    %c0_i32 = arith.constant 0 : i32
    %c0_i32_0 = arith.constant 0 : i32
    %c0_i32_1 = arith.constant 0 : i32
    return %c0_i32, %arg0, %c0_i32_0 : i32, i32, i32
  }
  func.func @transform_2(%arg0: i32) -> (i32, i32) {
    %c0_i32 = arith.constant 0 : i32
    %c0_i32_0 = arith.constant 0 : i32
    %c0_i32_1 = arith.constant 0 : i32
    return %c0_i32, %c0_i32_0 : i32, i32
  }
  func.func @transform_3(%arg0: i32) -> (i32, i32) {
    %c0_i32 = arith.constant 0 : i32
    %c0_i32_0 = arith.constant 0 : i32
    %c0_i32_1 = arith.constant 0 : i32
    return %c0_i32, %c0_i32_0 : i32, i32
  }
  func.func @transform_4(%arg0: i32) -> (i32, i32) {
    %c0_i32 = arith.constant 0 : i32
    %c0_i32_0 = arith.constant 0 : i32
    %c0_i32_1 = arith.constant 0 : i32
    return %c0_i32, %c0_i32_0 : i32, i32
  }
  func.func @transform_5(%arg0: i32) -> (i32, i32) {
    %c0_i32 = arith.constant 0 : i32
    %c0_i32_0 = arith.constant 0 : i32
    %c0_i32_1 = arith.constant 0 : i32
    return %c0_i32, %c0_i32_0 : i32, i32
  }
  func.func @transform_6(%arg0: i32) -> (i32, i32) {
    %c0_i32 = arith.constant 0 : i32
    %c0_i32_0 = arith.constant 0 : i32
    %c0_i32_1 = arith.constant 0 : i32
    return %c0_i32, %c0_i32_0 : i32, i32
  }
  func.func @transform_7(%arg0: i32) -> (i32, i32) {
    %c0_i32 = arith.constant 0 : i32
    %c0_i32_0 = arith.constant 0 : i32
    %c0_i32_1 = arith.constant 0 : i32
    return %c0_i32, %c0_i32_0 : i32, i32
  }
  func.func @transform_8(%arg0: i32) -> (i32, i32) {
    %c0_i32 = arith.constant 0 : i32
    %c0_i32_0 = arith.constant 0 : i32
    %c0_i32_1 = arith.constant 0 : i32
    return %c0_i32, %c0_i32_0 : i32, i32
  }
  func.func @transform_9(%arg0: i32) -> (i32, i32) {
    %c0_i32 = arith.constant 0 : i32
    %c0_i32_0 = arith.constant 0 : i32
    %c0_i32_1 = arith.constant 0 : i32
    return %c0_i32, %c0_i32_0 : i32, i32
  }
  func.func @transform_10(%arg0: i32) -> (i32, i32) {
    %c0_i32 = arith.constant 0 : i32
    %c0_i32_0 = arith.constant 0 : i32
    %c0_i32_1 = arith.constant 0 : i32
    return %c0_i32, %c0_i32_0 : i32, i32
  }
  func.func @transform_11(%arg0: i32) -> (i32, i32) {
    %c0_i32 = arith.constant 0 : i32
    %c0_i32_0 = arith.constant 0 : i32
    return %arg0, %c0_i32 : i32, i32
  }
  func.func @transform_12(%arg0: i32) -> (i32, i32, i32) {
    %c0_i32 = arith.constant 0 : i32
    %c0_i32_0 = arith.constant 0 : i32
    %c0_i32_1 = arith.constant 0 : i32
    return %c0_i32, %arg0, %c0_i32_0 : i32, i32, i32
  }
}

</mosaic_0001>

<llo_original>
// kernel: tpu_custom_call.1
$region0: #{tpu_custom_call.1}
  #allocation0 [shape = 'u32[]', space=smem, size = 0x4, offset = 0x4, fixed_abs, tag = 'smem constant byte address 0x4 - core index']
  #allocation1 [shape = 'u32[72,128]{1,0:T(1,128)}', space=vmem, size = 0x9000, scoped, tag = 'internal scratch']
  #allocation2 [shape = 'f32[8,2,96]{2,1,0:T(2,128)}', space=vmem, size = 0x2000, scoped, tag = 'scratch operand']
  #allocation3 [shape = 'f32[8,2,96]{2,1,0:T(2,128)}', space=vmem, size = 0x2000, scoped, tag = 'scratch operand']
  #allocation4 [shape = 'f32[8,2,32]{2,1,0:T(2,128)}', space=vmem, size = 0x2000, scoped, tag = 'scratch operand']
  #allocation5 [shape = 'f32[8,2,32]{2,1,0:T(2,128)}', space=vmem, size = 0x2000, scoped, tag = 'scratch operand']
  %s0 = inlined_call_operand.vmem [shape: f32[8,2,32], index: 0, kind: input, shape index: {}]
  %s1 = inlined_call_operand.vmem [shape: f32[8,2,1], index: 1, kind: input, shape index: {}]
  %s2 = inlined_call_operand.vmem [shape: f32[32,192], index: 2, kind: input, shape index: {}]
  %s3 = inlined_call_operand.vmem [shape: f32[1,192], index: 3, kind: input, shape index: {}]
  %s4 = inlined_call_operand.vmem [shape: f32[32,96], index: 4, kind: input, shape index: {}]
  %s5 = inlined_call_operand.vmem [shape: f32[1,32], index: 5, kind: input, shape index: {}]
  %s6 = inlined_call_operand.hbm [shape: f32[32,96], index: 6, kind: input, shape index: {}]
  %s7 = inlined_call_operand.vmem [shape: f32[1,32], index: 7, kind: input, shape index: {}]
  %s8 = inlined_call_operand.vmem [shape: f32[64,32], index: 8, kind: input, shape index: {}]
  %s9 = inlined_call_operand.vmem [shape: f32[1,32], index: 9, kind: input, shape index: {}]
  %s10 = inlined_call_operand.vmem [shape: f32[1,32], index: 10, kind: input, shape index: {}]
  %s11 = inlined_call_operand.hbm [shape: f32[2,64], index: 11, kind: output, shape index: {0}]
  %s12 = inlined_call_operand.vmem [shape: f32[8,2,1], index: 12, kind: output, shape index: {1}]
  %13 = xla_tuple %s11, %s12
  %s14 = sld [smem:[#allocation0]]
  $region66: #{tpu_custom_call.1} parent=0
    _
  %s16 = ssub.s32 1, %s14
  %s17 = scalar_select 0, %s16, %s14
  $region1: #{tpu_custom_call.1} parent=0
    #allocation6 [shape = 'u8[16384]{0}', space=vmem, size = 0x4000, scoped, tag = 'input window, operand 6, single buffered']
    #allocation7 [shape = 's32[1]{0}', space=sflag, size = 0x4, scoped, tag = 'scoped memory for tpu_custom_call.1']
    #allocation8 [shape = 's32[1]{0}', space=sflag, size = 0x4, scoped, tag = 'scoped memory for tpu_custom_call.1']
    #allocation9 [shape = 'u8[1024]{0}', space=vmem, size = 0x400, scoped, tag = 'output window, operand 0, single buffered']
    %18 = vsyncpa [#allocation7], 0
    %19 = vsyncpa [#allocation8], 0
    // Predicated region
    $region2: #{tpu_custom_call.1} parent=1 // pred_check
      _
    $region3: #{tpu_custom_call.1} parent=1 // pred_check_branch
      %21 = sbr.rel (0) target = $region5
    $region4: #{tpu_custom_call.1} parent=1 // pred_region
      _
    $region5: #{tpu_custom_call.1} parent=1 // pred_fallthru
      _
    // Predicated region
    $region6: #{tpu_custom_call.1} parent=1 // pred_check
      _
    $region7: #{tpu_custom_call.1} parent=1 // pred_check_branch
      %23 = sbr.rel (0) target = $region9
    $region8: #{tpu_custom_call.1} parent=1 // pred_region
      _
    $region9: #{tpu_custom_call.1} parent=1 // pred_fallthru
      _
    // Predicated region
    $region10: #{tpu_custom_call.1} parent=1 // pred_check
      _
    $region11: #{tpu_custom_call.1} parent=1 // pred_check_branch
      %25 = sbr.rel (0) target = $region13
    $region12: #{tpu_custom_call.1} parent=1 // pred_region
      _
    $region13: #{tpu_custom_call.1} parent=1 // pred_fallthru
      _
    // Predicated region
    $region14: #{tpu_custom_call.1} parent=1 // pred_check
      _
    $region15: #{tpu_custom_call.1} parent=1 // pred_check_branch
      %27 = sbr.rel (0) target = $region17
    $region16: #{tpu_custom_call.1} parent=1 // pred_region
      _
    $region17: #{tpu_custom_call.1} parent=1 // pred_fallthru
      _
    // Predicated region
    $region18: #{tpu_custom_call.1} parent=1 // pred_check
      _
    $region19: #{tpu_custom_call.1} parent=1 // pred_check_branch
      %29 = sbr.rel (0) target = $region21
    $region20: #{tpu_custom_call.1} parent=1 // pred_region
      _
    $region21: #{tpu_custom_call.1} parent=1 // pred_fallthru
      _
    // Predicated region
    $region22: #{tpu_custom_call.1} parent=1 // pred_check
      _
    $region23: #{tpu_custom_call.1} parent=1 // pred_check_branch
      %31 = sbr.rel (0) target = $region25
    $region24: #{tpu_custom_call.1} parent=1 // pred_region
      _
    $region25: #{tpu_custom_call.1} parent=1 // pred_fallthru
      _
    // Predicated region
    $region26: #{tpu_custom_call.1} parent=1 // pred_check
      _
    $region27: #{tpu_custom_call.1} parent=1 // pred_check_branch
      %33 = sbr.rel (0) target = $region29
    $region28: #{tpu_custom_call.1} parent=1 // pred_region
      %35 = vsyncadd [#allocation7], 0
      %s36 = sshll.u32 %s6, 4
      %s37 = int_to_ptr.hbm [resolvable:$true] %s36
      %s38 = sshll.u32 [#allocation6], 4
      %s39 = int_to_ptr.vmem [resolvable:$true] %s38
      %44 = dma.hbm_to_vmem [thread:$0]  %s37, 512, %s39, [#allocation7], 128, 128, 8
    $region29: #{tpu_custom_call.1} parent=1 // pred_fallthru
      _
    // Predicated region
    $region30: #{tpu_custom_call.1} parent=1 // pred_check
      _
    $region31: #{tpu_custom_call.1} parent=1 // pred_check_branch
      %46 = sbr.rel (0) target = $region33
    $region32: #{tpu_custom_call.1} parent=1 // pred_region
      _
    $region33: #{tpu_custom_call.1} parent=1 // pred_fallthru
      _
    // Predicated region
    $region34: #{tpu_custom_call.1} parent=1 // pred_check
      _
    $region35: #{tpu_custom_call.1} parent=1 // pred_check_branch
      %48 = sbr.rel (0) target = $region37
    $region36: #{tpu_custom_call.1} parent=1 // pred_region
      _
    $region37: #{tpu_custom_call.1} parent=1 // pred_fallthru
      _
    // Predicated region
    $region38: #{tpu_custom_call.1} parent=1 // pred_check
      _
    $region39: #{tpu_custom_call.1} parent=1 // pred_check_branch
      %50 = sbr.rel (0) target = $region41
    $region40: #{tpu_custom_call.1} parent=1 // pred_region
      _
    $region41: #{tpu_custom_call.1} parent=1 // pred_fallthru
      _
    // Predicated region
    $region42: #{tpu_custom_call.1} parent=1 // pred_check
      _
    $region43: #{tpu_custom_call.1} parent=1 // pred_check_branch
      %52 = sbr.rel (0) target = $region45
    $region44: #{tpu_custom_call.1} parent=1 // pred_region
      _
    $region45: #{tpu_custom_call.1} parent=1 // pred_fallthru
      _
    // Predicated region
    $region46: #{tpu_custom_call.1} parent=1 // pred_check
      _
    $region47: #{tpu_custom_call.1} parent=1 // pred_check_branch
      %54 = sbr.rel (0) target = $region49
    $region48: #{tpu_custom_call.1} parent=1 // pred_region
      %56 = dma.done [#allocation7], 512
    $region49: #{tpu_custom_call.1} parent=1 // pred_fallthru
      _
    %v57 = vld [vmem:[%s4] sm:$0xff]
    %v58 = vld [vmem:[%s4 + $0x8] sm:$0xff]
    %v59 = vld [vmem:[%s4 + $0x10] sm:$0xff]
    %v60 = vld [vmem:[%s4 + $0x18] sm:$0xff]
    %v61 = vld [vmem:[#allocation6] sm:$0xff]
    %v62 = vld [vmem:[#allocation6 + $0x8] sm:$0xff]
    %v63 = vld [vmem:[#allocation6 + $0x10] sm:$0xff]
    %v64 = vld [vmem:[#allocation6 + $0x18] sm:$0xff]
    %v65 = vld [vmem:[%s5] sm:$0x1]
    %v66 = vld [vmem:[%s7] sm:$0x1]
    %v67 = vld [vmem:[%s0] sm:$0x3]
    %v68 = vld [vmem:[%s0 + $0x2] sm:$0x3]
    %v69 = vld [vmem:[%s0 + $0x4] sm:$0x3]
    %v70 = vld [vmem:[%s0 + $0x6] sm:$0x3]
    %v71 = vld [vmem:[%s0 + $0x8] sm:$0x3]
    %v72 = vld [vmem:[%s0 + $0xa] sm:$0x3]
    %v73 = vld [vmem:[%s0 + $0xc] sm:$0x3]
    %v74 = vld [vmem:[%s0 + $0xe] sm:$0x3]
    %v75 = vld [vmem:[%s2] sm:$0xff]
    %v76 = vld [vmem:[%s2 + $0x8] sm:$0xff]
    %v77 = vld [vmem:[%s2 + $0x10] sm:$0xff]
    %v78 = vld [vmem:[%s2 + $0x18] sm:$0xff]
    %v79 = vld [vmem:[%s2 + $0x20] sm:$0xff]
    %v80 = vld [vmem:[%s2 + $0x28] sm:$0xff]
    %v81 = vld [vmem:[%s2 + $0x30] sm:$0xff]
    %v82 = vld [vmem:[%s2 + $0x38] sm:$0xff]
    %v83 = vld [vmem:[%s3] sm:$0x3]
    %v85 = vperm.slane %v83, 0
    %v86 = vperm.slane %v83, 1
    %97 = vst [vmem:[#allocation1] ss:$4 sm:$0xff] %v67
    %s98 = scalar_lea.vmem [#allocation1], 1
    %99 = vst [vmem:[%s98] ss:$4 sm:$0xff] %v68
    %s100 = scalar_lea.vmem [#allocation1], 2
    %101 = vst [vmem:[%s100] ss:$4 sm:$0xff] %v69
    %s102 = scalar_lea.vmem [#allocation1], 3
    %103 = vst [vmem:[%s102] ss:$4 sm:$0xff] %v70
    %s104 = scalar_lea.vmem [#allocation1], 32
    %105 = vst [vmem:[%s104] ss:$4 sm:$0xff] %v71
    %s106 = scalar_lea.vmem [#allocation1], 33
    %107 = vst [vmem:[%s106] ss:$4 sm:$0xff] %v72
    %s108 = scalar_lea.vmem [#allocation1], 34
    %109 = vst [vmem:[%s108] ss:$4 sm:$0xff] %v73
    %s110 = scalar_lea.vmem [#allocation1], 35
    %111 = vst [vmem:[%s110] ss:$4 sm:$0xff] %v74
    %v112 = vld.sshfl [vmem:[#allocation1] sm:$0xff pattern:$0x73625140]
    %v113 = vld.sshfl [vmem:[#allocation1 + $0x20] sm:$0xff pattern:$0x73625140]
    %vm114 = vcmask 261120
    %v115 = vsel %vm114, %v112, 0
    %v117 = vsel %vm114, %v113, 0
    %119 = vmatpush.msra.mxu0 0.0
    %120 = vmatpush.msra.mxu0 0.0
    %121 = vmatpush.msra.mxu0 0.0
    %122 = vmatpush.msra.mxu0 0.0
    %123 = vmatpush.msra.mxu0 0.0
    %124 = vmatpush.msra.mxu0 0.0
    %125 = vmatpush.msra.mxu0 0.0
    %126 = vmatpush.msra.mxu0 0.0
    %127 = vmatpush.msra.mxu0 0.0
    %128 = vmatpush.msra.mxu0 0.0
    %129 = vmatpush.msra.mxu0 0.0
    %130 = vmatpush.msra.mxu0 0.0
    %131 = vmatpush.msra.mxu0 %v81
    %132 = vmatpush.msra.mxu0 %v79
    %133 = vmatpush.msra.mxu0 %v77
    %134 = vmatpush.msra.mxu0 %v75
    %135 = vmatmul.f32.gmra.mxu0 %v115
    %v136 = vpop.f32.mrf.mxu0
    %v137 = vadd.f32 %v85, %v136
    %138 = vmatmul.f32.gmra.mxu0 %v117
    %v139 = vpop.f32.mrf.mxu0
    %v140 = vadd.f32 %v85, %v139
    %141 = vdwg.mxu0
    %142 = vmatpush.msra.mxu0 0.0
    %143 = vmatpush.msra.mxu0 0.0
    %144 = vmatpush.msra.mxu0 0.0
    %145 = vmatpush.msra.mxu0 0.0
    %146 = vmatpush.msra.mxu0 0.0
    %147 = vmatpush.msra.mxu0 0.0
    %148 = vmatpush.msra.mxu0 0.0
    %149 = vmatpush.msra.mxu0 0.0
    %150 = vmatpush.msra.mxu0 0.0
    %151 = vmatpush.msra.mxu0 0.0
    %152 = vmatpush.msra.mxu0 0.0
    %153 = vmatpush.msra.mxu0 0.0
    %154 = vmatpush.msra.mxu0 %v82
    %155 = vmatpush.msra.mxu0 %v80
    %156 = vmatpush.msra.mxu0 %v78
    %157 = vmatpush.msra.mxu0 %v76
    %158 = vmatmul.f32.gmra.mxu0 %v115
    %v159 = vpop.f32.mrf.mxu0
    %v160 = vadd.f32 %v86, %v159
    %161 = vmatmul.f32.gmra.mxu0 %v117
    %v162 = vpop.f32.mrf.mxu0
    %v163 = vadd.f32 %v86, %v162
    %164 = vdwg.mxu0
    %v167 = vrot.slane %v137, 2
    %v168 = vrot.slane %v137, 4
    %v169 = vrot.slane %v137, 6
    %v170 = vrot.slane %v140, 2
    %v171 = vrot.slane %v140, 4
    %v172 = vrot.slane %v140, 6
    %vm179 = vcmask 779264
    %180 = vst.msk [vmem:[#allocation2] sm:$0x3] %vm179, %v137
    %181 = vst.msk [vmem:[#allocation2 + $0x2] sm:$0x3] %vm179, %v167
    %182 = vst.msk [vmem:[#allocation2 + $0x4] sm:$0x3] %vm179, %v168
    %183 = vst.msk [vmem:[#allocation2 + $0x6] sm:$0x3] %vm179, %v169
    %184 = vst.msk [vmem:[#allocation2 + $0x8] sm:$0x3] %vm179, %v140
    %185 = vst.msk [vmem:[#allocation2 + $0xa] sm:$0x3] %vm179, %v170
    %186 = vst.msk [vmem:[#allocation2 + $0xc] sm:$0x3] %vm179, %v171
    %187 = vst.msk [vmem:[#allocation2 + $0xe] sm:$0x3] %vm179, %v172
    %v190 = vrot.slane %v160, 6
    %v191 = vrot.slane %v163, 6
    %vm192 = vcmask 1041408
    %v193 = vsel %vm192, %v137, %v190
    %vm194 = vcmask 1043458
    %v195 = vsel %vm194, %v137, %v190
    %v196 = vrot.slane %v195, 2
    %vm197 = vcmask 1045508
    %v198 = vsel %vm197, %v137, %v190
    %v199 = vrot.slane %v198, 4
    %vm200 = vcmask 1045504
    %v201 = vsel %vm200, %v190, %v137
    %v202 = vrot.slane %v201, 6
    %v203 = vsel %vm192, %v140, %v191
    %v204 = vsel %vm194, %v140, %v191
    %v205 = vrot.slane %v204, 2
    %v206 = vsel %vm197, %v140, %v191
    %v207 = vrot.slane %v206, 4
    %v208 = vsel %vm200, %v191, %v140
    %v209 = vrot.slane %v208, 6
    %210 = vst [vmem:[#allocation1] ss:$4 sm:$0xff] %v193
    %v211 = vld.sshfl [vmem:[#allocation1] sm:$0xff pattern:$0x73625140]
    %v212 = vld.sshfl [vmem:[#allocation1 + $0x8] sm:$0xff pattern:$0x73625140]
    %s213 = scalar_lea.vmem [#allocation1], 32
    %214 = vst [vmem:[%s213] ss:$4 sm:$0xff] %v196
    %v215 = vld.sshfl [vmem:[#allocation1 + $0x20] sm:$0xff pattern:$0x73625140]
    %v216 = vld.sshfl [vmem:[#allocation1 + $0x28] sm:$0xff pattern:$0x73625140]
    %217 = vst [vmem:[#allocation1] ss:$4 sm:$0xff] %v199
    %v218 = vld.sshfl [vmem:[#allocation1] sm:$0xff pattern:$0x73625140]
    %v219 = vld.sshfl [vmem:[#allocation1 + $0x8] sm:$0xff pattern:$0x73625140]
    %220 = vst [vmem:[%s213] ss:$4 sm:$0xff] %v202
    %v221 = vld.sshfl [vmem:[#allocation1 + $0x20] sm:$0xff pattern:$0x73625140]
    %v222 = vld.sshfl [vmem:[#allocation1 + $0x28] sm:$0xff pattern:$0x73625140]
    %223 = vst [vmem:[#allocation1] ss:$4 sm:$0xff] %v203
    %v224 = vld.sshfl [vmem:[#allocation1] sm:$0xff pattern:$0x73625140]
    %v225 = vld.sshfl [vmem:[#allocation1 + $0x8] sm:$0xff pattern:$0x73625140]
    %226 = vst [vmem:[%s213] ss:$4 sm:$0xff] %v205
    %v227 = vld.sshfl [vmem:[#allocation1 + $0x20] sm:$0xff pattern:$0x73625140]
    %v228 = vld.sshfl [vmem:[#allocation1 + $0x28] sm:$0xff pattern:$0x73625140]
    %229 = vst [vmem:[#allocation1] ss:$4 sm:$0xff] %v207
    %v230 = vld.sshfl [vmem:[#allocation1] sm:$0xff pattern:$0x73625140]
    %v231 = vld.sshfl [vmem:[#allocation1 + $0x8] sm:$0xff pattern:$0x73625140]
    %232 = vst [vmem:[%s213] ss:$4 sm:$0xff] %v209
    %v233 = vld.sshfl [vmem:[#allocation1 + $0x20] sm:$0xff pattern:$0x73625140]
    %v234 = vld.sshfl [vmem:[#allocation1 + $0x28] sm:$0xff pattern:$0x73625140]
    %235 = vrot.lane.b32.xlu0 %v211, 32
    %v236 = vpop.permute.xlu0 %235
    %237 = vrot.lane.b32.xlu0 %v212, 32
    %v238 = vpop.permute.xlu0 %237
    %239 = vrot.lane.b32.xlu0 %v215, 32
    %v240 = vpop.permute.xlu0 %239
    %241 = vrot.lane.b32.xlu0 %v216, 32
    %v242 = vpop.permute.xlu0 %241
    %243 = vrot.lane.b32.xlu0 %v218, 32
    %v244 = vpop.permute.xlu0 %243
    %245 = vrot.lane.b32.xlu0 %v219, 32
    %v246 = vpop.permute.xlu0 %245
    %247 = vrot.lane.b32.xlu0 %v221, 32
    %v248 = vpop.permute.xlu0 %247
    %249 = vrot.lane.b32.xlu0 %v222, 32
    %v250 = vpop.permute.xlu0 %249
    %251 = vrot.lane.b32.xlu0 %v224, 32
    %v252 = vpop.permute.xlu0 %251
    %253 = vrot.lane.b32.xlu0 %v225, 32
    %v254 = vpop.permute.xlu0 %253
    %255 = vrot.lane.b32.xlu0 %v227, 32
    %v256 = vpop.permute.xlu0 %255
    %257 = vrot.lane.b32.xlu0 %v228, 32
    %v258 = vpop.permute.xlu0 %257
    %259 = vrot.lane.b32.xlu0 %v230, 32
    %v260 = vpop.permute.xlu0 %259
    %261 = vrot.lane.b32.xlu0 %v231, 32
    %v262 = vpop.permute.xlu0 %261
    %263 = vrot.lane.b32.xlu0 %v233, 32
    %v264 = vpop.permute.xlu0 %263
    %265 = vrot.lane.b32.xlu0 %v234, 32
    %v266 = vpop.permute.xlu0 %265
    %v267 = vsel %vm114, %v236, %v238
    %v268 = vsel %vm114, %v240, %v242
    %v269 = vsel %vm114, %v244, %v246
    %v270 = vsel %vm114, %v248, %v250
    %v271 = vsel %vm114, %v252, %v254
    %v272 = vsel %vm114, %v256, %v258
    %v273 = vsel %vm114, %v260, %v262
    %v274 = vsel %vm114, %v264, %v266
    %283 = vst.msk [vmem:[#allocation3] sm:$0x3] %vm179, %v267
    %284 = vst.msk [vmem:[#allocation3 + $0x2] sm:$0x3] %vm179, %v268
    %285 = vst.msk [vmem:[#allocation3 + $0x4] sm:$0x3] %vm179, %v269
    %286 = vst.msk [vmem:[#allocation3 + $0x6] sm:$0x3] %vm179, %v270
    %287 = vst.msk [vmem:[#allocation3 + $0x8] sm:$0x3] %vm179, %v271
    %288 = vst.msk [vmem:[#allocation3 + $0xa] sm:$0x3] %vm179, %v272
    %289 = vst.msk [vmem:[#allocation3 + $0xc] sm:$0x3] %vm179, %v273
    %290 = vst.msk [vmem:[#allocation3 + $0xe] sm:$0x3] %vm179, %v274
    %v291 = vld [vmem:[%s1] sm:$0x3]
    %s292 = scalar_lea.vmem %s1, 14
    %v293 = vld [vmem:[%s292] sm:$0x3]
    %v294 = vld [vmem:[#allocation2] sm:$0x3]
    %v296 = vsel %vm114, 0.0, 0
    %298 = vmatpush.msra.mxu0 0.0
    %299 = vmatpush.msra.mxu0 0.0
    %300 = vmatpush.msra.mxu0 0.0
    %301 = vmatpush.msra.mxu0 0.0
    %302 = vmatpush.msra.mxu0 0.0
    %303 = vmatpush.msra.mxu0 0.0
    %304 = vmatpush.msra.mxu0 0.0
    %305 = vmatpush.msra.mxu0 0.0
    %306 = vmatpush.msra.mxu0 0.0
    %307 = vmatpush.msra.mxu0 0.0
    %308 = vmatpush.msra.mxu0 0.0
    %309 = vmatpush.msra.mxu0 0.0
    %310 = vmatpush.msra.mxu0 %v60
    %311 = vmatpush.msra.mxu0 %v59
    %312 = vmatpush.msra.mxu0 %v58
    %313 = vmatpush.msra.mxu0 %v57
    %314 = vmatmul.f32.gmra.mxu0 %v296
    %v315 = vpop.f32.mrf.mxu0
    %v316 = vadd.f32 0.0, %v315
    %317 = vdwg.mxu0
    %v318 = vadd.f32 %v294, %v316
    %v319 = vxor.u32 %v318, 2147483648
    %v320 = vmul.f32 %v319, 1.442695
    %v321 = vpow.pop %v320
    %v322 = vadd.f32 %v321, 1.0
    %v323 = vrcp.pop %v322
    %v324 = vmul.f32 %v322, %v323
    %v325 = vsub.f32 1.0, %v324
    %v326 = vmul.f32 %v323, %v325
    %v327 = vadd.f32 %v323, %v326
    %vm328 = vweird.f32 %v322
    %vm329 = vweird.f32 %v323
    %vm330 = vmor %vm328, %vm329
    %v331 = vsel %vm330, %v323, %v327
    %v332 = vand.u32 2147483647, %v322
    %vm333 = vcmp.eq.f32.partialorder %v332, 8.507059e+37
    %v334 = vand.u32 %v322, 2147483648
    %v335 = vor.u32 1.1754944e-38, %v334
    %v336 = vsel %vm333, %v335, %v331
    %v337 = vmul.f32 1.0, %v336
    %v339 = vperm.slane %v65, 0
    %340 = vrot.lane.b32.xlu0 %v339, 64
    %v341 = vpop.permute.xlu0 %340
    %v343 = vadd.f32 %v316, %v341
    %345 = vrot.lane.b32.xlu0 %v343, 64
    %v346 = vpop.permute.xlu0 %345
    %v348 = vmul.f32 %v337, %v346
    %350 = vrot.lane.b32.xlu0 %v348, 64
    %v351 = vpop.permute.xlu0 %350
    %v353 = vadd.f32 %v294, %v351
    %v354 = vtanh.pop %v353
    %v355 = vsub.f32 1.0, %v337
    %357 = vrot.lane.b32.xlu0 %v354, 96
    %v358 = vpop.permute.xlu0 %357
    %v360 = vmul.f32 %v355, %v358
    %v361 = vmul.f32 %v337, 0.0
    %v362 = vadd.f32 %v360, %v361
    %s363 = scalar_lea.vmem [#allocation3], 14
    %v364 = vld [vmem:[%s363] sm:$0x3]
    %365 = vmatpush.msra.mxu0 0.0
    %366 = vmatpush.msra.mxu0 0.0
    %367 = vmatpush.msra.mxu0 0.0
    %368 = vmatpush.msra.mxu0 0.0
    %369 = vmatpush.msra.mxu0 0.0
    %370 = vmatpush.msra.mxu0 0.0
    %371 = vmatpush.msra.mxu0 0.0
    %372 = vmatpush.msra.mxu0 0.0
    %373 = vmatpush.msra.mxu0 0.0
    %374 = vmatpush.msra.mxu0 0.0
    %375 = vmatpush.msra.mxu0 0.0
    %376 = vmatpush.msra.mxu0 0.0
    %377 = vmatpush.msra.mxu0 %v64
    %378 = vmatpush.msra.mxu0 %v63
    %379 = vmatpush.msra.mxu0 %v62
    %380 = vmatpush.msra.mxu0 %v61
    %381 = vmatmul.f32.gmra.mxu0 %v296
    %v382 = vpop.f32.mrf.mxu0
    %v383 = vadd.f32 0.0, %v382
    %384 = vdwg.mxu0
    %v385 = vadd.f32 %v364, %v383
    %v386 = vxor.u32 %v385, 2147483648
    %v387 = vmul.f32 %v386, 1.442695
    %v388 = vpow.pop %v387
    %v389 = vadd.f32 %v388, 1.0
    %v390 = vrcp.pop %v389
    %v391 = vmul.f32 %v389, %v390
    %v392 = vsub.f32 1.0, %v391
    %v393 = vmul.f32 %v390, %v392
    %v394 = vadd.f32 %v390, %v393
    %vm395 = vweird.f32 %v389
    %vm396 = vweird.f32 %v390
    %vm397 = vmor %vm395, %vm396
    %v398 = vsel %vm397, %v390, %v394
    %v399 = vand.u32 2147483647, %v389
    %vm400 = vcmp.eq.f32.partialorder %v399, 8.507059e+37
    %v401 = vand.u32 %v389, 2147483648
    %v402 = vor.u32 1.1754944e-38, %v401
    %v403 = vsel %vm400, %v402, %v398
    %v404 = vmul.f32 1.0, %v403
    %v406 = vperm.slane %v66, 0
    %407 = vrot.lane.b32.xlu0 %v406, 64
    %v408 = vpop.permute.xlu0 %407
    %v410 = vadd.f32 %v383, %v408
    %412 = vrot.lane.b32.xlu0 %v410, 64
    %v413 = vpop.permute.xlu0 %412
    %v415 = vmul.f32 %v404, %v413
    %417 = vrot.lane.b32.xlu0 %v415, 64
    %v418 = vpop.permute.xlu0 %417
    %v420 = vadd.f32 %v364, %v418
    %v421 = vtanh.pop %v420
    %v422 = vsub.f32 1.0, %v404
    %424 = vrot.lane.b32.xlu0 %v421, 96
    %v425 = vpop.permute.xlu0 %424
    %v427 = vmul.f32 %v422, %v425
    %v428 = vmul.f32 %v404, 0.0
    %v429 = vadd.f32 %v427, %v428
    %431 = vset.pattern.permute.xlu0 0
    %432 = vperm.xlu0 %431, %v291
    %v433 = vpop.permute.xlu0 %432
    %v435 = vmul.f32 %v433, %v362
    %v436 = vadd.f32 %v435, 0.0
    %438 = vset.pattern.permute.xlu0 0
    %439 = vperm.xlu0 %438, %v293
    %v440 = vpop.permute.xlu0 %439
    %v442 = vmul.f32 %v440, %v429
    %v443 = vadd.f32 %v442, 0.0
    %v444 = vmul.f32 %v436, %v433
    %446 = vrot.lane.b32.xlu0 %v444, 96
    %v447 = vpop.permute.xlu0 %446
    %vm449 = vcmask 254976
    %450 = vst.msk [vmem:[#allocation4] sm:$0x3] %vm449, %v447
    %v451 = vmul.f32 %v443, %v440
    %453 = vrot.lane.b32.xlu0 %v451, 96
    %v454 = vpop.permute.xlu0 %453
    %s456 = scalar_lea.vmem [#allocation5], 14
    %457 = vst.msk [vmem:[%s456] sm:$0x3] %vm449, %v454
    %s458 = scalar_lea.vmem %s1, 2
    %v459 = vld [vmem:[%s458] sm:$0x3]
    %s460 = scalar_lea.vmem %s1, 12
    %v461 = vld [vmem:[%s460] sm:$0x3]
    %s462 = scalar_lea.vmem [#allocation2], 2
    %v463 = vld [vmem:[%s462] sm:$0x3]
    %465 = vrot.lane.b32.xlu0 %v436, 96
    %v466 = vpop.permute.xlu0 %465
    %v467 = vsel %vm114, %v466, 0
    %469 = vmatpush.msra.mxu0 0.0
    %470 = vmatpush.msra.mxu0 0.0
    %471 = vmatpush.msra.mxu0 0.0
    %472 = vmatpush.msra.mxu0 0.0
    %473 = vmatpush.msra.mxu0 0.0
    %474 = vmatpush.msra.mxu0 0.0
    %475 = vmatpush.msra.mxu0 0.0
    %476 = vmatpush.msra.mxu0 0.0
    %477 = vmatpush.msra.mxu0 0.0
    %478 = vmatpush.msra.mxu0 0.0
    %479 = vmatpush.msra.mxu0 0.0
    %480 = vmatpush.msra.mxu0 0.0
    %481 = vmatpush.msra.mxu0 %v60
    %482 = vmatpush.msra.mxu0 %v59
    %483 = vmatpush.msra.mxu0 %v58
    %484 = vmatpush.msra.mxu0 %v57
    %485 = vmatmul.f32.gmra.mxu0 %v467
    %v486 = vpop.f32.mrf.mxu0
    %v487 = vadd.f32 0.0, %v486
    %488 = vdwg.mxu0
    %v489 = vadd.f32 %v463, %v487
    %v490 = vxor.u32 %v489, 2147483648
    %v491 = vmul.f32 %v490, 1.442695
    %v492 = vpow.pop %v491
    %v493 = vadd.f32 %v492, 1.0
    %v494 = vrcp.pop %v493
    %v495 = vmul.f32 %v493, %v494
    %v496 = vsub.f32 1.0, %v495
    %v497 = vmul.f32 %v494, %v496
    %v498 = vadd.f32 %v494, %v497
    %vm499 = vweird.f32 %v493
    %vm500 = vweird.f32 %v494
    %vm501 = vmor %vm499, %vm500
    %v502 = vsel %vm501, %v494, %v498
    %v503 = vand.u32 2147483647, %v493
    %vm504 = vcmp.eq.f32.partialorder %v503, 8.507059e+37
    %v505 = vand.u32 %v493, 2147483648
    %v506 = vor.u32 1.1754944e-38, %v505
    %v507 = vsel %vm504, %v506, %v502
    %v508 = vmul.f32 1.0, %v507
    %v509 = vadd.f32 %v487, %v341
    %511 = vrot.lane.b32.xlu0 %v509, 64
    %v512 = vpop.permute.xlu0 %511
    %v514 = vmul.f32 %v508, %v512
    %516 = vrot.lane.b32.xlu0 %v514, 64
    %v517 = vpop.permute.xlu0 %516
    %v519 = vadd.f32 %v463, %v517
    %v520 = vtanh.pop %v519
    %v521 = vsub.f32 1.0, %v508
    %523 = vrot.lane.b32.xlu0 %v520, 96
    %v524 = vpop.permute.xlu0 %523
    %v526 = vmul.f32 %v521, %v524
    %v527 = vmul.f32 %v508, %v436
    %v528 = vadd.f32 %v526, %v527
    %s529 = scalar_lea.vmem [#allocation3], 12
    %v530 = vld [vmem:[%s529] sm:$0x3]
    %532 = vrot.lane.b32.xlu0 %v443, 96
    %v533 = vpop.permute.xlu0 %532
    %v534 = vsel %vm114, %v533, 0
    %536 = vmatpush.msra.mxu0 0.0
    %537 = vmatpush.msra.mxu0 0.0
    %538 = vmatpush.msra.mxu0 0.0
    %539 = vmatpush.msra.mxu0 0.0
    %540 = vmatpush.msra.mxu0 0.0
    %541 = vmatpush.msra.mxu0 0.0
    %542 = vmatpush.msra.mxu0 0.0
    %543 = vmatpush.msra.mxu0 0.0
    %544 = vmatpush.msra.mxu0 0.0
    %545 = vmatpush.msra.mxu0 0.0
    %546 = vmatpush.msra.mxu0 0.0
    %547 = vmatpush.msra.mxu0 0.0
    %548 = vmatpush.msra.mxu0 %v64
    %549 = vmatpush.msra.mxu0 %v63
    %550 = vmatpush.msra.mxu0 %v62
    %551 = vmatpush.msra.mxu0 %v61
    %552 = vmatmul.f32.gmra.mxu0 %v534
    %v553 = vpop.f32.mrf.mxu0
    %v554 = vadd.f32 0.0, %v553
    %555 = vdwg.mxu0
    %v556 = vadd.f32 %v530, %v554
    %v557 = vxor.u32 %v556, 2147483648
    %v558 = vmul.f32 %v557, 1.442695
    %v559 = vpow.pop %v558
    %v560 = vadd.f32 %v559, 1.0
    %v561 = vrcp.pop %v560
    %v562 = vmul.f32 %v560, %v561
    %v563 = vsub.f32 1.0, %v562
    %v564 = vmul.f32 %v561, %v563
    %v565 = vadd.f32 %v561, %v564
    %vm566 = vweird.f32 %v560
    %vm567 = vweird.f32 %v561
    %vm568 = vmor %vm566, %vm567
    %v569 = vsel %vm568, %v561, %v565
    %v570 = vand.u32 2147483647, %v560
    %vm571 = vcmp.eq.f32.partialorder %v570, 8.507059e+37
    %v572 = vand.u32 %v560, 2147483648
    %v573 = vor.u32 1.1754944e-38, %v572
    %v574 = vsel %vm571, %v573, %v569
    %v575 = vmul.f32 1.0, %v574
    %v576 = vadd.f32 %v554, %v408
    %578 = vrot.lane.b32.xlu0 %v576, 64
    %v579 = vpop.permute.xlu0 %578
    %v581 = vmul.f32 %v575, %v579
    %583 = vrot.lane.b32.xlu0 %v581, 64
    %v584 = vpop.permute.xlu0 %583
    %v586 = vadd.f32 %v530, %v584
    %v587 = vtanh.pop %v586
    %v588 = vsub.f32 1.0, %v575
    %590 = vrot.lane.b32.xlu0 %v587, 96
    %v591 = vpop.permute.xlu0 %590
    %v593 = vmul.f32 %v588, %v591
    %v594 = vmul.f32 %v575, %v443
    %v595 = vadd.f32 %v593, %v594
    %v596 = vsub.f32 %v528, %v436
    %598 = vset.pattern.permute.xlu0 0
    %599 = vperm.xlu0 %598, %v459
    %v600 = vpop.permute.xlu0 %599
    %v602 = vmul.f32 %v600, %v596
    %v603 = vadd.f32 %v436, %v602
    %v604 = vsub.f32 %v595, %v443
    %606 = vset.pattern.permute.xlu0 0
    %607 = vperm.xlu0 %606, %v461
    %v608 = vpop.permute.xlu0 %607
    %v610 = vmul.f32 %v608, %v604
    %v611 = vadd.f32 %v443, %v610
    %v612 = vmul.f32 %v603, %v600
    %614 = vrot.lane.b32.xlu0 %v612, 96
    %v615 = vpop.permute.xlu0 %614
    %s617 = scalar_lea.vmem [#allocation4], 2
    %618 = vst.msk [vmem:[%s617] sm:$0x3] %vm449, %v615
    %v619 = vmul.f32 %v611, %v608
    %621 = vrot.lane.b32.xlu0 %v619, 96
    %v622 = vpop.permute.xlu0 %621
    %s624 = scalar_lea.vmem [#allocation5], 12
    %625 = vst.msk [vmem:[%s624] sm:$0x3] %vm449, %v622
    %s626 = scalar_lea.vmem %s1, 4
    %v627 = vld [vmem:[%s626] sm:$0x3]
    %s628 = scalar_lea.vmem %s1, 10
    %v629 = vld [vmem:[%s628] sm:$0x3]
    %s630 = scalar_lea.vmem [#allocation2], 4
    %v631 = vld [vmem:[%s630] sm:$0x3]
    %633 = vrot.lane.b32.xlu0 %v603, 96
    %v634 = vpop.permute.xlu0 %633
    %v635 = vsel %vm114, %v634, 0
    %637 = vmatpush.msra.mxu0 0.0
    %638 = vmatpush.msra.mxu0 0.0
    %639 = vmatpush.msra.mxu0 0.0
    %640 = vmatpush.msra.mxu0 0.0
    %641 = vmatpush.msra.mxu0 0.0
    %642 = vmatpush.msra.mxu0 0.0
    %643 = vmatpush.msra.mxu0 0.0
    %644 = vmatpush.msra.mxu0 0.0
    %645 = vmatpush.msra.mxu0 0.0
    %646 = vmatpush.msra.mxu0 0.0
    %647 = vmatpush.msra.mxu0 0.0
    %648 = vmatpush.msra.mxu0 0.0
    %649 = vmatpush.msra.mxu0 %v60
    %650 = vmatpush.msra.mxu0 %v59
    %651 = vmatpush.msra.mxu0 %v58
    %652 = vmatpush.msra.mxu0 %v57
    %653 = vmatmul.f32.gmra.mxu0 %v635
    %v654 = vpop.f32.mrf.mxu0
    %v655 = vadd.f32 0.0, %v654
    %656 = vdwg.mxu0
    %v657 = vadd.f32 %v631, %v655
    %v658 = vxor.u32 %v657, 2147483648
    %v659 = vmul.f32 %v658, 1.442695
    %v660 = vpow.pop %v659
    %v661 = vadd.f32 %v660, 1.0
    %v662 = vrcp.pop %v661
    %v663 = vmul.f32 %v661, %v662
    %v664 = vsub.f32 1.0, %v663
    %v665 = vmul.f32 %v662, %v664
    %v666 = vadd.f32 %v662, %v665
    %vm667 = vweird.f32 %v661
    %vm668 = vweird.f32 %v662
    %vm669 = vmor %vm667, %vm668
    %v670 = vsel %vm669, %v662, %v666
    %v671 = vand.u32 2147483647, %v661
    %vm672 = vcmp.eq.f32.partialorder %v671, 8.507059e+37
    %v673 = vand.u32 %v661, 2147483648
    %v674 = vor.u32 1.1754944e-38, %v673
    %v675 = vsel %vm672, %v674, %v670
    %v676 = vmul.f32 1.0, %v675
    %v677 = vadd.f32 %v655, %v341
    %679 = vrot.lane.b32.xlu0 %v677, 64
    %v680 = vpop.permute.xlu0 %679
    %v682 = vmul.f32 %v676, %v680
    %684 = vrot.lane.b32.xlu0 %v682, 64
    %v685 = vpop.permute.xlu0 %684
    %v687 = vadd.f32 %v631, %v685
    %v688 = vtanh.pop %v687
    %v689 = vsub.f32 1.0, %v676
    %691 = vrot.lane.b32.xlu0 %v688, 96
    %v692 = vpop.permute.xlu0 %691
    %v694 = vmul.f32 %v689, %v692
    %v695 = vmul.f32 %v676, %v603
    %v696 = vadd.f32 %v694, %v695
    %s697 = scalar_lea.vmem [#allocation3], 10
    %v698 = vld [vmem:[%s697] sm:$0x3]
    %700 = vrot.lane.b32.xlu0 %v611, 96
    %v701 = vpop.permute.xlu0 %700
    %v702 = vsel %vm114, %v701, 0
    %704 = vmatpush.msra.mxu0 0.0
    %705 = vmatpush.msra.mxu0 0.0
    %706 = vmatpush.msra.mxu0 0.0
    %707 = vmatpush.msra.mxu0 0.0
    %708 = vmatpush.msra.mxu0 0.0
    %709 = vmatpush.msra.mxu0 0.0
    %710 = vmatpush.msra.mxu0 0.0
    %711 = vmatpush.msra.mxu0 0.0
    %712 = vmatpush.msra.mxu0 0.0
    %713 = vmatpush.msra.mxu0 0.0
    %714 = vmatpush.msra.mxu0 0.0
    %715 = vmatpush.msra.mxu0 0.0
    %716 = vmatpush.msra.mxu0 %v64
    %717 = vmatpush.msra.mxu0 %v63
    %718 = vmatpush.msra.mxu0 %v62
    %719 = vmatpush.msra.mxu0 %v61
    %720 = vmatmul.f32.gmra.mxu0 %v702
    %v721 = vpop.f32.mrf.mxu0
    %v722 = vadd.f32 0.0, %v721
    %723 = vdwg.mxu0
    %v724 = vadd.f32 %v698, %v722
    %v725 = vxor.u32 %v724, 2147483648
    %v726 = vmul.f32 %v725, 1.442695
    %v727 = vpow.pop %v726
    %v728 = vadd.f32 %v727, 1.0
    %v729 = vrcp.pop %v728
    %v730 = vmul.f32 %v728, %v729
    %v731 = vsub.f32 1.0, %v730
    %v732 = vmul.f32 %v729, %v731
    %v733 = vadd.f32 %v729, %v732
    %vm734 = vweird.f32 %v728
    %vm735 = vweird.f32 %v729
    %vm736 = vmor %vm734, %vm735
    %v737 = vsel %vm736, %v729, %v733
    %v738 = vand.u32 2147483647, %v728
    %vm739 = vcmp.eq.f32.partialorder %v738, 8.507059e+37
    %v740 = vand.u32 %v728, 2147483648
    %v741 = vor.u32 1.1754944e-38, %v740
    %v742 = vsel %vm739, %v741, %v737
    %v743 = vmul.f32 1.0, %v742
    %v744 = vadd.f32 %v722, %v408
    %746 = vrot.lane.b32.xlu0 %v744, 64
    %v747 = vpop.permute.xlu0 %746
    %v749 = vmul.f32 %v743, %v747
    %751 = vrot.lane.b32.xlu0 %v749, 64
    %v752 = vpop.permute.xlu0 %751
    %v754 = vadd.f32 %v698, %v752
    %v755 = vtanh.pop %v754
    %v756 = vsub.f32 1.0, %v743
    %758 = vrot.lane.b32.xlu0 %v755, 96
    %v759 = vpop.permute.xlu0 %758
    %v761 = vmul.f32 %v756, %v759
    %v762 = vmul.f32 %v743, %v611
    %v763 = vadd.f32 %v761, %v762
    %v764 = vsub.f32 %v696, %v603
    %766 = vset.pattern.permute.xlu0 0
    %767 = vperm.xlu0 %766, %v627
    %v768 = vpop.permute.xlu0 %767
    %v770 = vmul.f32 %v768, %v764
    %v771 = vadd.f32 %v603, %v770
    %v772 = vsub.f32 %v763, %v611
    %774 = vset.pattern.permute.xlu0 0
    %775 = vperm.xlu0 %774, %v629
    %v776 = vpop.permute.xlu0 %775
    %v778 = vmul.f32 %v776, %v772
    %v779 = vadd.f32 %v611, %v778
    %v780 = vmul.f32 %v771, %v768
    %782 = vrot.lane.b32.xlu0 %v780, 96
    %v783 = vpop.permute.xlu0 %782
    %s785 = scalar_lea.vmem [#allocation4], 4
    %786 = vst.msk [vmem:[%s785] sm:$0x3] %vm449, %v783
    %v787 = vmul.f32 %v779, %v776
    %789 = vrot.lane.b32.xlu0 %v787, 96
    %v790 = vpop.permute.xlu0 %789
    %s792 = scalar_lea.vmem [#allocation5], 10
    %793 = vst.msk [vmem:[%s792] sm:$0x3] %vm449, %v790
    %s794 = scalar_lea.vmem %s1, 6
    %v795 = vld [vmem:[%s794] sm:$0x3]
    %s796 = scalar_lea.vmem %s1, 8
    %v797 = vld [vmem:[%s796] sm:$0x3]
    %s798 = scalar_lea.vmem [#allocation2], 6
    %v799 = vld [vmem:[%s798] sm:$0x3]
    %801 = vrot.lane.b32.xlu0 %v771, 96
    %v802 = vpop.permute.xlu0 %801
    %v803 = vsel %vm114, %v802, 0
    %805 = vmatpush.msra.mxu0 0.0
    %806 = vmatpush.msra.mxu0 0.0
    %807 = vmatpush.msra.mxu0 0.0
    %808 = vmatpush.msra.mxu0 0.0
    %809 = vmatpush.msra.mxu0 0.0
    %810 = vmatpush.msra.mxu0 0.0
    %811 = vmatpush.msra.mxu0 0.0
    %812 = vmatpush.msra.mxu0 0.0
    %813 = vmatpush.msra.mxu0 0.0
    %814 = vmatpush.msra.mxu0 0.0
    %815 = vmatpush.msra.mxu0 0.0
    %816 = vmatpush.msra.mxu0 0.0
    %817 = vmatpush.msra.mxu0 %v60
    %818 = vmatpush.msra.mxu0 %v59
    %819 = vmatpush.msra.mxu0 %v58
    %820 = vmatpush.msra.mxu0 %v57
    %821 = vmatmul.f32.gmra.mxu0 %v803
    %v822 = vpop.f32.mrf.mxu0
    %v823 = vadd.f32 0.0, %v822
    %824 = vdwg.mxu0
    %v825 = vadd.f32 %v799, %v823
    %v826 = vxor.u32 %v825, 2147483648
    %v827 = vmul.f32 %v826, 1.442695
    %v828 = vpow.pop %v827
    %v829 = vadd.f32 %v828, 1.0
    %v830 = vrcp.pop %v829
    %v831 = vmul.f32 %v829, %v830
    %v832 = vsub.f32 1.0, %v831
    %v833 = vmul.f32 %v830, %v832
    %v834 = vadd.f32 %v830, %v833
    %vm835 = vweird.f32 %v829
    %vm836 = vweird.f32 %v830
    %vm837 = vmor %vm835, %vm836
    %v838 = vsel %vm837, %v830, %v834
    %v839 = vand.u32 2147483647, %v829
    %vm840 = vcmp.eq.f32.partialorder %v839, 8.507059e+37
    %v841 = vand.u32 %v829, 2147483648
    %v842 = vor.u32 1.1754944e-38, %v841
    %v843 = vsel %vm840, %v842, %v838
    %v844 = vmul.f32 1.0, %v843
    %v845 = vadd.f32 %v823, %v341
    %847 = vrot.lane.b32.xlu0 %v845, 64
    %v848 = vpop.permute.xlu0 %847
    %v850 = vmul.f32 %v844, %v848
    %852 = vrot.lane.b32.xlu0 %v850, 64
    %v853 = vpop.permute.xlu0 %852
    %v855 = vadd.f32 %v799, %v853
    %v856 = vtanh.pop %v855
    %v857 = vsub.f32 1.0, %v844
    %859 = vrot.lane.b32.xlu0 %v856, 96
    %v860 = vpop.permute.xlu0 %859
    %v862 = vmul.f32 %v857, %v860
    %v863 = vmul.f32 %v844, %v771
    %v864 = vadd.f32 %v862, %v863
    %s865 = scalar_lea.vmem [#allocation3], 8
    %v866 = vld [vmem:[%s865] sm:$0x3]
    %868 = vrot.lane.b32.xlu0 %v779, 96
    %v869 = vpop.permute.xlu0 %868
    %v870 = vsel %vm114, %v869, 0
    %872 = vmatpush.msra.mxu0 0.0
    %873 = vmatpush.msra.mxu0 0.0
    %874 = vmatpush.msra.mxu0 0.0
    %875 = vmatpush.msra.mxu0 0.0
    %876 = vmatpush.msra.mxu0 0.0
    %877 = vmatpush.msra.mxu0 0.0
    %878 = vmatpush.msra.mxu0 0.0
    %879 = vmatpush.msra.mxu0 0.0
    %880 = vmatpush.msra.mxu0 0.0
    %881 = vmatpush.msra.mxu0 0.0
    %882 = vmatpush.msra.mxu0 0.0
    %883 = vmatpush.msra.mxu0 0.0
    %884 = vmatpush.msra.mxu0 %v64
    %885 = vmatpush.msra.mxu0 %v63
    %886 = vmatpush.msra.mxu0 %v62
    %887 = vmatpush.msra.mxu0 %v61
    %888 = vmatmul.f32.gmra.mxu0 %v870
    %v889 = vpop.f32.mrf.mxu0
    %v890 = vadd.f32 0.0, %v889
    %891 = vdwg.mxu0
    %v892 = vadd.f32 %v866, %v890
    %v893 = vxor.u32 %v892, 2147483648
    %v894 = vmul.f32 %v893, 1.442695
    %v895 = vpow.pop %v894
    %v896 = vadd.f32 %v895, 1.0
    %v897 = vrcp.pop %v896
    %v898 = vmul.f32 %v896, %v897
    %v899 = vsub.f32 1.0, %v898
    %v900 = vmul.f32 %v897, %v899
    %v901 = vadd.f32 %v897, %v900
    %vm902 = vweird.f32 %v896
    %vm903 = vweird.f32 %v897
    %vm904 = vmor %vm902, %vm903
    %v905 = vsel %vm904, %v897, %v901
    %v906 = vand.u32 2147483647, %v896
    %vm907 = vcmp.eq.f32.partialorder %v906, 8.507059e+37
    %v908 = vand.u32 %v896, 2147483648
    %v909 = vor.u32 1.1754944e-38, %v908
    %v910 = vsel %vm907, %v909, %v905
    %v911 = vmul.f32 1.0, %v910
    %v912 = vadd.f32 %v890, %v408
    %914 = vrot.lane.b32.xlu0 %v912, 64
    %v915 = vpop.permute.xlu0 %914
    %v917 = vmul.f32 %v911, %v915
    %919 = vrot.lane.b32.xlu0 %v917, 64
    %v920 = vpop.permute.xlu0 %919
    %v922 = vadd.f32 %v866, %v920
    %v923 = vtanh.pop %v922
    %v924 = vsub.f32 1.0, %v911
    %926 = vrot.lane.b32.xlu0 %v923, 96
    %v927 = vpop.permute.xlu0 %926
    %v929 = vmul.f32 %v924, %v927
    %v930 = vmul.f32 %v911, %v779
    %v931 = vadd.f32 %v929, %v930
    %v932 = vsub.f32 %v864, %v771
    %934 = vset.pattern.permute.xlu0 0
    %935 = vperm.xlu0 %934, %v795
    %v936 = vpop.permute.xlu0 %935
    %v938 = vmul.f32 %v936, %v932
    %v939 = vadd.f32 %v771, %v938
    %v940 = vsub.f32 %v931, %v779
    %942 = vset.pattern.permute.xlu0 0
    %943 = vperm.xlu0 %942, %v797
    %v944 = vpop.permute.xlu0 %943
    %v946 = vmul.f32 %v944, %v940
    %v947 = vadd.f32 %v779, %v946
    %v948 = vmul.f32 %v939, %v936
    %950 = vrot.lane.b32.xlu0 %v948, 96
    %v951 = vpop.permute.xlu0 %950
    %s953 = scalar_lea.vmem [#allocation4], 6
    %954 = vst.msk [vmem:[%s953] sm:$0x3] %vm449, %v951
    %v955 = vmul.f32 %v947, %v944
    %957 = vrot.lane.b32.xlu0 %v955, 96
    %v958 = vpop.permute.xlu0 %957
    %s960 = scalar_lea.vmem [#allocation5], 8
    %961 = vst.msk [vmem:[%s960] sm:$0x3] %vm449, %v958
    %v962 = vld [vmem:[%s796] sm:$0x3]
    %v963 = vld [vmem:[%s794] sm:$0x3]
    %s964 = scalar_lea.vmem [#allocation2], 8
    %v965 = vld [vmem:[%s964] sm:$0x3]
    %967 = vrot.lane.b32.xlu0 %v939, 96
    %v968 = vpop.permute.xlu0 %967
    %v969 = vsel %vm114, %v968, 0
    %971 = vmatpush.msra.mxu0 0.0
    %972 = vmatpush.msra.mxu0 0.0
    %973 = vmatpush.msra.mxu0 0.0
    %974 = vmatpush.msra.mxu0 0.0
    %975 = vmatpush.msra.mxu0 0.0
    %976 = vmatpush.msra.mxu0 0.0
    %977 = vmatpush.msra.mxu0 0.0
    %978 = vmatpush.msra.mxu0 0.0
    %979 = vmatpush.msra.mxu0 0.0
    %980 = vmatpush.msra.mxu0 0.0
    %981 = vmatpush.msra.mxu0 0.0
    %982 = vmatpush.msra.mxu0 0.0
    %983 = vmatpush.msra.mxu0 %v60
    %984 = vmatpush.msra.mxu0 %v59
    %985 = vmatpush.msra.mxu0 %v58
    %986 = vmatpush.msra.mxu0 %v57
    %987 = vmatmul.f32.gmra.mxu0 %v969
    %v988 = vpop.f32.mrf.mxu0
    %v989 = vadd.f32 0.0, %v988
    %990 = vdwg.mxu0
    %v991 = vadd.f32 %v965, %v989
    %v992 = vxor.u32 %v991, 2147483648
    %v993 = vmul.f32 %v992, 1.442695
    %v994 = vpow.pop %v993
    %v995 = vadd.f32 %v994, 1.0
    %v996 = vrcp.pop %v995
    %v997 = vmul.f32 %v995, %v996
    %v998 = vsub.f32 1.0, %v997
    %v999 = vmul.f32 %v996, %v998
    %v1000 = vadd.f32 %v996, %v999
    %vm1001 = vweird.f32 %v995
    %vm1002 = vweird.f32 %v996
    %vm1003 = vmor %vm1001, %vm1002
    %v1004 = vsel %vm1003, %v996, %v1000
    %v1005 = vand.u32 2147483647, %v995
    %vm1006 = vcmp.eq.f32.partialorder %v1005, 8.507059e+37
    %v1007 = vand.u32 %v995, 2147483648
    %v1008 = vor.u32 1.1754944e-38, %v1007
    %v1009 = vsel %vm1006, %v1008, %v1004
    %v1010 = vmul.f32 1.0, %v1009
    %v1011 = vadd.f32 %v989, %v341
    %1013 = vrot.lane.b32.xlu0 %v1011, 64
    %v1014 = vpop.permute.xlu0 %1013
    %v1016 = vmul.f32 %v1010, %v1014
    %1018 = vrot.lane.b32.xlu0 %v1016, 64
    %v1019 = vpop.permute.xlu0 %1018
    %v1021 = vadd.f32 %v965, %v1019
    %v1022 = vtanh.pop %v1021
    %v1023 = vsub.f32 1.0, %v1010
    %1025 = vrot.lane.b32.xlu0 %v1022, 96
    %v1026 = vpop.permute.xlu0 %1025
    %v1028 = vmul.f32 %v1023, %v1026
    %v1029 = vmul.f32 %v1010, %v939
    %v1030 = vadd.f32 %v1028, %v1029
    %s1031 = scalar_lea.vmem [#allocation3], 6
    %v1032 = vld [vmem:[%s1031] sm:$0x3]
    %1034 = vrot.lane.b32.xlu0 %v947, 96
    %v1035 = vpop.permute.xlu0 %1034
    %v1036 = vsel %vm114, %v1035, 0
    %1038 = vmatpush.msra.mxu0 0.0
    %1039 = vmatpush.msra.mxu0 0.0
    %1040 = vmatpush.msra.mxu0 0.0
    %1041 = vmatpush.msra.mxu0 0.0
    %1042 = vmatpush.msra.mxu0 0.0
    %1043 = vmatpush.msra.mxu0 0.0
    %1044 = vmatpush.msra.mxu0 0.0
    %1045 = vmatpush.msra.mxu0 0.0
    %1046 = vmatpush.msra.mxu0 0.0
    %1047 = vmatpush.msra.mxu0 0.0
    %1048 = vmatpush.msra.mxu0 0.0
    %1049 = vmatpush.msra.mxu0 0.0
    %1050 = vmatpush.msra.mxu0 %v64
    %1051 = vmatpush.msra.mxu0 %v63
    %1052 = vmatpush.msra.mxu0 %v62
    %1053 = vmatpush.msra.mxu0 %v61
    %1054 = vmatmul.f32.gmra.mxu0 %v1036
    %v1055 = vpop.f32.mrf.mxu0
    %v1056 = vadd.f32 0.0, %v1055
    %1057 = vdwg.mxu0
    %v1058 = vadd.f32 %v1032, %v1056
    %v1059 = vxor.u32 %v1058, 2147483648
    %v1060 = vmul.f32 %v1059, 1.442695
    %v1061 = vpow.pop %v1060
    %v1062 = vadd.f32 %v1061, 1.0
    %v1063 = vrcp.pop %v1062
    %v1064 = vmul.f32 %v1062, %v1063
    %v1065 = vsub.f32 1.0, %v1064
    %v1066 = vmul.f32 %v1063, %v1065
    %v1067 = vadd.f32 %v1063, %v1066
    %vm1068 = vweird.f32 %v1062
    %vm1069 = vweird.f32 %v1063
    %vm1070 = vmor %vm1068, %vm1069
    %v1071 = vsel %vm1070, %v1063, %v1067
    %v1072 = vand.u32 2147483647, %v1062
    %vm1073 = vcmp.eq.f32.partialorder %v1072, 8.507059e+37
    %v1074 = vand.u32 %v1062, 2147483648
    %v1075 = vor.u32 1.1754944e-38, %v1074
    %v1076 = vsel %vm1073, %v1075, %v1071
    %v1077 = vmul.f32 1.0, %v1076
    %v1078 = vadd.f32 %v1056, %v408
    %1080 = vrot.lane.b32.xlu0 %v1078, 64
    %v1081 = vpop.permute.xlu0 %1080
    %v1083 = vmul.f32 %v1077, %v1081
    %1085 = vrot.lane.b32.xlu0 %v1083, 64
    %v1086 = vpop.permute.xlu0 %1085
    %v1088 = vadd.f32 %v1032, %v1086
    %v1089 = vtanh.pop %v1088
    %v1090 = vsub.f32 1.0, %v1077
    %1092 = vrot.lane.b32.xlu0 %v1089, 96
    %v1093 = vpop.permute.xlu0 %1092
    %v1095 = vmul.f32 %v1090, %v1093
    %v1096 = vmul.f32 %v1077, %v947
    %v1097 = vadd.f32 %v1095, %v1096
    %v1098 = vsub.f32 %v1030, %v939
    %1100 = vset.pattern.permute.xlu0 0
    %1101 = vperm.xlu0 %1100, %v962
    %v1102 = vpop.permute.xlu0 %1101
    %v1104 = vmul.f32 %v1102, %v1098
    %v1105 = vadd.f32 %v939, %v1104
    %v1106 = vsub.f32 %v1097, %v947
    %1108 = vset.pattern.permute.xlu0 0
    %1109 = vperm.xlu0 %1108, %v963
    %v1110 = vpop.permute.xlu0 %1109
    %v1112 = vmul.f32 %v1110, %v1106
    %v1113 = vadd.f32 %v947, %v1112
    %v1114 = vmul.f32 %v1105, %v1102
    %1116 = vrot.lane.b32.xlu0 %v1114, 96
    %v1117 = vpop.permute.xlu0 %1116
    %s1119 = scalar_lea.vmem [#allocation4], 8
    %1120 = vst.msk [vmem:[%s1119] sm:$0x3] %vm449, %v1117
    %v1121 = vmul.f32 %v1113, %v1110
    %1123 = vrot.lane.b32.xlu0 %v1121, 96
    %v1124 = vpop.permute.xlu0 %1123
    %s1126 = scalar_lea.vmem [#allocation5], 6
    %1127 = vst.msk [vmem:[%s1126] sm:$0x3] %vm449, %v1124
    %v1128 = vld [vmem:[%s628] sm:$0x3]
    %v1129 = vld [vmem:[%s626] sm:$0x3]
    %s1130 = scalar_lea.vmem [#allocation2], 10
    %v1131 = vld [vmem:[%s1130] sm:$0x3]
    %1133 = vrot.lane.b32.xlu0 %v1105, 96
    %v1134 = vpop.permute.xlu0 %1133
    %v1135 = vsel %vm114, %v1134, 0
    %1137 = vmatpush.msra.mxu0 0.0
    %1138 = vmatpush.msra.mxu0 0.0
    %1139 = vmatpush.msra.mxu0 0.0
    %1140 = vmatpush.msra.mxu0 0.0
    %1141 = vmatpush.msra.mxu0 0.0
    %1142 = vmatpush.msra.mxu0 0.0
    %1143 = vmatpush.msra.mxu0 0.0
    %1144 = vmatpush.msra.mxu0 0.0
    %1145 = vmatpush.msra.mxu0 0.0
    %1146 = vmatpush.msra.mxu0 0.0
    %1147 = vmatpush.msra.mxu0 0.0
    %1148 = vmatpush.msra.mxu0 0.0
    %1149 = vmatpush.msra.mxu0 %v60
    %1150 = vmatpush.msra.mxu0 %v59
    %1151 = vmatpush.msra.mxu0 %v58
    %1152 = vmatpush.msra.mxu0 %v57
    %1153 = vmatmul.f32.gmra.mxu0 %v1135
    %v1154 = vpop.f32.mrf.mxu0
    %v1155 = vadd.f32 0.0, %v1154
    %1156 = vdwg.mxu0
    %v1157 = vadd.f32 %v1131, %v1155
    %v1158 = vxor.u32 %v1157, 2147483648
    %v1159 = vmul.f32 %v1158, 1.442695
    %v1160 = vpow.pop %v1159
    %v1161 = vadd.f32 %v1160, 1.0
    %v1162 = vrcp.pop %v1161
    %v1163 = vmul.f32 %v1161, %v1162
    %v1164 = vsub.f32 1.0, %v1163
    %v1165 = vmul.f32 %v1162, %v1164
    %v1166 = vadd.f32 %v1162, %v1165
    %vm1167 = vweird.f32 %v1161
    %vm1168 = vweird.f32 %v1162
    %vm1169 = vmor %vm1167, %vm1168
    %v1170 = vsel %vm1169, %v1162, %v1166
    %v1171 = vand.u32 2147483647, %v1161
    %vm1172 = vcmp.eq.f32.partialorder %v1171, 8.507059e+37
    %v1173 = vand.u32 %v1161, 2147483648
    %v1174 = vor.u32 1.1754944e-38, %v1173
    %v1175 = vsel %vm1172, %v1174, %v1170
    %v1176 = vmul.f32 1.0, %v1175
    %v1177 = vadd.f32 %v1155, %v341
    %1179 = vrot.lane.b32.xlu0 %v1177, 64
    %v1180 = vpop.permute.xlu0 %1179
    %v1182 = vmul.f32 %v1176, %v1180
    %1184 = vrot.lane.b32.xlu0 %v1182, 64
    %v1185 = vpop.permute.xlu0 %1184
    %v1187 = vadd.f32 %v1131, %v1185
    %v1188 = vtanh.pop %v1187
    %v1189 = vsub.f32 1.0, %v1176
    %1191 = vrot.lane.b32.xlu0 %v1188, 96
    %v1192 = vpop.permute.xlu0 %1191
    %v1194 = vmul.f32 %v1189, %v1192
    %v1195 = vmul.f32 %v1176, %v1105
    %v1196 = vadd.f32 %v1194, %v1195
    %s1197 = scalar_lea.vmem [#allocation3], 4
    %v1198 = vld [vmem:[%s1197] sm:$0x3]
    %1200 = vrot.lane.b32.xlu0 %v1113, 96
    %v1201 = vpop.permute.xlu0 %1200
    %v1202 = vsel %vm114, %v1201, 0
    %1204 = vmatpush.msra.mxu0 0.0
    %1205 = vmatpush.msra.mxu0 0.0
    %1206 = vmatpush.msra.mxu0 0.0
    %1207 = vmatpush.msra.mxu0 0.0
    %1208 = vmatpush.msra.mxu0 0.0
    %1209 = vmatpush.msra.mxu0 0.0
    %1210 = vmatpush.msra.mxu0 0.0
    %1211 = vmatpush.msra.mxu0 0.0
    %1212 = vmatpush.msra.mxu0 0.0
    %1213 = vmatpush.msra.mxu0 0.0
    %1214 = vmatpush.msra.mxu0 0.0
    %1215 = vmatpush.msra.mxu0 0.0
    %1216 = vmatpush.msra.mxu0 %v64
    %1217 = vmatpush.msra.mxu0 %v63
    %1218 = vmatpush.msra.mxu0 %v62
    %1219 = vmatpush.msra.mxu0 %v61
    %1220 = vmatmul.f32.gmra.mxu0 %v1202
    %v1221 = vpop.f32.mrf.mxu0
    %v1222 = vadd.f32 0.0, %v1221
    %1223 = vdwg.mxu0
    %v1224 = vadd.f32 %v1198, %v1222
    %v1225 = vxor.u32 %v1224, 2147483648
    %v1226 = vmul.f32 %v1225, 1.442695
    %v1227 = vpow.pop %v1226
    %v1228 = vadd.f32 %v1227, 1.0
    %v1229 = vrcp.pop %v1228
    %v1230 = vmul.f32 %v1228, %v1229
    %v1231 = vsub.f32 1.0, %v1230
    %v1232 = vmul.f32 %v1229, %v1231
    %v1233 = vadd.f32 %v1229, %v1232
    %vm1234 = vweird.f32 %v1228
    %vm1235 = vweird.f32 %v1229
    %vm1236 = vmor %vm1234, %vm1235
    %v1237 = vsel %vm1236, %v1229, %v1233
    %v1238 = vand.u32 2147483647, %v1228
    %vm1239 = vcmp.eq.f32.partialorder %v1238, 8.507059e+37
    %v1240 = vand.u32 %v1228, 2147483648
    %v1241 = vor.u32 1.1754944e-38, %v1240
    %v1242 = vsel %vm1239, %v1241, %v1237
    %v1243 = vmul.f32 1.0, %v1242
    %v1244 = vadd.f32 %v1222, %v408
    %1246 = vrot.lane.b32.xlu0 %v1244, 64
    %v1247 = vpop.permute.xlu0 %1246
    %v1249 = vmul.f32 %v1243, %v1247
    %1251 = vrot.lane.b32.xlu0 %v1249, 64
    %v1252 = vpop.permute.xlu0 %1251
    %v1254 = vadd.f32 %v1198, %v1252
    %v1255 = vtanh.pop %v1254
    %v1256 = vsub.f32 1.0, %v1243
    %1258 = vrot.lane.b32.xlu0 %v1255, 96
    %v1259 = vpop.permute.xlu0 %1258
    %v1261 = vmul.f32 %v1256, %v1259
    %v1262 = vmul.f32 %v1243, %v1113
    %v1263 = vadd.f32 %v1261, %v1262
    %v1264 = vsub.f32 %v1196, %v1105
    %1266 = vset.pattern.permute.xlu0 0
    %1267 = vperm.xlu0 %1266, %v1128
    %v1268 = vpop.permute.xlu0 %1267
    %v1270 = vmul.f32 %v1268, %v1264
    %v1271 = vadd.f32 %v1105, %v1270
    %v1272 = vsub.f32 %v1263, %v1113
    %1274 = vset.pattern.permute.xlu0 0
    %1275 = vperm.xlu0 %1274, %v1129
    %v1276 = vpop.permute.xlu0 %1275
    %v1278 = vmul.f32 %v1276, %v1272
    %v1279 = vadd.f32 %v1113, %v1278
    %v1280 = vmul.f32 %v1271, %v1268
    %1282 = vrot.lane.b32.xlu0 %v1280, 96
    %v1283 = vpop.permute.xlu0 %1282
    %s1285 = scalar_lea.vmem [#allocation4], 10
    %1286 = vst.msk [vmem:[%s1285] sm:$0x3] %vm449, %v1283
    %v1287 = vmul.f32 %v1279, %v1276
    %1289 = vrot.lane.b32.xlu0 %v1287, 96
    %v1290 = vpop.permute.xlu0 %1289
    %s1292 = scalar_lea.vmem [#allocation5], 4
    %1293 = vst.msk [vmem:[%s1292] sm:$0x3] %vm449, %v1290
    %v1294 = vld [vmem:[%s460] sm:$0x3]
    %v1295 = vld [vmem:[%s458] sm:$0x3]
    %s1296 = scalar_lea.vmem [#allocation2], 12
    %v1297 = vld [vmem:[%s1296] sm:$0x3]
    %1299 = vrot.lane.b32.xlu0 %v1271, 96
    %v1300 = vpop.permute.xlu0 %1299
    %v1301 = vsel %vm114, %v1300, 0
    %1303 = vmatpush.msra.mxu0 0.0
    %1304 = vmatpush.msra.mxu0 0.0
    %1305 = vmatpush.msra.mxu0 0.0
    %1306 = vmatpush.msra.mxu0 0.0
    %1307 = vmatpush.msra.mxu0 0.0
    %1308 = vmatpush.msra.mxu0 0.0
    %1309 = vmatpush.msra.mxu0 0.0
    %1310 = vmatpush.msra.mxu0 0.0
    %1311 = vmatpush.msra.mxu0 0.0
    %1312 = vmatpush.msra.mxu0 0.0
    %1313 = vmatpush.msra.mxu0 0.0
    %1314 = vmatpush.msra.mxu0 0.0
    %1315 = vmatpush.msra.mxu0 %v60
    %1316 = vmatpush.msra.mxu0 %v59
    %1317 = vmatpush.msra.mxu0 %v58
    %1318 = vmatpush.msra.mxu0 %v57
    %1319 = vmatmul.f32.gmra.mxu0 %v1301
    %v1320 = vpop.f32.mrf.mxu0
    %v1321 = vadd.f32 0.0, %v1320
    %1322 = vdwg.mxu0
    %v1323 = vadd.f32 %v1297, %v1321
    %v1324 = vxor.u32 %v1323, 2147483648
    %v1325 = vmul.f32 %v1324, 1.442695
    %v1326 = vpow.pop %v1325
    %v1327 = vadd.f32 %v1326, 1.0
    %v1328 = vrcp.pop %v1327
    %v1329 = vmul.f32 %v1327, %v1328
    %v1330 = vsub.f32 1.0, %v1329
    %v1331 = vmul.f32 %v1328, %v1330
    %v1332 = vadd.f32 %v1328, %v1331
    %vm1333 = vweird.f32 %v1327
    %vm1334 = vweird.f32 %v1328
    %vm1335 = vmor %vm1333, %vm1334
    %v1336 = vsel %vm1335, %v1328, %v1332
    %v1337 = vand.u32 2147483647, %v1327
    %vm1338 = vcmp.eq.f32.partialorder %v1337, 8.507059e+37
    %v1339 = vand.u32 %v1327, 2147483648
    %v1340 = vor.u32 1.1754944e-38, %v1339
    %v1341 = vsel %vm1338, %v1340, %v1336
    %v1342 = vmul.f32 1.0, %v1341
    %v1343 = vadd.f32 %v1321, %v341
    %1345 = vrot.lane.b32.xlu0 %v1343, 64
    %v1346 = vpop.permute.xlu0 %1345
    %v1348 = vmul.f32 %v1342, %v1346
    %1350 = vrot.lane.b32.xlu0 %v1348, 64
    %v1351 = vpop.permute.xlu0 %1350
    %v1353 = vadd.f32 %v1297, %v1351
    %v1354 = vtanh.pop %v1353
    %v1355 = vsub.f32 1.0, %v1342
    %1357 = vrot.lane.b32.xlu0 %v1354, 96
    %v1358 = vpop.permute.xlu0 %1357
    %v1360 = vmul.f32 %v1355, %v1358
    %v1361 = vmul.f32 %v1342, %v1271
    %v1362 = vadd.f32 %v1360, %v1361
    %s1363 = scalar_lea.vmem [#allocation3], 2
    %v1364 = vld [vmem:[%s1363] sm:$0x3]
    %1366 = vrot.lane.b32.xlu0 %v1279, 96
    %v1367 = vpop.permute.xlu0 %1366
    %v1368 = vsel %vm114, %v1367, 0
    %1370 = vmatpush.msra.mxu0 0.0
    %1371 = vmatpush.msra.mxu0 0.0
    %1372 = vmatpush.msra.mxu0 0.0
    %1373 = vmatpush.msra.mxu0 0.0
    %1374 = vmatpush.msra.mxu0 0.0
    %1375 = vmatpush.msra.mxu0 0.0
    %1376 = vmatpush.msra.mxu0 0.0
    %1377 = vmatpush.msra.mxu0 0.0
    %1378 = vmatpush.msra.mxu0 0.0
    %1379 = vmatpush.msra.mxu0 0.0
    %1380 = vmatpush.msra.mxu0 0.0
    %1381 = vmatpush.msra.mxu0 0.0
    %1382 = vmatpush.msra.mxu0 %v64
    %1383 = vmatpush.msra.mxu0 %v63
    %1384 = vmatpush.msra.mxu0 %v62
    %1385 = vmatpush.msra.mxu0 %v61
    %1386 = vmatmul.f32.gmra.mxu0 %v1368
    %v1387 = vpop.f32.mrf.mxu0
    %v1388 = vadd.f32 0.0, %v1387
    %1389 = vdwg.mxu0
    %v1390 = vadd.f32 %v1364, %v1388
    %v1391 = vxor.u32 %v1390, 2147483648
    %v1392 = vmul.f32 %v1391, 1.442695
    %v1393 = vpow.pop %v1392
    %v1394 = vadd.f32 %v1393, 1.0
    %v1395 = vrcp.pop %v1394
    %v1396 = vmul.f32 %v1394, %v1395
    %v1397 = vsub.f32 1.0, %v1396
    %v1398 = vmul.f32 %v1395, %v1397
    %v1399 = vadd.f32 %v1395, %v1398
    %vm1400 = vweird.f32 %v1394
    %vm1401 = vweird.f32 %v1395
    %vm1402 = vmor %vm1400, %vm1401
    %v1403 = vsel %vm1402, %v1395, %v1399
    %v1404 = vand.u32 2147483647, %v1394
    %vm1405 = vcmp.eq.f32.partialorder %v1404, 8.507059e+37
    %v1406 = vand.u32 %v1394, 2147483648
    %v1407 = vor.u32 1.1754944e-38, %v1406
    %v1408 = vsel %vm1405, %v1407, %v1403
    %v1409 = vmul.f32 1.0, %v1408
    %v1410 = vadd.f32 %v1388, %v408
    %1412 = vrot.lane.b32.xlu0 %v1410, 64
    %v1413 = vpop.permute.xlu0 %1412
    %v1415 = vmul.f32 %v1409, %v1413
    %1417 = vrot.lane.b32.xlu0 %v1415, 64
    %v1418 = vpop.permute.xlu0 %1417
    %v1420 = vadd.f32 %v1364, %v1418
    %v1421 = vtanh.pop %v1420
    %v1422 = vsub.f32 1.0, %v1409
    %1424 = vrot.lane.b32.xlu0 %v1421, 96
    %v1425 = vpop.permute.xlu0 %1424
    %v1427 = vmul.f32 %v1422, %v1425
    %v1428 = vmul.f32 %v1409, %v1279
    %v1429 = vadd.f32 %v1427, %v1428
    %v1430 = vsub.f32 %v1362, %v1271
    %1432 = vset.pattern.permute.xlu0 0
    %1433 = vperm.xlu0 %1432, %v1294
    %v1434 = vpop.permute.xlu0 %1433
    %v1436 = vmul.f32 %v1434, %v1430
    %v1437 = vadd.f32 %v1271, %v1436
    %v1438 = vsub.f32 %v1429, %v1279
    %1440 = vset.pattern.permute.xlu0 0
    %1441 = vperm.xlu0 %1440, %v1295
    %v1442 = vpop.permute.xlu0 %1441
    %v1444 = vmul.f32 %v1442, %v1438
    %v1445 = vadd.f32 %v1279, %v1444
    %v1446 = vmul.f32 %v1437, %v1434
    %1448 = vrot.lane.b32.xlu0 %v1446, 96
    %v1449 = vpop.permute.xlu0 %1448
    %s1451 = scalar_lea.vmem [#allocation4], 12
    %1452 = vst.msk [vmem:[%s1451] sm:$0x3] %vm449, %v1449
    %v1453 = vmul.f32 %v1445, %v1442
    %1455 = vrot.lane.b32.xlu0 %v1453, 96
    %v1456 = vpop.permute.xlu0 %1455
    %s1458 = scalar_lea.vmem [#allocation5], 2
    %1459 = vst.msk [vmem:[%s1458] sm:$0x3] %vm449, %v1456
    %v1460 = vld [vmem:[%s292] sm:$0x3]
    %v1461 = vld [vmem:[%s1] sm:$0x3]
    %s1462 = scalar_lea.vmem [#allocation2], 14
    %v1463 = vld [vmem:[%s1462] sm:$0x3]
    %1465 = vrot.lane.b32.xlu0 %v1437, 96
    %v1466 = vpop.permute.xlu0 %1465
    %v1467 = vsel %vm114, %v1466, 0
    %1469 = vmatpush.msra.mxu0 0.0
    %1470 = vmatpush.msra.mxu0 0.0
    %1471 = vmatpush.msra.mxu0 0.0
    %1472 = vmatpush.msra.mxu0 0.0
    %1473 = vmatpush.msra.mxu0 0.0
    %1474 = vmatpush.msra.mxu0 0.0
    %1475 = vmatpush.msra.mxu0 0.0
    %1476 = vmatpush.msra.mxu0 0.0
    %1477 = vmatpush.msra.mxu0 0.0
    %1478 = vmatpush.msra.mxu0 0.0
    %1479 = vmatpush.msra.mxu0 0.0
    %1480 = vmatpush.msra.mxu0 0.0
    %1481 = vmatpush.msra.mxu0 %v60
    %1482 = vmatpush.msra.mxu0 %v59
    %1483 = vmatpush.msra.mxu0 %v58
    %1484 = vmatpush.msra.mxu0 %v57
    %1485 = vmatmul.f32.gmra.mxu0 %v1467
    %v1486 = vpop.f32.mrf.mxu0
    %v1487 = vadd.f32 0.0, %v1486
    %1488 = vdwg.mxu0
    %v1489 = vadd.f32 %v1463, %v1487
    %v1490 = vxor.u32 %v1489, 2147483648
    %v1491 = vmul.f32 %v1490, 1.442695
    %v1492 = vpow.pop %v1491
    %v1493 = vadd.f32 %v1492, 1.0
    %v1494 = vrcp.pop %v1493
    %v1495 = vmul.f32 %v1493, %v1494
    %v1496 = vsub.f32 1.0, %v1495
    %v1497 = vmul.f32 %v1494, %v1496
    %v1498 = vadd.f32 %v1494, %v1497
    %vm1499 = vweird.f32 %v1493
    %vm1500 = vweird.f32 %v1494
    %vm1501 = vmor %vm1499, %vm1500
    %v1502 = vsel %vm1501, %v1494, %v1498
    %v1503 = vand.u32 2147483647, %v1493
    %vm1504 = vcmp.eq.f32.partialorder %v1503, 8.507059e+37
    %v1505 = vand.u32 %v1493, 2147483648
    %v1506 = vor.u32 1.1754944e-38, %v1505
    %v1507 = vsel %vm1504, %v1506, %v1502
    %v1508 = vmul.f32 1.0, %v1507
    %v1509 = vadd.f32 %v1487, %v341
    %1511 = vrot.lane.b32.xlu0 %v1509, 64
    %v1512 = vpop.permute.xlu0 %1511
    %v1514 = vmul.f32 %v1508, %v1512
    %1516 = vrot.lane.b32.xlu0 %v1514, 64
    %v1517 = vpop.permute.xlu0 %1516
    %v1519 = vadd.f32 %v1463, %v1517
    %v1520 = vtanh.pop %v1519
    %v1521 = vsub.f32 1.0, %v1508
    %1523 = vrot.lane.b32.xlu0 %v1520, 96
    %v1524 = vpop.permute.xlu0 %1523
    %v1526 = vmul.f32 %v1521, %v1524
    %v1527 = vmul.f32 %v1508, %v1437
    %v1528 = vadd.f32 %v1526, %v1527
    %v1529 = vld [vmem:[#allocation3] sm:$0x3]
    %1531 = vrot.lane.b32.xlu0 %v1445, 96
    %v1532 = vpop.permute.xlu0 %1531
    %v1533 = vsel %vm114, %v1532, 0
    %1535 = vmatpush.msra.mxu0 0.0
    %1536 = vmatpush.msra.mxu0 0.0
    %1537 = vmatpush.msra.mxu0 0.0
    %1538 = vmatpush.msra.mxu0 0.0
    %1539 = vmatpush.msra.mxu0 0.0
    %1540 = vmatpush.msra.mxu0 0.0
    %1541 = vmatpush.msra.mxu0 0.0
    %1542 = vmatpush.msra.mxu0 0.0
    %1543 = vmatpush.msra.mxu0 0.0
    %1544 = vmatpush.msra.mxu0 0.0
    %1545 = vmatpush.msra.mxu0 0.0
    %1546 = vmatpush.msra.mxu0 0.0
    %1547 = vmatpush.msra.mxu0 %v64
    %1548 = vmatpush.msra.mxu0 %v63
    %1549 = vmatpush.msra.mxu0 %v62
    %1550 = vmatpush.msra.mxu0 %v61
    %1551 = vmatmul.f32.gmra.mxu0 %v1533
    %v1552 = vpop.f32.mrf.mxu0
    %v1553 = vadd.f32 0.0, %v1552
    %1554 = vdwg.mxu0
    %v1555 = vadd.f32 %v1529, %v1553
    %v1556 = vxor.u32 %v1555, 2147483648
    %v1557 = vmul.f32 %v1556, 1.442695
    %v1558 = vpow.pop %v1557
    %v1559 = vadd.f32 %v1558, 1.0
    %v1560 = vrcp.pop %v1559
    %v1561 = vmul.f32 %v1559, %v1560
    %v1562 = vsub.f32 1.0, %v1561
    %v1563 = vmul.f32 %v1560, %v1562
    %v1564 = vadd.f32 %v1560, %v1563
    %vm1565 = vweird.f32 %v1559
    %vm1566 = vweird.f32 %v1560
    %vm1567 = vmor %vm1565, %vm1566
    %v1568 = vsel %vm1567, %v1560, %v1564
    %v1569 = vand.u32 2147483647, %v1559
    %vm1570 = vcmp.eq.f32.partialorder %v1569, 8.507059e+37
    %v1571 = vand.u32 %v1559, 2147483648
    %v1572 = vor.u32 1.1754944e-38, %v1571
    %v1573 = vsel %vm1570, %v1572, %v1568
    %v1574 = vmul.f32 1.0, %v1573
    %v1575 = vadd.f32 %v1553, %v408
    %1577 = vrot.lane.b32.xlu0 %v1575, 64
    %v1578 = vpop.permute.xlu0 %1577
    %v1580 = vmul.f32 %v1574, %v1578
    %1582 = vrot.lane.b32.xlu0 %v1580, 64
    %v1583 = vpop.permute.xlu0 %1582
    %v1585 = vadd.f32 %v1529, %v1583
    %v1586 = vtanh.pop %v1585
    %v1587 = vsub.f32 1.0, %v1574
    %1589 = vrot.lane.b32.xlu0 %v1586, 96
    %v1590 = vpop.permute.xlu0 %1589
    %v1592 = vmul.f32 %v1587, %v1590
    %v1593 = vmul.f32 %v1574, %v1445
    %v1594 = vadd.f32 %v1592, %v1593
    %v1595 = vsub.f32 %v1528, %v1437
    %1597 = vset.pattern.permute.xlu0 0
    %1598 = vperm.xlu0 %1597, %v1460
    %v1599 = vpop.permute.xlu0 %1598
    %v1601 = vmul.f32 %v1599, %v1595
    %v1602 = vadd.f32 %v1437, %v1601
    %v1603 = vsub.f32 %v1594, %v1445
    %1605 = vset.pattern.permute.xlu0 0
    %1606 = vperm.xlu0 %1605, %v1461
    %v1607 = vpop.permute.xlu0 %1606
    %v1609 = vmul.f32 %v1607, %v1603
    %v1610 = vadd.f32 %v1445, %v1609
    %v1611 = vmul.f32 %v1602, %v1599
    %1613 = vrot.lane.b32.xlu0 %v1611, 96
    %v1614 = vpop.permute.xlu0 %1613
    %s1616 = scalar_lea.vmem [#allocation4], 14
    %1617 = vst.msk [vmem:[%s1616] sm:$0x3] %vm449, %v1614
    %v1618 = vmul.f32 %v1610, %v1607
    %1620 = vrot.lane.b32.xlu0 %v1618, 96
    %v1621 = vpop.permute.xlu0 %1620
    %1623 = vst.msk [vmem:[#allocation5] sm:$0x3] %vm449, %v1621
    %v1624 = vld [vmem:[#allocation4] sm:$0x3]
    %v1625 = vld [vmem:[#allocation4 + $0x2] sm:$0x3]
    %v1626 = vld [vmem:[#allocation4 + $0x4] sm:$0x3]
    %v1627 = vld [vmem:[#allocation4 + $0x6] sm:$0x3]
    %v1628 = vld [vmem:[#allocation4 + $0x8] sm:$0x3]
    %v1629 = vld [vmem:[#allocation4 + $0xa] sm:$0x3]
    %v1630 = vld [vmem:[#allocation4 + $0xc] sm:$0x3]
    %v1631 = vld [vmem:[#allocation4 + $0xe] sm:$0x3]
    %v1632 = vld [vmem:[#allocation5] sm:$0x3]
    %v1633 = vld [vmem:[#allocation5 + $0x2] sm:$0x3]
    %v1634 = vld [vmem:[#allocation5 + $0x4] sm:$0x3]
    %v1635 = vld [vmem:[#allocation5 + $0x6] sm:$0x3]
    %v1636 = vld [vmem:[#allocation5 + $0x8] sm:$0x3]
    %v1637 = vld [vmem:[#allocation5 + $0xa] sm:$0x3]
    %v1638 = vld [vmem:[#allocation5 + $0xc] sm:$0x3]
    %v1639 = vld [vmem:[#allocation5 + $0xe] sm:$0x3]
    %1648 = vrot.lane.b32.xlu0 %v1632, 32
    %v1649 = vpop.permute.xlu0 %1648
    %1650 = vrot.lane.b32.xlu0 %v1633, 32
    %v1651 = vpop.permute.xlu0 %1650
    %1652 = vrot.lane.b32.xlu0 %v1634, 32
    %v1653 = vpop.permute.xlu0 %1652
    %1654 = vrot.lane.b32.xlu0 %v1635, 32
    %v1655 = vpop.permute.xlu0 %1654
    %1656 = vrot.lane.b32.xlu0 %v1636, 32
    %v1657 = vpop.permute.xlu0 %1656
    %1658 = vrot.lane.b32.xlu0 %v1637, 32
    %v1659 = vpop.permute.xlu0 %1658
    %1660 = vrot.lane.b32.xlu0 %v1638, 32
    %v1661 = vpop.permute.xlu0 %1660
    %1662 = vrot.lane.b32.xlu0 %v1639, 32
    %v1663 = vpop.permute.xlu0 %1662
    %v1672 = vsel %vm114, %v1624, %v1649
    %v1673 = vsel %vm114, %v1625, %v1651
    %v1674 = vsel %vm114, %v1626, %v1653
    %v1675 = vsel %vm114, %v1627, %v1655
    %v1676 = vsel %vm114, %v1628, %v1657
    %v1677 = vsel %vm114, %v1629, %v1659
    %v1678 = vsel %vm114, %v1630, %v1661
    %v1679 = vsel %vm114, %v1631, %v1663
    %v1680 = vld [vmem:[%s8] sm:$0xff]
    %v1681 = vld [vmem:[%s8 + $0x8] sm:$0xff]
    %v1682 = vld [vmem:[%s8 + $0x10] sm:$0xff]
    %v1683 = vld [vmem:[%s8 + $0x18] sm:$0xff]
    %v1684 = vld [vmem:[%s8 + $0x20] sm:$0xff]
    %v1685 = vld [vmem:[%s8 + $0x28] sm:$0xff]
    %v1686 = vld [vmem:[%s8 + $0x30] sm:$0xff]
    %v1687 = vld [vmem:[%s8 + $0x38] sm:$0xff]
    %v1688 = vld [vmem:[%s9] sm:$0x1]
    %v1690 = vperm.slane %v1688, 0
    %1700 = vst [vmem:[#allocation1] ss:$4 sm:$0xff] %v1672
    %s1701 = scalar_lea.vmem [#allocation1], 1
    %1702 = vst [vmem:[%s1701] ss:$4 sm:$0xff] %v1673
    %s1703 = scalar_lea.vmem [#allocation1], 2
    %1704 = vst [vmem:[%s1703] ss:$4 sm:$0xff] %v1674
    %s1705 = scalar_lea.vmem [#allocation1], 3
    %1706 = vst [vmem:[%s1705] ss:$4 sm:$0xff] %v1675
    %s1707 = scalar_lea.vmem [#allocation1], 32
    %1708 = vst [vmem:[%s1707] ss:$4 sm:$0xff] %v1676
    %s1709 = scalar_lea.vmem [#allocation1], 33
    %1710 = vst [vmem:[%s1709] ss:$4 sm:$0xff] %v1677
    %s1711 = scalar_lea.vmem [#allocation1], 34
    %1712 = vst [vmem:[%s1711] ss:$4 sm:$0xff] %v1678
    %s1713 = scalar_lea.vmem [#allocation1], 35
    %1714 = vst [vmem:[%s1713] ss:$4 sm:$0xff] %v1679
    %v1715 = vld.sshfl [vmem:[#allocation1] sm:$0xff pattern:$0x73625140]
    %v1716 = vld.sshfl [vmem:[#allocation1 + $0x20] sm:$0xff pattern:$0x73625140]
    %vm1717 = vcmask 523264
    %v1718 = vsel %vm1717, %v1715, 0
    %v1720 = vsel %vm1717, %v1716, 0
    %1722 = vmatpush.msra.mxu0 0.0
    %1723 = vmatpush.msra.mxu0 0.0
    %1724 = vmatpush.msra.mxu0 0.0
    %1725 = vmatpush.msra.mxu0 0.0
    %1726 = vmatpush.msra.mxu0 0.0
    %1727 = vmatpush.msra.mxu0 0.0
    %1728 = vmatpush.msra.mxu0 0.0
    %1729 = vmatpush.msra.mxu0 0.0
    %1730 = vmatpush.msra.mxu0 %v1687
    %1731 = vmatpush.msra.mxu0 %v1686
    %1732 = vmatpush.msra.mxu0 %v1685
    %1733 = vmatpush.msra.mxu0 %v1684
    %1734 = vmatpush.msra.mxu0 %v1683
    %1735 = vmatpush.msra.mxu0 %v1682
    %1736 = vmatpush.msra.mxu0 %v1681
    %1737 = vmatpush.msra.mxu0 %v1680
    %1738 = vmatmul.f32.gmra.mxu0 %v1718
    %v1739 = vpop.f32.mrf.mxu0
    %v1740 = vadd.f32 %v1690, %v1739
    %1741 = vmatmul.f32.gmra.mxu0 %v1720
    %v1742 = vpop.f32.mrf.mxu0
    %v1743 = vadd.f32 %v1690, %v1742
    %1744 = vdwg.mxu0
    %v1745 = vtanh.pop %v1740
    %v1746 = vtanh.pop %v1743
    %v1747 = vld [vmem:[%s10] sm:$0x1]
    %v1749 = vperm.slane %v1747, 0
    %v1751 = vmul.f32 %v1745, %v1749
    %v1752 = vmul.f32 %v1746, %v1749
    %v1753 = vsel %vm114, %v1751, 0.0
    %1754 = vadd.xlane.f32.xlu0 %v1753
    %v1755 = vpop.xlane.xlu0 %1754
    %v1756 = vsel %vm114, %v1752, 0.0
    %1757 = vadd.xlane.f32.xlu0 %v1756
    %v1758 = vpop.xlane.xlu0 %1757
    %v1762 = vunpack.c.l.s4 269488144
    %v1763 = vunpack.c.0.s8 %v1762
    %v1764 = vperm.slane %v1755, %v1763
    %v1766 = vunpack.c.l.s4 842150450
    %v1767 = vunpack.c.0.s8 %v1766
    %v1768 = vperm.slane %v1755, %v1767
    %v1770 = vunpack.c.l.s4 1414812756
    %v1771 = vunpack.c.0.s8 %v1770
    %v1772 = vperm.slane %v1755, %v1771
    %v1774 = vunpack.c.l.s4 1987475062
    %v1775 = vunpack.c.0.s8 %v1774
    %v1776 = vperm.slane %v1755, %v1775
    %v1778 = vunpack.c.l.s4 269488144
    %v1779 = vunpack.c.0.s8 %v1778
    %v1780 = vperm.slane %v1758, %v1779
    %v1782 = vunpack.c.l.s4 842150450
    %v1783 = vunpack.c.0.s8 %v1782
    %v1784 = vperm.slane %v1758, %v1783
    %v1786 = vunpack.c.l.s4 1414812756
    %v1787 = vunpack.c.0.s8 %v1786
    %v1788 = vperm.slane %v1758, %v1787
    %v1790 = vunpack.c.l.s4 1987475062
    %v1791 = vunpack.c.0.s8 %v1790
    %v1792 = vperm.slane %v1758, %v1791
    %v1801 = vld [vmem:[%s1] sm:$0x3]
    %v1802 = vld [vmem:[%s1 + $0x2] sm:$0x3]
    %v1803 = vld [vmem:[%s1 + $0x4] sm:$0x3]
    %v1804 = vld [vmem:[%s1 + $0x6] sm:$0x3]
    %v1805 = vld [vmem:[%s1 + $0x8] sm:$0x3]
    %v1806 = vld [vmem:[%s1 + $0xa] sm:$0x3]
    %v1807 = vld [vmem:[%s1 + $0xc] sm:$0x3]
    %v1808 = vld [vmem:[%s1 + $0xe] sm:$0x3]
    %vm1809 = vcmp.gt.f32.partialorder %v1801, 0.0
    %vm1810 = vcmp.gt.f32.partialorder %v1802, 0.0
    %vm1811 = vcmp.gt.f32.partialorder %v1803, 0.0
    %vm1812 = vcmp.gt.f32.partialorder %v1804, 0.0
    %vm1813 = vcmp.gt.f32.partialorder %v1805, 0.0
    %vm1814 = vcmp.gt.f32.partialorder %v1806, 0.0
    %vm1815 = vcmp.gt.f32.partialorder %v1807, 0.0
    %vm1816 = vcmp.gt.f32.partialorder %v1808, 0.0
    %v1817 = vsel %vm1809, %v1764, -1e+30
    %v1818 = vsel %vm1810, %v1768, -1e+30
    %v1819 = vsel %vm1811, %v1772, -1e+30
    %v1820 = vsel %vm1812, %v1776, -1e+30
    %v1821 = vsel %vm1813, %v1780, -1e+30
    %v1822 = vsel %vm1814, %v1784, -1e+30
    %v1823 = vsel %vm1815, %v1788, -1e+30
    %v1824 = vsel %vm1816, %v1792, -1e+30
    %vm1825 = vcmask 1024
    %v1826 = vsel %vm1825, %v1817, -inf
    %v1827 = vsel %vm1825, %v1818, -inf
    %v1828 = vsel %vm1825, %v1819, -inf
    %v1829 = vsel %vm1825, %v1820, -inf
    %v1830 = vsel %vm1825, %v1821, -inf
    %v1831 = vmax.f32 %v1826, %v1830
    %v1832 = vsel %vm1825, %v1822, -inf
    %v1833 = vmax.f32 %v1827, %v1832
    %v1834 = vsel %vm1825, %v1823, -inf
    %v1835 = vmax.f32 %v1828, %v1834
    %v1836 = vsel %vm1825, %v1824, -inf
    %v1837 = vmax.f32 %v1829, %v1836
    %v1838 = vmax.f32 %v1831, %v1833
    %v1839 = vmax.f32 %v1835, %v1837
    %v1840 = vmax.f32 %v1838, %v1839
    %v1841 = vsub.f32 %v1764, %v1840
    %v1842 = vsub.f32 %v1768, %v1840
    %v1843 = vsub.f32 %v1772, %v1840
    %v1844 = vsub.f32 %v1776, %v1840
    %v1845 = vsub.f32 %v1780, %v1840
    %v1846 = vsub.f32 %v1784, %v1840
    %v1847 = vsub.f32 %v1788, %v1840
    %v1848 = vsub.f32 %v1792, %v1840
    %v1849 = vmul.f32 %v1841, 1.442695
    %v1850 = vpow.pop %v1849
    %v1851 = vmul.f32 %v1842, 1.442695
    %v1852 = vpow.pop %v1851
    %v1853 = vmul.f32 %v1843, 1.442695
    %v1854 = vpow.pop %v1853
    %v1855 = vmul.f32 %v1844, 1.442695
    %v1856 = vpow.pop %v1855
    %v1857 = vmul.f32 %v1845, 1.442695
    %v1858 = vpow.pop %v1857
    %v1859 = vmul.f32 %v1846, 1.442695
    %v1860 = vpow.pop %v1859
    %v1861 = vmul.f32 %v1847, 1.442695
    %v1862 = vpow.pop %v1861
    %v1863 = vmul.f32 %v1848, 1.442695
    %v1864 = vpow.pop %v1863
    %v1865 = vmul.f32 %v1850, %v1801
    %v1866 = vmul.f32 %v1852, %v1802
    %v1867 = vmul.f32 %v1854, %v1803
    %v1868 = vmul.f32 %v1856, %v1804
    %v1869 = vmul.f32 %v1858, %v1805
    %v1870 = vmul.f32 %v1860, %v1806
    %v1871 = vmul.f32 %v1862, %v1807
    %v1872 = vmul.f32 %v1864, %v1808
    %v1873 = vsel %vm1825, %v1865, 0.0
    %v1874 = vsel %vm1825, %v1866, 0.0
    %v1875 = vadd.f32 %v1873, %v1874
    %v1876 = vsel %vm1825, %v1867, 0.0
    %v1877 = vadd.f32 %v1875, %v1876
    %v1878 = vsel %vm1825, %v1868, 0.0
    %v1879 = vadd.f32 %v1877, %v1878
    %v1880 = vsel %vm1825, %v1869, 0.0
    %v1881 = vadd.f32 %v1879, %v1880
    %v1882 = vsel %vm1825, %v1870, 0.0
    %v1883 = vadd.f32 %v1881, %v1882
    %v1884 = vsel %vm1825, %v1871, 0.0
    %v1885 = vadd.f32 %v1883, %v1884
    %v1886 = vsel %vm1825, %v1872, 0.0
    %v1887 = vadd.f32 %v1885, %v1886
    %v1888 = vmax.f32 %v1887, 1e-30
    %v1889 = vrcp.pop %v1888
    %v1890 = vmul.f32 %v1865, %v1889
    %v1891 = vmul.f32 %v1866, %v1889
    %v1892 = vmul.f32 %v1867, %v1889
    %v1893 = vmul.f32 %v1868, %v1889
    %v1894 = vmul.f32 %v1869, %v1889
    %v1895 = vmul.f32 %v1870, %v1889
    %v1896 = vmul.f32 %v1871, %v1889
    %v1897 = vmul.f32 %v1872, %v1889
    %1899 = vset.pattern.permute.xlu0 0
    %1900 = vperm.xlu0 %1899, %v1890
    %v1901 = vpop.permute.xlu0 %1900
    %v1904 = vunpack.c.l.s4 269488144
    %v1905 = vunpack.c.0.s8 %v1904
    %v1906 = vperm.slane %v1901, %v1905
    %1908 = vset.pattern.permute.xlu0 0
    %1909 = vperm.xlu0 %1908, %v1891
    %v1910 = vpop.permute.xlu0 %1909
    %v1913 = vunpack.c.l.s4 269488144
    %v1914 = vunpack.c.0.s8 %v1913
    %v1915 = vperm.slane %v1910, %v1914
    %1917 = vset.pattern.permute.xlu0 0
    %1918 = vperm.xlu0 %1917, %v1892
    %v1919 = vpop.permute.xlu0 %1918
    %v1922 = vunpack.c.l.s4 269488144
    %v1923 = vunpack.c.0.s8 %v1922
    %v1924 = vperm.slane %v1919, %v1923
    %1926 = vset.pattern.permute.xlu0 0
    %1927 = vperm.xlu0 %1926, %v1893
    %v1928 = vpop.permute.xlu0 %1927
    %v1931 = vunpack.c.l.s4 269488144
    %v1932 = vunpack.c.0.s8 %v1931
    %v1933 = vperm.slane %v1928, %v1932
    %1935 = vset.pattern.permute.xlu0 0
    %1936 = vperm.xlu0 %1935, %v1894
    %v1937 = vpop.permute.xlu0 %1936
    %v1940 = vunpack.c.l.s4 269488144
    %v1941 = vunpack.c.0.s8 %v1940
    %v1942 = vperm.slane %v1937, %v1941
    %1944 = vset.pattern.permute.xlu0 0
    %1945 = vperm.xlu0 %1944, %v1895
    %v1946 = vpop.permute.xlu0 %1945
    %v1949 = vunpack.c.l.s4 269488144
    %v1950 = vunpack.c.0.s8 %v1949
    %v1951 = vperm.slane %v1946, %v1950
    %1953 = vset.pattern.permute.xlu0 0
    %1954 = vperm.xlu0 %1953, %v1896
    %v1955 = vpop.permute.xlu0 %1954
    %v1958 = vunpack.c.l.s4 269488144
    %v1959 = vunpack.c.0.s8 %v1958
    %v1960 = vperm.slane %v1955, %v1959
    %1962 = vset.pattern.permute.xlu0 0
    %1963 = vperm.xlu0 %1962, %v1897
    %v1964 = vpop.permute.xlu0 %1963
    %v1967 = vunpack.c.l.s4 269488144
    %v1968 = vunpack.c.0.s8 %v1967
    %v1969 = vperm.slane %v1964, %v1968
    %v1970 = vmul.f32 %v1906, %v1672
    %v1971 = vmul.f32 %v1915, %v1673
    %v1972 = vmul.f32 %v1924, %v1674
    %v1973 = vmul.f32 %v1933, %v1675
    %v1974 = vmul.f32 %v1942, %v1676
    %v1975 = vmul.f32 %v1951, %v1677
    %v1976 = vmul.f32 %v1960, %v1678
    %v1977 = vmul.f32 %v1969, %v1679
    %vm1978 = vcmask 517120
    %v1979 = vsel %vm1978, %v1970, 0.0
    %v1980 = vsel %vm1978, %v1971, 0.0
    %v1981 = vadd.f32 %v1979, %v1980
    %v1982 = vsel %vm1978, %v1972, 0.0
    %v1983 = vadd.f32 %v1981, %v1982
    %v1984 = vsel %vm1978, %v1973, 0.0
    %v1985 = vadd.f32 %v1983, %v1984
    %v1986 = vsel %vm1978, %v1974, 0.0
    %v1987 = vadd.f32 %v1985, %v1986
    %v1988 = vsel %vm1978, %v1975, 0.0
    %v1989 = vadd.f32 %v1987, %v1988
    %v1990 = vsel %vm1978, %v1976, 0.0
    %v1991 = vadd.f32 %v1989, %v1990
    %v1992 = vsel %vm1978, %v1977, 0.0
    %v1993 = vadd.f32 %v1991, %v1992
    %1994 = vst.msk [vmem:[#allocation9] sm:$0x3] %vm1978, %v1993
    %1995 = vst.msk [vmem:[%s12] sm:$0x3] %vm1825, %v1890
    %1996 = vst.msk [vmem:[%s12 + $0x2] sm:$0x3] %vm1825, %v1891
    %1997 = vst.msk [vmem:[%s12 + $0x4] sm:$0x3] %vm1825, %v1892
    %1998 = vst.msk [vmem:[%s12 + $0x6] sm:$0x3] %vm1825, %v1893
    %1999 = vst.msk [vmem:[%s12 + $0x8] sm:$0x3] %vm1825, %v1894
    %2000 = vst.msk [vmem:[%s12 + $0xa] sm:$0x3] %vm1825, %v1895
    %2001 = vst.msk [vmem:[%s12 + $0xc] sm:$0x3] %vm1825, %v1896
    %2002 = vst.msk [vmem:[%s12 + $0xe] sm:$0x3] %vm1825, %v1897
    // Predicated region
    $region50: #{tpu_custom_call.1} parent=1 // pred_check
      _
    $region51: #{tpu_custom_call.1} parent=1 // pred_check_branch
      %2004 = sbr.rel (0) target = $region53
    $region52: #{tpu_custom_call.1} parent=1 // pred_region
      %2006 = vsyncadd [#allocation8], 0
      %s2008 = sshll.u32 [#allocation9], 4
      %s2009 = int_to_ptr.vmem [resolvable:$true] %s2008
      %s2010 = sshll.u32 %s11, 4
      %s2011 = int_to_ptr.hbm [resolvable:$true] %s2010
      %2013 = dma.vmem_to_hbm [thread:$0]  %s2009, 32, %s2011, [#allocation8]
    $region53: #{tpu_custom_call.1} parent=1 // pred_fallthru
      _
    // Predicated region
    $region54: #{tpu_custom_call.1} parent=1 // pred_check
      _
    $region55: #{tpu_custom_call.1} parent=1 // pred_check_branch
      %2015 = sbr.rel (0) target = $region57
    $region56: #{tpu_custom_call.1} parent=1 // pred_region
      _
    $region57: #{tpu_custom_call.1} parent=1 // pred_fallthru
      _
    // Predicated region
    $region58: #{tpu_custom_call.1} parent=1 // pred_check
      _
    $region59: #{tpu_custom_call.1} parent=1 // pred_check_branch
      %2017 = sbr.rel (0) target = $region61
    $region60: #{tpu_custom_call.1} parent=1 // pred_region
      %2019 = dma.done [#allocation8], 32
    $region61: #{tpu_custom_call.1} parent=1 // pred_fallthru
      _
    // Predicated region
    $region62: #{tpu_custom_call.1} parent=1 // pred_check
      _
    $region63: #{tpu_custom_call.1} parent=1 // pred_check_branch
      %2021 = sbr.rel (0) target = $region65
    $region64: #{tpu_custom_call.1} parent=1 // pred_region
      _
    $region65: #{tpu_custom_call.1} parent=1 // pred_fallthru
      _
    %2022 = vsyncpa [#allocation7], 1
    %2023 = vsyncpa [#allocation8], 1

</llo_original>
